<compile_context>
chip_gen: v6e
topology: v6e:2x2x1
jax: 0.10.0
libtpu: 0.0.40
codegen_flags: <defaults>
</compile_context>

<pallas_src>
import jax
import jax.numpy as jnp
from jax.experimental import pallas as pl
from jax.experimental.pallas import tpu as pltpu

_HP = jax.lax.Precision.HIGHEST
# Keep the single-block working set comfortably under v7x's 32 MiB scoped VMEM.
_SINGLE_BLOCK_LIMIT_BYTES = 8 << 20


# --------------------------------------------------------------------------
# Kernels
# --------------------------------------------------------------------------
def _single_block_kernel(x1_ref, x2_ref, x3_ref, inp_ref, out_ref):
    """Whole problem resident in VMEM; exact original op grouping."""
    x1 = x1_ref[...]                               # (N, N)
    inp = inp_ref[...]                             # (N, D)
    v1 = jnp.dot(x1, x2_ref[...],
                 preferred_element_type=jnp.float32, precision=_HP)
    v2 = jnp.dot(v1, x3_ref[...],
                 preferred_element_type=jnp.float32, precision=_HP)
    out = (jnp.dot(v1, inp + v2,
                   preferred_element_type=jnp.float32, precision=_HP)
           + jnp.dot(x1, inp,
                     preferred_element_type=jnp.float32, precision=_HP))
    out_ref[...] = out.astype(out_ref.dtype)


def _tiled_kernel(w_ref, u_ref, x3_ref, inp_ref, out_ref):
    """Per-D-tile: out = w @ inp + u @ x3, with w=(v1+x1), u=(v1@v1) resident.

    Algebraically identical (modulo fp regrouping) to v1@(inp+v2) + x1@inp.
    """
    t1 = jnp.dot(w_ref[...], inp_ref[...],
                 preferred_element_type=jnp.float32, precision=_HP)
    t2 = jnp.dot(u_ref[...], x3_ref[...],
                 preferred_element_type=jnp.float32, precision=_HP)
    out_ref[...] = (t1 + t2).astype(out_ref.dtype)


# --------------------------------------------------------------------------
# Tiling choice
# --------------------------------------------------------------------------
def _pick_tile_d(N, D, tile_d):
    """Return the lane-tile width, or 0 for the single-block (no-grid) path."""
    full_bytes = 4 * N * (2 * N + 3 * D)           # x1,x2 + x3,inp,out in f32
    if tile_d is not None:
        if tile_d <= 0 or tile_d >= D or tile_d % 128 != 0:
            tile_d = None                          # invalid -> auto
        else:
            return tile_d
    if full_bytes <= _SINGLE_BLOCK_LIMIT_BYTES:
        return 0                                   # single block, no grid
    # Auto tiling for large D: ~2 MiB of streamed tile data per step
    # (x3 + inp + out), and >= 8 grid steps when D allows (2 TCs x >= 4
    # pipelined steps on v7x).
    per_lane_bytes = 3 * 4 * N
    target = (2 << 20) // max(per_lane_bytes, 1)
    by_steps = D // 8
    return max(128, (min(target, by_steps) // 128) * 128)


# --------------------------------------------------------------------------
# Wrapper
# --------------------------------------------------------------------------
def model_forward(x1, x2, x3, inp, *, tile_d=None):
    x1 = jnp.asarray(x1, jnp.float32)
    x2 = jnp.asarray(x2, jnp.float32)
    x3 = jnp.asarray(x3, jnp.float32)
    inp = jnp.asarray(inp, jnp.float32)

    N, D = inp.shape
    assert x1.shape == (N, N) and x2.shape == (N, N) and x3.shape == (N, D)

    td = _pick_tile_d(N, D, tile_d)

    # ---------------- single block, no grid (default for small problems) ----
    if td == 0:
        cost = pl.CostEstimate(
            flops=4 * N * N * N + 6 * N * N * D,
            transcendentals=0,
            bytes_accessed=4 * (2 * N * N + 3 * N * D),
        )
        return pl.pallas_call(
            _single_block_kernel,
            out_shape=jax.ShapeDtypeStruct((N, D), jnp.float32),
            cost_estimate=cost,
        )(x1, x2, x3, inp)

    # ---------------- tiled over D (large problems) --------------------------
    # Precompute the two tiny (N,N) matrices once, outside the per-step path.
    v1 = jnp.dot(x1, x2, precision=_HP)            # (N, N)
    w = v1 + x1                                    # (N, N)
    u = jnp.dot(v1, v1, precision=_HP)             # (N, N)

    num_tiles = pl.cdiv(D, td)
    D_pad = num_tiles * td
    if D_pad != D:                                 # ragged D: zero-pad lanes
        x3 = jnp.pad(x3, ((0, 0), (0, D_pad - D)))
        inp = jnp.pad(inp, ((0, 0), (0, D_pad - D)))

    cost = pl.CostEstimate(
        flops=4 * N * N * D_pad,
        transcendentals=0,
        bytes_accessed=4 * (2 * N * N + 3 * N * D_pad),
    )

    out = pl.pallas_call(
        _tiled_kernel,
        out_shape=jax.ShapeDtypeStruct((N, D_pad), jnp.float32),
        grid=(num_tiles,),
        in_specs=[
            pl.BlockSpec((N, N), lambda j: (0, 0)),       # w (resident)
            pl.BlockSpec((N, N), lambda j: (0, 0)),       # u (resident)
            pl.BlockSpec((N, td), lambda j: (0, j)),      # x3 tile
            pl.BlockSpec((N, td), lambda j: (0, j)),      # inp tile
        ],
        out_specs=pl.BlockSpec((N, td), lambda j: (0, j)),
        compiler_params=pltpu.CompilerParams(
            dimension_semantics=("parallel",),
            vmem_limit_bytes=32 * 1024 * 1024,
        ),
        cost_estimate=cost,
    )(w, u, x3, inp)

    return out[:, :D] if D_pad != D else out


# --------------------------------------------------------------------------
# Pure-JAX reference (mirrors the PyTorch forward exactly)
# --------------------------------------------------------------------------
def _reference(x1, x2, x3, inp):
    v1 = jnp.dot(x1, x2, precision=_HP)
    v2 = jnp.dot(v1, x3, precision=_HP)
    return jnp.dot(v1, inp + v2, precision=_HP) + jnp.dot(x1, inp, precision=_HP)


if __name__ == "__main__":
    key = jax.random.PRNGKey(0)
    k1, k2, k3, k4, k5, k6 = jax.random.split(key, 6)

    # Small shapes consistent with the module's dataflow.
    N, D = 8, 512
    x1 = jax.random.normal(k1, (N, N), dtype=jnp.float32)
    x2 = jax.random.normal(k2, (N, N), dtype=jnp.float32)
    x3 = jax.random.normal(k3, (N, D), dtype=jnp.float32)
    inp = jax.random.normal(k4, (N, D), dtype=jnp.float32)

    # Default path: whole problem (~50 KB) -> single VMEM block, no grid.
    out = model_forward(x1, x2, x3, inp)
    jax.block_until_ready(out)
    ref = _reference(x1, x2, x3, inp)
    assert out.shape == (N, D)
    assert jnp.allclose(out, ref, rtol=1e-4, atol=1e-4), "single-block mismatch"

    # Also exercise the tiled (large-D) path once for correctness.
    D2 = 2048
    x3b = jax.random.normal(k5, (N, D2), dtype=jnp.float32)
    inpb = jax.random.normal(k6, (N, D2), dtype=jnp.float32)
    out2 = model_forward(x1, x2, x3b, inpb, tile_d=512)
    jax.block_until_ready(out2)
    ref2 = _reference(x1, x2, x3b, inpb)
    assert out2.shape == (N, D2)
    assert jnp.allclose(out2, ref2, rtol=1e-4, atol=1e-4), "tiled mismatch"

    print("KERNEL_OK")
</pallas_src>

<mosaic_0001>
module attributes {stable_mosaic.version = 11 : i64} {
  func.func @_single_block_kernel(%arg0: memref<8x8xf32, #tpu.memory_space<vmem>>, %arg1: memref<8x8xf32, #tpu.memory_space<vmem>>, %arg2: memref<8x512xf32, #tpu.memory_space<vmem>>, %arg3: memref<8x512xf32, #tpu.memory_space<vmem>>, %arg4: memref<8x512xf32, #tpu.memory_space<vmem>>) attributes {dimension_semantics = [], scalar_prefetch = 0 : i64, scratch_operands = 0 : i64, tpu.core_type = #tpu.core_type<tc>} {
    %c0 = arith.constant 0 : index
    %c0_0 = arith.constant 0 : index
    %0 = vector.load %arg0[%c0, %c0_0] : memref<8x8xf32, #tpu.memory_space<vmem>>, vector<8x8xf32>
    %c0_1 = arith.constant 0 : index
    %c0_2 = arith.constant 0 : index
    %1 = vector.load %arg3[%c0_1, %c0_2] : memref<8x512xf32, #tpu.memory_space<vmem>>, vector<8x512xf32>
    %c0_3 = arith.constant 0 : index
    %c0_4 = arith.constant 0 : index
    %2 = vector.load %arg1[%c0_3, %c0_4] : memref<8x8xf32, #tpu.memory_space<vmem>>, vector<8x8xf32>
    %cst = arith.constant dense<0.000000e+00> : vector<8x8xf32>
    %3 = tpu.matmul %0, %2, %cst {dimension_numbers = #tpu.dot_dimension_numbers<[1], [0], [0], [1], [0, 0, 1, 1], [], []>, precision = #tpu.contract_precision<fp32>} : vector<8x8xf32>, vector<8x8xf32>, vector<8x8xf32> -> vector<8x8xf32>
    %c0_5 = arith.constant 0 : index
    %c0_6 = arith.constant 0 : index
    %4 = vector.load %arg2[%c0_5, %c0_6] : memref<8x512xf32, #tpu.memory_space<vmem>>, vector<8x512xf32>
    %cst_7 = arith.constant dense<0.000000e+00> : vector<8x512xf32>
    %5 = tpu.matmul %3, %4, %cst_7 {dimension_numbers = #tpu.dot_dimension_numbers<[1], [0], [0], [1], [0, 0, 1, 1], [], []>, precision = #tpu.contract_precision<fp32>} : vector<8x8xf32>, vector<8x512xf32>, vector<8x512xf32> -> vector<8x512xf32>
    %6 = arith.addf %1, %5 : vector<8x512xf32>
    %cst_8 = arith.constant dense<0.000000e+00> : vector<8x512xf32>
    %7 = tpu.matmul %3, %6, %cst_8 {dimension_numbers = #tpu.dot_dimension_numbers<[1], [0], [0], [1], [0, 0, 1, 1], [], []>, precision = #tpu.contract_precision<fp32>} : vector<8x8xf32>, vector<8x512xf32>, vector<8x512xf32> -> vector<8x512xf32>
    %cst_9 = arith.constant dense<0.000000e+00> : vector<8x512xf32>
    %8 = tpu.matmul %0, %1, %cst_9 {dimension_numbers = #tpu.dot_dimension_numbers<[1], [0], [0], [1], [0, 0, 1, 1], [], []>, precision = #tpu.contract_precision<fp32>} : vector<8x8xf32>, vector<8x512xf32>, vector<8x512xf32> -> vector<8x512xf32>
    %9 = arith.addf %7, %8 : vector<8x512xf32>
    %c0_10 = arith.constant 0 : index
    %c0_11 = arith.constant 0 : index
    %10 = vector.load %arg4[%c0_10, %c0_11] : memref<8x512xf32, #tpu.memory_space<vmem>>, vector<8x512xf32>
    tpu.vector_store %arg4[%c0_10, %c0_11], %9 {strides = array<i32>} : memref<8x512xf32, #tpu.memory_space<vmem>>, vector<8x512xf32>,
    return
  }
}

</mosaic_0001>

<llo_original>
// kernel: tpu_custom_call.1
$region0: #{tpu_custom_call.1}
  #allocation0 [shape = 'u32[]', space=smem, size = 0x4, offset = 0x4, fixed_abs, tag = 'smem constant byte address 0x4 - core index']
  #allocation1 [shape = 'u32[144,128]{1,0:T(1,128)}', space=vmem, size = 0x12000, scoped, tag = 'internal scratch']
  %s0 = inlined_call_operand.hbm [shape: f32[8,8], index: 0, kind: input, shape index: {}]
  %s1 = inlined_call_operand.hbm [shape: f32[8,8], index: 1, kind: input, shape index: {}]
  %s2 = inlined_call_operand.hbm [shape: f32[8,512], index: 2, kind: input, shape index: {}]
  %s3 = inlined_call_operand.hbm [shape: f32[8,512], index: 3, kind: input, shape index: {}]
  %s4 = inlined_call_operand.hbm [shape: f32[8,512], index: 4, kind: output, shape index: {}]
  %s5 = sld [smem:[#allocation0]]
  $region42: #{tpu_custom_call.1} parent=0
    _
  %s7 = ssub.s32 1, %s5
  %s8 = scalar_select 0, %s7, %s5
  $region1: #{tpu_custom_call.1} parent=0
    #allocation2 [shape = 'u8[4096]{0}', space=vmem, size = 0x1000, scoped, tag = 'input window, operand 0, single buffered']
    #allocation3 [shape = 's32[1]{0}', space=sflag, size = 0x4, scoped, tag = 'scoped memory for tpu_custom_call.1']
    #allocation4 [shape = 's32[1]{0}', space=sflag, size = 0x4, scoped, tag = 'scoped memory for tpu_custom_call.1']
    #allocation5 [shape = 'u8[4096]{0}', space=vmem, size = 0x1000, scoped, tag = 'input window, operand 1, single buffered']
    #allocation6 [shape = 's32[1]{0}', space=sflag, size = 0x4, scoped, tag = 'scoped memory for tpu_custom_call.1']
    #allocation7 [shape = 'u8[16384]{0}', space=vmem, size = 0x4000, scoped, tag = 'input window, operand 2, single buffered']
    #allocation8 [shape = 'u8[16384]{0}', space=vmem, size = 0x4000, scoped, tag = 'input window, operand 3, single buffered']
    #allocation9 [shape = 's32[1]{0}', space=sflag, size = 0x4, scoped, tag = 'scoped memory for tpu_custom_call.1']
    #allocation10 [shape = 'u8[16384]{0}', space=vmem, size = 0x4000, scoped, tag = 'output window, operand 0, single buffered']
    %9 = vsyncpa [#allocation3], 0
    %10 = vsyncpa [#allocation6], 0
    %11 = vsyncpa [#allocation9], 0
    %12 = vsyncpa [#allocation4], 0
    // Predicated region
    $region2: #{tpu_custom_call.1} parent=1 // pred_check
      _
    $region3: #{tpu_custom_call.1} parent=1 // pred_check_branch
      %14 = sbr.rel (0) target = $region5
    $region4: #{tpu_custom_call.1} parent=1 // pred_region
      %s16 = ssub.s32 128, 128
      %17 = vsyncadd [#allocation3], %s16
      %s19 = sshll.u32 [#allocation2], 4
      %s20 = int_to_ptr.vmem [resolvable:$true] %s19
      %22 = dma.hbm_to_vmem [thread:$0]  %s0, 128, %s20, [#allocation3]
    $region5: #{tpu_custom_call.1} parent=1 // pred_fallthru
      _
    // Predicated region
    $region6: #{tpu_custom_call.1} parent=1 // pred_check
      _
    $region7: #{tpu_custom_call.1} parent=1 // pred_check_branch
      %24 = sbr.rel (0) target = $region9
    $region8: #{tpu_custom_call.1} parent=1 // pred_region
      %s26 = ssub.s32 128, 128
      %27 = vsyncadd [#allocation6], %s26
      %s29 = sshll.u32 [#allocation5], 4
      %s30 = int_to_ptr.vmem [resolvable:$true] %s29
      %32 = dma.hbm_to_vmem [thread:$0]  %s1, 128, %s30, [#allocation6]
    $region9: #{tpu_custom_call.1} parent=1 // pred_fallthru
      _
    // Predicated region
    $region10: #{tpu_custom_call.1} parent=1 // pred_check
      _
    $region11: #{tpu_custom_call.1} parent=1 // pred_check_branch
      %34 = sbr.rel (0) target = $region13
    $region12: #{tpu_custom_call.1} parent=1 // pred_region
      %s36 = ssub.s32 512, 512
      %37 = vsyncadd [#allocation6], %s36
      %s39 = sshll.u32 [#allocation7], 4
      %s40 = int_to_ptr.vmem [resolvable:$true] %s39
      %42 = dma.hbm_to_vmem [thread:$0]  %s2, 512, %s40, [#allocation6]
    $region13: #{tpu_custom_call.1} parent=1 // pred_fallthru
      _
    // Predicated region
    $region14: #{tpu_custom_call.1} parent=1 // pred_check
      _
    $region15: #{tpu_custom_call.1} parent=1 // pred_check_branch
      %44 = sbr.rel (0) target = $region17
    $region16: #{tpu_custom_call.1} parent=1 // pred_region
      %s46 = ssub.s32 512, 512
      %47 = vsyncadd [#allocation9], %s46
      %s49 = sshll.u32 [#allocation8], 4
      %s50 = int_to_ptr.vmem [resolvable:$true] %s49
      %52 = dma.hbm_to_vmem [thread:$0]  %s3, 512, %s50, [#allocation9]
    $region17: #{tpu_custom_call.1} parent=1 // pred_fallthru
      _
    // Predicated region
    $region18: #{tpu_custom_call.1} parent=1 // pred_check
      _
    $region19: #{tpu_custom_call.1} parent=1 // pred_check_branch
      %54 = sbr.rel (0) target = $region21
    $region20: #{tpu_custom_call.1} parent=1 // pred_region
      %55 = dma.done [#allocation3], 128
    $region21: #{tpu_custom_call.1} parent=1 // pred_fallthru
      _
    // Predicated region
    $region22: #{tpu_custom_call.1} parent=1 // pred_check
      _
    $region23: #{tpu_custom_call.1} parent=1 // pred_check_branch
      %57 = sbr.rel (0) target = $region25
    $region24: #{tpu_custom_call.1} parent=1 // pred_region
      %58 = dma.done [#allocation6], 128
    $region25: #{tpu_custom_call.1} parent=1 // pred_fallthru
      _
    // Predicated region
    $region26: #{tpu_custom_call.1} parent=1 // pred_check
      _
    $region27: #{tpu_custom_call.1} parent=1 // pred_check_branch
      %60 = sbr.rel (0) target = $region29
    $region28: #{tpu_custom_call.1} parent=1 // pred_region
      %61 = dma.done [#allocation6], 512
    $region29: #{tpu_custom_call.1} parent=1 // pred_fallthru
      _
    // Predicated region
    $region30: #{tpu_custom_call.1} parent=1 // pred_check
      _
    $region31: #{tpu_custom_call.1} parent=1 // pred_check_branch
      %63 = sbr.rel (0) target = $region33
    $region32: #{tpu_custom_call.1} parent=1 // pred_region
      %64 = dma.done [#allocation9], 512
    $region33: #{tpu_custom_call.1} parent=1 // pred_fallthru
      _
    %v65 = vld [vmem:[#allocation2] sm:$0xff]
    %v66 = vld [vmem:[#allocation8] sm:$0xff]
    %v67 = vld [vmem:[#allocation8 + $0x8] sm:$0xff]
    %v68 = vld [vmem:[#allocation8 + $0x10] sm:$0xff]
    %v69 = vld [vmem:[#allocation8 + $0x18] sm:$0xff]
    %v70 = vld [vmem:[#allocation5] sm:$0xff]
    %vm71 = vcmask 64512
    %v73 = vsel %vm71, %v65, 0
    %75 = vmatprep.subr.mxu0 0.0
    %76 = vmatpush1.msra.mxu0 0.0
    %77 = vmatprep.subr.mxu0 0.0
    %78 = vmatpush1.msra.mxu0 0.0
    %79 = vmatprep.subr.mxu0 0.0
    %80 = vmatpush1.msra.mxu0 0.0
    %81 = vmatprep.subr.mxu0 0.0
    %82 = vmatpush1.msra.mxu0 0.0
    %83 = vmatprep.subr.mxu0 0.0
    %84 = vmatpush1.msra.mxu0 0.0
    %85 = vmatprep.subr.mxu0 0.0
    %86 = vmatpush1.msra.mxu0 0.0
    %87 = vmatprep.subr.mxu0 0.0
    %88 = vmatpush1.msra.mxu0 0.0
    %89 = vmatprep.subr.mxu0 0.0
    %90 = vmatpush1.msra.mxu0 0.0
    %91 = vmatprep.subr.mxu0 0.0
    %92 = vmatpush1.msra.mxu0 0.0
    %93 = vmatprep.subr.mxu0 0.0
    %94 = vmatpush1.msra.mxu0 0.0
    %95 = vmatprep.subr.mxu0 0.0
    %96 = vmatpush1.msra.mxu0 0.0
    %97 = vmatprep.subr.mxu0 0.0
    %98 = vmatpush1.msra.mxu0 0.0
    %99 = vmatprep.subr.mxu0 0.0
    %100 = vmatpush1.msra.mxu0 0.0
    %101 = vmatprep.subr.mxu0 0.0
    %102 = vmatpush1.msra.mxu0 0.0
    %103 = vmatprep.subr.mxu0 0.0
    %104 = vmatpush1.msra.mxu0 0.0
    %105 = vmatprep.subr.mxu0 0.0
    %v106 = vand.u32 %v70, 4294901760
    %107 = vmatpush1.msra.mxu0 %v106
    %108 = vmatprep.subr.mxu0 0.0
    %109 = vmatpush2.msra.mxu0 0.0
    %110 = vmatprep.subr.mxu0 0.0
    %111 = vmatpush2.msra.mxu0 0.0
    %112 = vmatprep.subr.mxu0 0.0
    %113 = vmatpush2.msra.mxu0 0.0
    %114 = vmatprep.subr.mxu0 0.0
    %115 = vmatpush2.msra.mxu0 0.0
    %116 = vmatprep.subr.mxu0 0.0
    %117 = vmatpush2.msra.mxu0 0.0
    %118 = vmatprep.subr.mxu0 0.0
    %119 = vmatpush2.msra.mxu0 0.0
    %120 = vmatprep.subr.mxu0 0.0
    %121 = vmatpush2.msra.mxu0 0.0
    %122 = vmatprep.subr.mxu0 0.0
    %123 = vmatpush2.msra.mxu0 0.0
    %124 = vmatprep.subr.mxu0 0.0
    %125 = vmatpush2.msra.mxu0 0.0
    %126 = vmatprep.subr.mxu0 0.0
    %127 = vmatpush2.msra.mxu0 0.0
    %128 = vmatprep.subr.mxu0 0.0
    %129 = vmatpush2.msra.mxu0 0.0
    %130 = vmatprep.subr.mxu0 0.0
    %131 = vmatpush2.msra.mxu0 0.0
    %132 = vmatprep.subr.mxu0 0.0
    %133 = vmatpush2.msra.mxu0 0.0
    %134 = vmatprep.subr.mxu0 0.0
    %135 = vmatpush2.msra.mxu0 0.0
    %136 = vmatprep.subr.mxu0 0.0
    %137 = vmatpush2.msra.mxu0 0.0
    %138 = vmatprep.subr.mxu0 0.0
    %139 = vmatpush2.msra.mxu0 0.0
    %140 = vmatprep.mubr.f32.mxu0 0.0
    %v141 = vand.u32 %v73, 4294901760
    %v142 = vsub.f32 %v73, %v141
    %v143 = vand.u32 %v142, 4294901760
    %v144 = vsub.f32 %v142, %v143
    %v145 = vand.u32 %v144, 4294901760
    %146 = vmatmul.mubr.f32.gmra.mxu0 %v145
    %v147 = vpop.f32.mrf.mxu0
    %v148 = vadd.f32 0.0, %v147
    %v149 = vpop.f32.mrf.mxu0
    %150 = vdwg.mxu0
    %151 = vmatprep.subr.mxu0 0.0
    %152 = vmatpush1.msra.mxu0 0.0
    %153 = vmatprep.subr.mxu0 0.0
    %154 = vmatpush1.msra.mxu0 0.0
    %155 = vmatprep.subr.mxu0 0.0
    %156 = vmatpush1.msra.mxu0 0.0
    %157 = vmatprep.subr.mxu0 0.0
    %158 = vmatpush1.msra.mxu0 0.0
    %159 = vmatprep.subr.mxu0 0.0
    %160 = vmatpush1.msra.mxu0 0.0
    %161 = vmatprep.subr.mxu0 0.0
    %162 = vmatpush1.msra.mxu0 0.0
    %163 = vmatprep.subr.mxu0 0.0
    %164 = vmatpush1.msra.mxu0 0.0
    %165 = vmatprep.subr.mxu0 0.0
    %166 = vmatpush1.msra.mxu0 0.0
    %167 = vmatprep.subr.mxu0 0.0
    %168 = vmatpush1.msra.mxu0 0.0
    %169 = vmatprep.subr.mxu0 0.0
    %170 = vmatpush1.msra.mxu0 0.0
    %171 = vmatprep.subr.mxu0 0.0
    %172 = vmatpush1.msra.mxu0 0.0
    %173 = vmatprep.subr.mxu0 0.0
    %174 = vmatpush1.msra.mxu0 0.0
    %175 = vmatprep.subr.mxu0 0.0
    %176 = vmatpush1.msra.mxu0 0.0
    %177 = vmatprep.subr.mxu0 0.0
    %178 = vmatpush1.msra.mxu0 0.0
    %179 = vmatprep.subr.mxu0 0.0
    %180 = vmatpush1.msra.mxu0 0.0
    %181 = vmatprep.subr.mxu0 0.0
    %v182 = vand.u32 %v70, 4294901760
    %v183 = vsub.f32 %v70, %v182
    %v184 = vand.u32 %v183, 4294901760
    %v185 = vsub.f32 %v183, %v184
    %v186 = vand.u32 %v185, 4294901760
    %187 = vmatpush1.msra.mxu0 %v186
    %188 = vmatprep.subr.mxu0 0.0
    %189 = vmatpush2.msra.mxu0 0.0
    %190 = vmatprep.subr.mxu0 0.0
    %191 = vmatpush2.msra.mxu0 0.0
    %192 = vmatprep.subr.mxu0 0.0
    %193 = vmatpush2.msra.mxu0 0.0
    %194 = vmatprep.subr.mxu0 0.0
    %195 = vmatpush2.msra.mxu0 0.0
    %196 = vmatprep.subr.mxu0 0.0
    %197 = vmatpush2.msra.mxu0 0.0
    %198 = vmatprep.subr.mxu0 0.0
    %199 = vmatpush2.msra.mxu0 0.0
    %200 = vmatprep.subr.mxu0 0.0
    %201 = vmatpush2.msra.mxu0 0.0
    %202 = vmatprep.subr.mxu0 0.0
    %203 = vmatpush2.msra.mxu0 0.0
    %204 = vmatprep.subr.mxu0 0.0
    %205 = vmatpush2.msra.mxu0 0.0
    %206 = vmatprep.subr.mxu0 0.0
    %207 = vmatpush2.msra.mxu0 0.0
    %208 = vmatprep.subr.mxu0 0.0
    %209 = vmatpush2.msra.mxu0 0.0
    %210 = vmatprep.subr.mxu0 0.0
    %211 = vmatpush2.msra.mxu0 0.0
    %212 = vmatprep.subr.mxu0 0.0
    %213 = vmatpush2.msra.mxu0 0.0
    %214 = vmatprep.subr.mxu0 0.0
    %215 = vmatpush2.msra.mxu0 0.0
    %216 = vmatprep.subr.mxu0 0.0
    %217 = vmatpush2.msra.mxu0 0.0
    %218 = vmatprep.subr.mxu0 0.0
    %219 = vmatpush2.msra.mxu0 0.0
    %220 = vmatprep.mubr.f32.mxu0 0.0
    %v221 = vand.u32 %v73, 4294901760
    %222 = vmatmul.mubr.f32.gmra.mxu0 %v221
    %v223 = vpop.f32.mrf.mxu0
    %v224 = vadd.f32 %v148, %v223
    %v225 = vpop.f32.mrf.mxu0
    %226 = vdwg.mxu0
    %227 = vmatprep.subr.mxu0 0.0
    %228 = vmatpush1.msra.mxu0 0.0
    %229 = vmatprep.subr.mxu0 0.0
    %230 = vmatpush1.msra.mxu0 0.0
    %231 = vmatprep.subr.mxu0 0.0
    %232 = vmatpush1.msra.mxu0 0.0
    %233 = vmatprep.subr.mxu0 0.0
    %234 = vmatpush1.msra.mxu0 0.0
    %235 = vmatprep.subr.mxu0 0.0
    %236 = vmatpush1.msra.mxu0 0.0
    %237 = vmatprep.subr.mxu0 0.0
    %238 = vmatpush1.msra.mxu0 0.0
    %239 = vmatprep.subr.mxu0 0.0
    %240 = vmatpush1.msra.mxu0 0.0
    %241 = vmatprep.subr.mxu0 0.0
    %242 = vmatpush1.msra.mxu0 0.0
    %243 = vmatprep.subr.mxu0 0.0
    %244 = vmatpush1.msra.mxu0 0.0
    %245 = vmatprep.subr.mxu0 0.0
    %246 = vmatpush1.msra.mxu0 0.0
    %247 = vmatprep.subr.mxu0 0.0
    %248 = vmatpush1.msra.mxu0 0.0
    %249 = vmatprep.subr.mxu0 0.0
    %250 = vmatpush1.msra.mxu0 0.0
    %251 = vmatprep.subr.mxu0 0.0
    %252 = vmatpush1.msra.mxu0 0.0
    %253 = vmatprep.subr.mxu0 0.0
    %254 = vmatpush1.msra.mxu0 0.0
    %255 = vmatprep.subr.mxu0 0.0
    %256 = vmatpush1.msra.mxu0 0.0
    %257 = vmatprep.subr.mxu0 0.0
    %v258 = vand.u32 %v70, 4294901760
    %v259 = vsub.f32 %v70, %v258
    %260 = vmatpush1.msra.mxu0 %v259
    %261 = vmatprep.subr.mxu0 0.0
    %262 = vmatpush2.msra.mxu0 0.0
    %263 = vmatprep.subr.mxu0 0.0
    %264 = vmatpush2.msra.mxu0 0.0
    %265 = vmatprep.subr.mxu0 0.0
    %266 = vmatpush2.msra.mxu0 0.0
    %267 = vmatprep.subr.mxu0 0.0
    %268 = vmatpush2.msra.mxu0 0.0
    %269 = vmatprep.subr.mxu0 0.0
    %270 = vmatpush2.msra.mxu0 0.0
    %271 = vmatprep.subr.mxu0 0.0
    %272 = vmatpush2.msra.mxu0 0.0
    %273 = vmatprep.subr.mxu0 0.0
    %274 = vmatpush2.msra.mxu0 0.0
    %275 = vmatprep.subr.mxu0 0.0
    %276 = vmatpush2.msra.mxu0 0.0
    %277 = vmatprep.subr.mxu0 0.0
    %278 = vmatpush2.msra.mxu0 0.0
    %279 = vmatprep.subr.mxu0 0.0
    %280 = vmatpush2.msra.mxu0 0.0
    %281 = vmatprep.subr.mxu0 0.0
    %282 = vmatpush2.msra.mxu0 0.0
    %283 = vmatprep.subr.mxu0 0.0
    %284 = vmatpush2.msra.mxu0 0.0
    %285 = vmatprep.subr.mxu0 0.0
    %286 = vmatpush2.msra.mxu0 0.0
    %287 = vmatprep.subr.mxu0 0.0
    %288 = vmatpush2.msra.mxu0 0.0
    %289 = vmatprep.subr.mxu0 0.0
    %290 = vmatpush2.msra.mxu0 0.0
    %291 = vmatprep.subr.mxu0 0.0
    %292 = vmatpush2.msra.mxu0 0.0
    %293 = vmatprep.mubr.f32.mxu0 0.0
    %v294 = vand.u32 %v73, 4294901760
    %v295 = vsub.f32 %v73, %v294
    %296 = vmatmul.mubr.f32.gmra.mxu0 %v295
    %v297 = vpop.f32.mrf.mxu0
    %v298 = vadd.f32 %v224, %v297
    %v299 = vpop.f32.mrf.mxu0
    %300 = vdwg.mxu0
    %301 = vmatprep.subr.mxu0 0.0
    %302 = vmatpush1.msra.mxu0 0.0
    %303 = vmatprep.subr.mxu0 0.0
    %304 = vmatpush1.msra.mxu0 0.0
    %305 = vmatprep.subr.mxu0 0.0
    %306 = vmatpush1.msra.mxu0 0.0
    %307 = vmatprep.subr.mxu0 0.0
    %308 = vmatpush1.msra.mxu0 0.0
    %309 = vmatprep.subr.mxu0 0.0
    %310 = vmatpush1.msra.mxu0 0.0
    %311 = vmatprep.subr.mxu0 0.0
    %312 = vmatpush1.msra.mxu0 0.0
    %313 = vmatprep.subr.mxu0 0.0
    %314 = vmatpush1.msra.mxu0 0.0
    %315 = vmatprep.subr.mxu0 0.0
    %316 = vmatpush1.msra.mxu0 0.0
    %317 = vmatprep.subr.mxu0 0.0
    %318 = vmatpush1.msra.mxu0 0.0
    %319 = vmatprep.subr.mxu0 0.0
    %320 = vmatpush1.msra.mxu0 0.0
    %321 = vmatprep.subr.mxu0 0.0
    %322 = vmatpush1.msra.mxu0 0.0
    %323 = vmatprep.subr.mxu0 0.0
    %324 = vmatpush1.msra.mxu0 0.0
    %325 = vmatprep.subr.mxu0 0.0
    %326 = vmatpush1.msra.mxu0 0.0
    %327 = vmatprep.subr.mxu0 0.0
    %328 = vmatpush1.msra.mxu0 0.0
    %329 = vmatprep.subr.mxu0 0.0
    %330 = vmatpush1.msra.mxu0 0.0
    %331 = vmatprep.subr.mxu0 0.0
    %v332 = vand.u32 %v70, 4294901760
    %333 = vmatpush1.msra.mxu0 %v332
    %334 = vmatprep.subr.mxu0 0.0
    %335 = vmatpush2.msra.mxu0 0.0
    %336 = vmatprep.subr.mxu0 0.0
    %337 = vmatpush2.msra.mxu0 0.0
    %338 = vmatprep.subr.mxu0 0.0
    %339 = vmatpush2.msra.mxu0 0.0
    %340 = vmatprep.subr.mxu0 0.0
    %341 = vmatpush2.msra.mxu0 0.0
    %342 = vmatprep.subr.mxu0 0.0
    %343 = vmatpush2.msra.mxu0 0.0
    %344 = vmatprep.subr.mxu0 0.0
    %345 = vmatpush2.msra.mxu0 0.0
    %346 = vmatprep.subr.mxu0 0.0
    %347 = vmatpush2.msra.mxu0 0.0
    %348 = vmatprep.subr.mxu0 0.0
    %349 = vmatpush2.msra.mxu0 0.0
    %350 = vmatprep.subr.mxu0 0.0
    %351 = vmatpush2.msra.mxu0 0.0
    %352 = vmatprep.subr.mxu0 0.0
    %353 = vmatpush2.msra.mxu0 0.0
    %354 = vmatprep.subr.mxu0 0.0
    %355 = vmatpush2.msra.mxu0 0.0
    %356 = vmatprep.subr.mxu0 0.0
    %357 = vmatpush2.msra.mxu0 0.0
    %358 = vmatprep.subr.mxu0 0.0
    %359 = vmatpush2.msra.mxu0 0.0
    %360 = vmatprep.subr.mxu0 0.0
    %361 = vmatpush2.msra.mxu0 0.0
    %362 = vmatprep.subr.mxu0 0.0
    %363 = vmatpush2.msra.mxu0 0.0
    %364 = vmatprep.subr.mxu0 0.0
    %365 = vmatpush2.msra.mxu0 0.0
    %366 = vmatprep.mubr.f32.mxu0 0.0
    %v367 = vand.u32 %v73, 4294901760
    %v368 = vsub.f32 %v73, %v367
    %v369 = vand.u32 %v368, 4294901760
    %370 = vmatmul.mubr.f32.gmra.mxu0 %v369
    %v371 = vpop.f32.mrf.mxu0
    %v372 = vadd.f32 %v298, %v371
    %v373 = vpop.f32.mrf.mxu0
    %374 = vdwg.mxu0
    %375 = vmatprep.subr.mxu0 0.0
    %376 = vmatpush1.msra.mxu0 0.0
    %377 = vmatprep.subr.mxu0 0.0
    %378 = vmatpush1.msra.mxu0 0.0
    %379 = vmatprep.subr.mxu0 0.0
    %380 = vmatpush1.msra.mxu0 0.0
    %381 = vmatprep.subr.mxu0 0.0
    %382 = vmatpush1.msra.mxu0 0.0
    %383 = vmatprep.subr.mxu0 0.0
    %384 = vmatpush1.msra.mxu0 0.0
    %385 = vmatprep.subr.mxu0 0.0
    %386 = vmatpush1.msra.mxu0 0.0
    %387 = vmatprep.subr.mxu0 0.0
    %388 = vmatpush1.msra.mxu0 0.0
    %389 = vmatprep.subr.mxu0 0.0
    %390 = vmatpush1.msra.mxu0 0.0
    %391 = vmatprep.subr.mxu0 0.0
    %392 = vmatpush1.msra.mxu0 0.0
    %393 = vmatprep.subr.mxu0 0.0
    %394 = vmatpush1.msra.mxu0 0.0
    %395 = vmatprep.subr.mxu0 0.0
    %396 = vmatpush1.msra.mxu0 0.0
    %397 = vmatprep.subr.mxu0 0.0
    %398 = vmatpush1.msra.mxu0 0.0
    %399 = vmatprep.subr.mxu0 0.0
    %400 = vmatpush1.msra.mxu0 0.0
    %401 = vmatprep.subr.mxu0 0.0
    %402 = vmatpush1.msra.mxu0 0.0
    %403 = vmatprep.subr.mxu0 0.0
    %404 = vmatpush1.msra.mxu0 0.0
    %405 = vmatprep.subr.mxu0 0.0
    %v406 = vand.u32 %v70, 4294901760
    %v407 = vsub.f32 %v70, %v406
    %v408 = vand.u32 %v407, 4294901760
    %409 = vmatpush1.msra.mxu0 %v408
    %410 = vmatprep.subr.mxu0 0.0
    %411 = vmatpush2.msra.mxu0 0.0
    %412 = vmatprep.subr.mxu0 0.0
    %413 = vmatpush2.msra.mxu0 0.0
    %414 = vmatprep.subr.mxu0 0.0
    %415 = vmatpush2.msra.mxu0 0.0
    %416 = vmatprep.subr.mxu0 0.0
    %417 = vmatpush2.msra.mxu0 0.0
    %418 = vmatprep.subr.mxu0 0.0
    %419 = vmatpush2.msra.mxu0 0.0
    %420 = vmatprep.subr.mxu0 0.0
    %421 = vmatpush2.msra.mxu0 0.0
    %422 = vmatprep.subr.mxu0 0.0
    %423 = vmatpush2.msra.mxu0 0.0
    %424 = vmatprep.subr.mxu0 0.0
    %425 = vmatpush2.msra.mxu0 0.0
    %426 = vmatprep.subr.mxu0 0.0
    %427 = vmatpush2.msra.mxu0 0.0
    %428 = vmatprep.subr.mxu0 0.0
    %429 = vmatpush2.msra.mxu0 0.0
    %430 = vmatprep.subr.mxu0 0.0
    %431 = vmatpush2.msra.mxu0 0.0
    %432 = vmatprep.subr.mxu0 0.0
    %433 = vmatpush2.msra.mxu0 0.0
    %434 = vmatprep.subr.mxu0 0.0
    %435 = vmatpush2.msra.mxu0 0.0
    %436 = vmatprep.subr.mxu0 0.0
    %437 = vmatpush2.msra.mxu0 0.0
    %438 = vmatprep.subr.mxu0 0.0
    %439 = vmatpush2.msra.mxu0 0.0
    %440 = vmatprep.subr.mxu0 0.0
    %441 = vmatpush2.msra.mxu0 0.0
    %442 = vmatprep.mubr.f32.mxu0 0.0
    %v443 = vand.u32 %v73, 4294901760
    %444 = vmatmul.mubr.f32.gmra.mxu0 %v443
    %v445 = vpop.f32.mrf.mxu0
    %v446 = vadd.f32 %v372, %v445
    %v447 = vpop.f32.mrf.mxu0
    %448 = vdwg.mxu0
    %449 = vmatprep.subr.mxu0 0.0
    %450 = vmatpush1.msra.mxu0 0.0
    %451 = vmatprep.subr.mxu0 0.0
    %452 = vmatpush1.msra.mxu0 0.0
    %453 = vmatprep.subr.mxu0 0.0
    %454 = vmatpush1.msra.mxu0 0.0
    %455 = vmatprep.subr.mxu0 0.0
    %456 = vmatpush1.msra.mxu0 0.0
    %457 = vmatprep.subr.mxu0 0.0
    %458 = vmatpush1.msra.mxu0 0.0
    %459 = vmatprep.subr.mxu0 0.0
    %460 = vmatpush1.msra.mxu0 0.0
    %461 = vmatprep.subr.mxu0 0.0
    %462 = vmatpush1.msra.mxu0 0.0
    %463 = vmatprep.subr.mxu0 0.0
    %464 = vmatpush1.msra.mxu0 0.0
    %465 = vmatprep.subr.mxu0 0.0
    %466 = vmatpush1.msra.mxu0 0.0
    %467 = vmatprep.subr.mxu0 0.0
    %468 = vmatpush1.msra.mxu0 0.0
    %469 = vmatprep.subr.mxu0 0.0
    %470 = vmatpush1.msra.mxu0 0.0
    %471 = vmatprep.subr.mxu0 0.0
    %472 = vmatpush1.msra.mxu0 0.0
    %473 = vmatprep.subr.mxu0 0.0
    %474 = vmatpush1.msra.mxu0 0.0
    %475 = vmatprep.subr.mxu0 0.0
    %476 = vmatpush1.msra.mxu0 0.0
    %477 = vmatprep.subr.mxu0 0.0
    %478 = vmatpush1.msra.mxu0 0.0
    %479 = vmatprep.subr.mxu0 0.0
    %v480 = vand.u32 %v70, 4294901760
    %481 = vmatpush1.msra.mxu0 %v480
    %482 = vmatprep.subr.mxu0 0.0
    %483 = vmatpush2.msra.mxu0 0.0
    %484 = vmatprep.subr.mxu0 0.0
    %485 = vmatpush2.msra.mxu0 0.0
    %486 = vmatprep.subr.mxu0 0.0
    %487 = vmatpush2.msra.mxu0 0.0
    %488 = vmatprep.subr.mxu0 0.0
    %489 = vmatpush2.msra.mxu0 0.0
    %490 = vmatprep.subr.mxu0 0.0
    %491 = vmatpush2.msra.mxu0 0.0
    %492 = vmatprep.subr.mxu0 0.0
    %493 = vmatpush2.msra.mxu0 0.0
    %494 = vmatprep.subr.mxu0 0.0
    %495 = vmatpush2.msra.mxu0 0.0
    %496 = vmatprep.subr.mxu0 0.0
    %497 = vmatpush2.msra.mxu0 0.0
    %498 = vmatprep.subr.mxu0 0.0
    %499 = vmatpush2.msra.mxu0 0.0
    %500 = vmatprep.subr.mxu0 0.0
    %501 = vmatpush2.msra.mxu0 0.0
    %502 = vmatprep.subr.mxu0 0.0
    %503 = vmatpush2.msra.mxu0 0.0
    %504 = vmatprep.subr.mxu0 0.0
    %505 = vmatpush2.msra.mxu0 0.0
    %506 = vmatprep.subr.mxu0 0.0
    %507 = vmatpush2.msra.mxu0 0.0
    %508 = vmatprep.subr.mxu0 0.0
    %509 = vmatpush2.msra.mxu0 0.0
    %510 = vmatprep.subr.mxu0 0.0
    %511 = vmatpush2.msra.mxu0 0.0
    %512 = vmatprep.subr.mxu0 0.0
    %513 = vmatpush2.msra.mxu0 0.0
    %514 = vmatprep.mubr.f32.mxu0 0.0
    %v515 = vand.u32 %v73, 4294901760
    %516 = vmatmul.mubr.f32.gmra.mxu0 %v515
    %v517 = vpop.f32.mrf.mxu0
    %v518 = vadd.f32 %v446, %v517
    %v519 = vpop.f32.mrf.mxu0
    %520 = vdwg.mxu0
    %v521 = vld [vmem:[#allocation7] sm:$0xff]
    %v522 = vld [vmem:[#allocation7 + $0x8] sm:$0xff]
    %v523 = vld [vmem:[#allocation7 + $0x10] sm:$0xff]
    %v524 = vld [vmem:[#allocation7 + $0x18] sm:$0xff]
    %v526 = vsel %vm71, %v518, 0
    %528 = vmatprep.subr.mxu0 0.0
    %529 = vmatpush1.msra.mxu0 0.0
    %530 = vmatprep.subr.mxu0 0.0
    %531 = vmatpush1.msra.mxu0 0.0
    %532 = vmatprep.subr.mxu0 0.0
    %533 = vmatpush1.msra.mxu0 0.0
    %534 = vmatprep.subr.mxu0 0.0
    %535 = vmatpush1.msra.mxu0 0.0
    %536 = vmatprep.subr.mxu0 0.0
    %537 = vmatpush1.msra.mxu0 0.0
    %538 = vmatprep.subr.mxu0 0.0
    %539 = vmatpush1.msra.mxu0 0.0
    %540 = vmatprep.subr.mxu0 0.0
    %541 = vmatpush1.msra.mxu0 0.0
    %542 = vmatprep.subr.mxu0 0.0
    %543 = vmatpush1.msra.mxu0 0.0
    %544 = vmatprep.subr.mxu0 0.0
    %545 = vmatpush1.msra.mxu0 0.0
    %546 = vmatprep.subr.mxu0 0.0
    %547 = vmatpush1.msra.mxu0 0.0
    %548 = vmatprep.subr.mxu0 0.0
    %549 = vmatpush1.msra.mxu0 0.0
    %550 = vmatprep.subr.mxu0 0.0
    %551 = vmatpush1.msra.mxu0 0.0
    %552 = vmatprep.subr.mxu0 0.0
    %553 = vmatpush1.msra.mxu0 0.0
    %554 = vmatprep.subr.mxu0 0.0
    %555 = vmatpush1.msra.mxu0 0.0
    %556 = vmatprep.subr.mxu0 0.0
    %557 = vmatpush1.msra.mxu0 0.0
    %v558 = vand.u32 %v522, 4294901760
    %559 = vmatprep.subr.mxu0 %v558
    %v560 = vand.u32 %v521, 4294901760
    %561 = vmatpush1.msra.mxu0 %v560
    %562 = vmatprep.subr.mxu0 0.0
    %563 = vmatpush2.msra.mxu0 0.0
    %564 = vmatprep.subr.mxu0 0.0
    %565 = vmatpush2.msra.mxu0 0.0
    %566 = vmatprep.subr.mxu0 0.0
    %567 = vmatpush2.msra.mxu0 0.0
    %568 = vmatprep.subr.mxu0 0.0
    %569 = vmatpush2.msra.mxu0 0.0
    %570 = vmatprep.subr.mxu0 0.0
    %571 = vmatpush2.msra.mxu0 0.0
    %572 = vmatprep.subr.mxu0 0.0
    %573 = vmatpush2.msra.mxu0 0.0
    %574 = vmatprep.subr.mxu0 0.0
    %575 = vmatpush2.msra.mxu0 0.0
    %576 = vmatprep.subr.mxu0 0.0
    %577 = vmatpush2.msra.mxu0 0.0
    %578 = vmatprep.subr.mxu0 0.0
    %579 = vmatpush2.msra.mxu0 0.0
    %580 = vmatprep.subr.mxu0 0.0
    %581 = vmatpush2.msra.mxu0 0.0
    %582 = vmatprep.subr.mxu0 0.0
    %583 = vmatpush2.msra.mxu0 0.0
    %584 = vmatprep.subr.mxu0 0.0
    %585 = vmatpush2.msra.mxu0 0.0
    %586 = vmatprep.subr.mxu0 0.0
    %587 = vmatpush2.msra.mxu0 0.0
    %588 = vmatprep.subr.mxu0 0.0
    %589 = vmatpush2.msra.mxu0 0.0
    %590 = vmatprep.subr.mxu0 0.0
    %591 = vmatpush2.msra.mxu0 0.0
    %592 = vmatprep.subr.mxu0 0.0
    %593 = vmatpush2.msra.mxu0 0.0
    %594 = vmatprep.mubr.f32.mxu0 0.0
    %v595 = vand.u32 %v526, 4294901760
    %v596 = vsub.f32 %v526, %v595
    %v597 = vand.u32 %v596, 4294901760
    %v598 = vsub.f32 %v596, %v597
    %v599 = vand.u32 %v598, 4294901760
    %600 = vmatmul.mubr.f32.gmra.mxu0 %v599
    %v601 = vpop.f32.mrf.mxu0
    %v602 = vadd.f32 0.0, %v601
    %v603 = vpop.f32.mrf.mxu0
    %v604 = vadd.f32 0.0, %v603
    %605 = vdwg.mxu0
    %606 = vmatprep.subr.mxu0 0.0
    %607 = vmatpush1.msra.mxu0 0.0
    %608 = vmatprep.subr.mxu0 0.0
    %609 = vmatpush1.msra.mxu0 0.0
    %610 = vmatprep.subr.mxu0 0.0
    %611 = vmatpush1.msra.mxu0 0.0
    %612 = vmatprep.subr.mxu0 0.0
    %613 = vmatpush1.msra.mxu0 0.0
    %614 = vmatprep.subr.mxu0 0.0
    %615 = vmatpush1.msra.mxu0 0.0
    %616 = vmatprep.subr.mxu0 0.0
    %617 = vmatpush1.msra.mxu0 0.0
    %618 = vmatprep.subr.mxu0 0.0
    %619 = vmatpush1.msra.mxu0 0.0
    %620 = vmatprep.subr.mxu0 0.0
    %621 = vmatpush1.msra.mxu0 0.0
    %622 = vmatprep.subr.mxu0 0.0
    %623 = vmatpush1.msra.mxu0 0.0
    %624 = vmatprep.subr.mxu0 0.0
    %625 = vmatpush1.msra.mxu0 0.0
    %626 = vmatprep.subr.mxu0 0.0
    %627 = vmatpush1.msra.mxu0 0.0
    %628 = vmatprep.subr.mxu0 0.0
    %629 = vmatpush1.msra.mxu0 0.0
    %630 = vmatprep.subr.mxu0 0.0
    %631 = vmatpush1.msra.mxu0 0.0
    %632 = vmatprep.subr.mxu0 0.0
    %633 = vmatpush1.msra.mxu0 0.0
    %634 = vmatprep.subr.mxu0 0.0
    %635 = vmatpush1.msra.mxu0 0.0
    %v636 = vand.u32 %v522, 4294901760
    %v637 = vsub.f32 %v522, %v636
    %v638 = vand.u32 %v637, 4294901760
    %v639 = vsub.f32 %v637, %v638
    %v640 = vand.u32 %v639, 4294901760
    %641 = vmatprep.subr.mxu0 %v640
    %v642 = vand.u32 %v521, 4294901760
    %v643 = vsub.f32 %v521, %v642
    %v644 = vand.u32 %v643, 4294901760
    %v645 = vsub.f32 %v643, %v644
    %v646 = vand.u32 %v645, 4294901760
    %647 = vmatpush1.msra.mxu0 %v646
    %648 = vmatprep.subr.mxu0 0.0
    %649 = vmatpush2.msra.mxu0 0.0
    %650 = vmatprep.subr.mxu0 0.0
    %651 = vmatpush2.msra.mxu0 0.0
    %652 = vmatprep.subr.mxu0 0.0
    %653 = vmatpush2.msra.mxu0 0.0
    %654 = vmatprep.subr.mxu0 0.0
    %655 = vmatpush2.msra.mxu0 0.0
    %656 = vmatprep.subr.mxu0 0.0
    %657 = vmatpush2.msra.mxu0 0.0
    %658 = vmatprep.subr.mxu0 0.0
    %659 = vmatpush2.msra.mxu0 0.0
    %660 = vmatprep.subr.mxu0 0.0
    %661 = vmatpush2.msra.mxu0 0.0
    %662 = vmatprep.subr.mxu0 0.0
    %663 = vmatpush2.msra.mxu0 0.0
    %664 = vmatprep.subr.mxu0 0.0
    %665 = vmatpush2.msra.mxu0 0.0
    %666 = vmatprep.subr.mxu0 0.0
    %667 = vmatpush2.msra.mxu0 0.0
    %668 = vmatprep.subr.mxu0 0.0
    %669 = vmatpush2.msra.mxu0 0.0
    %670 = vmatprep.subr.mxu0 0.0
    %671 = vmatpush2.msra.mxu0 0.0
    %672 = vmatprep.subr.mxu0 0.0
    %673 = vmatpush2.msra.mxu0 0.0
    %674 = vmatprep.subr.mxu0 0.0
    %675 = vmatpush2.msra.mxu0 0.0
    %676 = vmatprep.subr.mxu0 0.0
    %677 = vmatpush2.msra.mxu0 0.0
    %678 = vmatprep.subr.mxu0 0.0
    %679 = vmatpush2.msra.mxu0 0.0
    %680 = vmatprep.mubr.f32.mxu0 0.0
    %v681 = vand.u32 %v526, 4294901760
    %682 = vmatmul.mubr.f32.gmra.mxu0 %v681
    %v683 = vpop.f32.mrf.mxu0
    %v684 = vadd.f32 %v602, %v683
    %v685 = vpop.f32.mrf.mxu0
    %v686 = vadd.f32 %v604, %v685
    %687 = vdwg.mxu0
    %688 = vmatprep.subr.mxu0 0.0
    %689 = vmatpush1.msra.mxu0 0.0
    %690 = vmatprep.subr.mxu0 0.0
    %691 = vmatpush1.msra.mxu0 0.0
    %692 = vmatprep.subr.mxu0 0.0
    %693 = vmatpush1.msra.mxu0 0.0
    %694 = vmatprep.subr.mxu0 0.0
    %695 = vmatpush1.msra.mxu0 0.0
    %696 = vmatprep.subr.mxu0 0.0
    %697 = vmatpush1.msra.mxu0 0.0
    %698 = vmatprep.subr.mxu0 0.0
    %699 = vmatpush1.msra.mxu0 0.0
    %700 = vmatprep.subr.mxu0 0.0
    %701 = vmatpush1.msra.mxu0 0.0
    %702 = vmatprep.subr.mxu0 0.0
    %703 = vmatpush1.msra.mxu0 0.0
    %704 = vmatprep.subr.mxu0 0.0
    %705 = vmatpush1.msra.mxu0 0.0
    %706 = vmatprep.subr.mxu0 0.0
    %707 = vmatpush1.msra.mxu0 0.0
    %708 = vmatprep.subr.mxu0 0.0
    %709 = vmatpush1.msra.mxu0 0.0
    %710 = vmatprep.subr.mxu0 0.0
    %711 = vmatpush1.msra.mxu0 0.0
    %712 = vmatprep.subr.mxu0 0.0
    %713 = vmatpush1.msra.mxu0 0.0
    %714 = vmatprep.subr.mxu0 0.0
    %715 = vmatpush1.msra.mxu0 0.0
    %716 = vmatprep.subr.mxu0 0.0
    %717 = vmatpush1.msra.mxu0 0.0
    %v718 = vand.u32 %v522, 4294901760
    %v719 = vsub.f32 %v522, %v718
    %720 = vmatprep.subr.mxu0 %v719
    %v721 = vand.u32 %v521, 4294901760
    %v722 = vsub.f32 %v521, %v721
    %723 = vmatpush1.msra.mxu0 %v722
    %724 = vmatprep.subr.mxu0 0.0
    %725 = vmatpush2.msra.mxu0 0.0
    %726 = vmatprep.subr.mxu0 0.0
    %727 = vmatpush2.msra.mxu0 0.0
    %728 = vmatprep.subr.mxu0 0.0
    %729 = vmatpush2.msra.mxu0 0.0
    %730 = vmatprep.subr.mxu0 0.0
    %731 = vmatpush2.msra.mxu0 0.0
    %732 = vmatprep.subr.mxu0 0.0
    %733 = vmatpush2.msra.mxu0 0.0
    %734 = vmatprep.subr.mxu0 0.0
    %735 = vmatpush2.msra.mxu0 0.0
    %736 = vmatprep.subr.mxu0 0.0
    %737 = vmatpush2.msra.mxu0 0.0
    %738 = vmatprep.subr.mxu0 0.0
    %739 = vmatpush2.msra.mxu0 0.0
    %740 = vmatprep.subr.mxu0 0.0
    %741 = vmatpush2.msra.mxu0 0.0
    %742 = vmatprep.subr.mxu0 0.0
    %743 = vmatpush2.msra.mxu0 0.0
    %744 = vmatprep.subr.mxu0 0.0
    %745 = vmatpush2.msra.mxu0 0.0
    %746 = vmatprep.subr.mxu0 0.0
    %747 = vmatpush2.msra.mxu0 0.0
    %748 = vmatprep.subr.mxu0 0.0
    %749 = vmatpush2.msra.mxu0 0.0
    %750 = vmatprep.subr.mxu0 0.0
    %751 = vmatpush2.msra.mxu0 0.0
    %752 = vmatprep.subr.mxu0 0.0
    %753 = vmatpush2.msra.mxu0 0.0
    %754 = vmatprep.subr.mxu0 0.0
    %755 = vmatpush2.msra.mxu0 0.0
    %756 = vmatprep.mubr.f32.mxu0 0.0
    %v757 = vand.u32 %v526, 4294901760
    %v758 = vsub.f32 %v526, %v757
    %759 = vmatmul.mubr.f32.gmra.mxu0 %v758
    %v760 = vpop.f32.mrf.mxu0
    %v761 = vadd.f32 %v684, %v760
    %v762 = vpop.f32.mrf.mxu0
    %v763 = vadd.f32 %v686, %v762
    %764 = vdwg.mxu0
    %765 = vmatprep.subr.mxu0 0.0
    %766 = vmatpush1.msra.mxu0 0.0
    %767 = vmatprep.subr.mxu0 0.0
    %768 = vmatpush1.msra.mxu0 0.0
    %769 = vmatprep.subr.mxu0 0.0
    %770 = vmatpush1.msra.mxu0 0.0
    %771 = vmatprep.subr.mxu0 0.0
    %772 = vmatpush1.msra.mxu0 0.0
    %773 = vmatprep.subr.mxu0 0.0
    %774 = vmatpush1.msra.mxu0 0.0
    %775 = vmatprep.subr.mxu0 0.0
    %776 = vmatpush1.msra.mxu0 0.0
    %777 = vmatprep.subr.mxu0 0.0
    %778 = vmatpush1.msra.mxu0 0.0
    %779 = vmatprep.subr.mxu0 0.0
    %780 = vmatpush1.msra.mxu0 0.0
    %781 = vmatprep.subr.mxu0 0.0
    %782 = vmatpush1.msra.mxu0 0.0
    %783 = vmatprep.subr.mxu0 0.0
    %784 = vmatpush1.msra.mxu0 0.0
    %785 = vmatprep.subr.mxu0 0.0
    %786 = vmatpush1.msra.mxu0 0.0
    %787 = vmatprep.subr.mxu0 0.0
    %788 = vmatpush1.msra.mxu0 0.0
    %789 = vmatprep.subr.mxu0 0.0
    %790 = vmatpush1.msra.mxu0 0.0
    %791 = vmatprep.subr.mxu0 0.0
    %792 = vmatpush1.msra.mxu0 0.0
    %793 = vmatprep.subr.mxu0 0.0
    %794 = vmatpush1.msra.mxu0 0.0
    %v795 = vand.u32 %v522, 4294901760
    %796 = vmatprep.subr.mxu0 %v795
    %v797 = vand.u32 %v521, 4294901760
    %798 = vmatpush1.msra.mxu0 %v797
    %799 = vmatprep.subr.mxu0 0.0
    %800 = vmatpush2.msra.mxu0 0.0
    %801 = vmatprep.subr.mxu0 0.0
    %802 = vmatpush2.msra.mxu0 0.0
    %803 = vmatprep.subr.mxu0 0.0
    %804 = vmatpush2.msra.mxu0 0.0
    %805 = vmatprep.subr.mxu0 0.0
    %806 = vmatpush2.msra.mxu0 0.0
    %807 = vmatprep.subr.mxu0 0.0
    %808 = vmatpush2.msra.mxu0 0.0
    %809 = vmatprep.subr.mxu0 0.0
    %810 = vmatpush2.msra.mxu0 0.0
    %811 = vmatprep.subr.mxu0 0.0
    %812 = vmatpush2.msra.mxu0 0.0
    %813 = vmatprep.subr.mxu0 0.0
    %814 = vmatpush2.msra.mxu0 0.0
    %815 = vmatprep.subr.mxu0 0.0
    %816 = vmatpush2.msra.mxu0 0.0
    %817 = vmatprep.subr.mxu0 0.0
    %818 = vmatpush2.msra.mxu0 0.0
    %819 = vmatprep.subr.mxu0 0.0
    %820 = vmatpush2.msra.mxu0 0.0
    %821 = vmatprep.subr.mxu0 0.0
    %822 = vmatpush2.msra.mxu0 0.0
    %823 = vmatprep.subr.mxu0 0.0
    %824 = vmatpush2.msra.mxu0 0.0
    %825 = vmatprep.subr.mxu0 0.0
    %826 = vmatpush2.msra.mxu0 0.0
    %827 = vmatprep.subr.mxu0 0.0
    %828 = vmatpush2.msra.mxu0 0.0
    %829 = vmatprep.subr.mxu0 0.0
    %830 = vmatpush2.msra.mxu0 0.0
    %831 = vmatprep.mubr.f32.mxu0 0.0
    %v832 = vand.u32 %v526, 4294901760
    %v833 = vsub.f32 %v526, %v832
    %v834 = vand.u32 %v833, 4294901760
    %835 = vmatmul.mubr.f32.gmra.mxu0 %v834
    %v836 = vpop.f32.mrf.mxu0
    %v837 = vadd.f32 %v761, %v836
    %v838 = vpop.f32.mrf.mxu0
    %v839 = vadd.f32 %v763, %v838
    %840 = vdwg.mxu0
    %841 = vmatprep.subr.mxu0 0.0
    %842 = vmatpush1.msra.mxu0 0.0
    %843 = vmatprep.subr.mxu0 0.0
    %844 = vmatpush1.msra.mxu0 0.0
    %845 = vmatprep.subr.mxu0 0.0
    %846 = vmatpush1.msra.mxu0 0.0
    %847 = vmatprep.subr.mxu0 0.0
    %848 = vmatpush1.msra.mxu0 0.0
    %849 = vmatprep.subr.mxu0 0.0
    %850 = vmatpush1.msra.mxu0 0.0
    %851 = vmatprep.subr.mxu0 0.0
    %852 = vmatpush1.msra.mxu0 0.0
    %853 = vmatprep.subr.mxu0 0.0
    %854 = vmatpush1.msra.mxu0 0.0
    %855 = vmatprep.subr.mxu0 0.0
    %856 = vmatpush1.msra.mxu0 0.0
    %857 = vmatprep.subr.mxu0 0.0
    %858 = vmatpush1.msra.mxu0 0.0
    %859 = vmatprep.subr.mxu0 0.0
    %860 = vmatpush1.msra.mxu0 0.0
    %861 = vmatprep.subr.mxu0 0.0
    %862 = vmatpush1.msra.mxu0 0.0
    %863 = vmatprep.subr.mxu0 0.0
    %864 = vmatpush1.msra.mxu0 0.0
    %865 = vmatprep.subr.mxu0 0.0
    %866 = vmatpush1.msra.mxu0 0.0
    %867 = vmatprep.subr.mxu0 0.0
    %868 = vmatpush1.msra.mxu0 0.0
    %869 = vmatprep.subr.mxu0 0.0
    %870 = vmatpush1.msra.mxu0 0.0
    %v871 = vand.u32 %v522, 4294901760
    %v872 = vsub.f32 %v522, %v871
    %v873 = vand.u32 %v872, 4294901760
    %874 = vmatprep.subr.mxu0 %v873
    %v875 = vand.u32 %v521, 4294901760
    %v876 = vsub.f32 %v521, %v875
    %v877 = vand.u32 %v876, 4294901760
    %878 = vmatpush1.msra.mxu0 %v877
    %879 = vmatprep.subr.mxu0 0.0
    %880 = vmatpush2.msra.mxu0 0.0
    %881 = vmatprep.subr.mxu0 0.0
    %882 = vmatpush2.msra.mxu0 0.0
    %883 = vmatprep.subr.mxu0 0.0
    %884 = vmatpush2.msra.mxu0 0.0
    %885 = vmatprep.subr.mxu0 0.0
    %886 = vmatpush2.msra.mxu0 0.0
    %887 = vmatprep.subr.mxu0 0.0
    %888 = vmatpush2.msra.mxu0 0.0
    %889 = vmatprep.subr.mxu0 0.0
    %890 = vmatpush2.msra.mxu0 0.0
    %891 = vmatprep.subr.mxu0 0.0
    %892 = vmatpush2.msra.mxu0 0.0
    %893 = vmatprep.subr.mxu0 0.0
    %894 = vmatpush2.msra.mxu0 0.0
    %895 = vmatprep.subr.mxu0 0.0
    %896 = vmatpush2.msra.mxu0 0.0
    %897 = vmatprep.subr.mxu0 0.0
    %898 = vmatpush2.msra.mxu0 0.0
    %899 = vmatprep.subr.mxu0 0.0
    %900 = vmatpush2.msra.mxu0 0.0
    %901 = vmatprep.subr.mxu0 0.0
    %902 = vmatpush2.msra.mxu0 0.0
    %903 = vmatprep.subr.mxu0 0.0
    %904 = vmatpush2.msra.mxu0 0.0
    %905 = vmatprep.subr.mxu0 0.0
    %906 = vmatpush2.msra.mxu0 0.0
    %907 = vmatprep.subr.mxu0 0.0
    %908 = vmatpush2.msra.mxu0 0.0
    %909 = vmatprep.subr.mxu0 0.0
    %910 = vmatpush2.msra.mxu0 0.0
    %911 = vmatprep.mubr.f32.mxu0 0.0
    %v912 = vand.u32 %v526, 4294901760
    %913 = vmatmul.mubr.f32.gmra.mxu0 %v912
    %v914 = vpop.f32.mrf.mxu0
    %v915 = vadd.f32 %v837, %v914
    %v916 = vpop.f32.mrf.mxu0
    %v917 = vadd.f32 %v839, %v916
    %918 = vdwg.mxu0
    %919 = vmatprep.subr.mxu0 0.0
    %920 = vmatpush1.msra.mxu0 0.0
    %921 = vmatprep.subr.mxu0 0.0
    %922 = vmatpush1.msra.mxu0 0.0
    %923 = vmatprep.subr.mxu0 0.0
    %924 = vmatpush1.msra.mxu0 0.0
    %925 = vmatprep.subr.mxu0 0.0
    %926 = vmatpush1.msra.mxu0 0.0
    %927 = vmatprep.subr.mxu0 0.0
    %928 = vmatpush1.msra.mxu0 0.0
    %929 = vmatprep.subr.mxu0 0.0
    %930 = vmatpush1.msra.mxu0 0.0
    %931 = vmatprep.subr.mxu0 0.0
    %932 = vmatpush1.msra.mxu0 0.0
    %933 = vmatprep.subr.mxu0 0.0
    %934 = vmatpush1.msra.mxu0 0.0
    %935 = vmatprep.subr.mxu0 0.0
    %936 = vmatpush1.msra.mxu0 0.0
    %937 = vmatprep.subr.mxu0 0.0
    %938 = vmatpush1.msra.mxu0 0.0
    %939 = vmatprep.subr.mxu0 0.0
    %940 = vmatpush1.msra.mxu0 0.0
    %941 = vmatprep.subr.mxu0 0.0
    %942 = vmatpush1.msra.mxu0 0.0
    %943 = vmatprep.subr.mxu0 0.0
    %944 = vmatpush1.msra.mxu0 0.0
    %945 = vmatprep.subr.mxu0 0.0
    %946 = vmatpush1.msra.mxu0 0.0
    %947 = vmatprep.subr.mxu0 0.0
    %948 = vmatpush1.msra.mxu0 0.0
    %v949 = vand.u32 %v522, 4294901760
    %950 = vmatprep.subr.mxu0 %v949
    %v951 = vand.u32 %v521, 4294901760
    %952 = vmatpush1.msra.mxu0 %v951
    %953 = vmatprep.subr.mxu0 0.0
    %954 = vmatpush2.msra.mxu0 0.0
    %955 = vmatprep.subr.mxu0 0.0
    %956 = vmatpush2.msra.mxu0 0.0
    %957 = vmatprep.subr.mxu0 0.0
    %958 = vmatpush2.msra.mxu0 0.0
    %959 = vmatprep.subr.mxu0 0.0
    %960 = vmatpush2.msra.mxu0 0.0
    %961 = vmatprep.subr.mxu0 0.0
    %962 = vmatpush2.msra.mxu0 0.0
    %963 = vmatprep.subr.mxu0 0.0
    %964 = vmatpush2.msra.mxu0 0.0
    %965 = vmatprep.subr.mxu0 0.0
    %966 = vmatpush2.msra.mxu0 0.0
    %967 = vmatprep.subr.mxu0 0.0
    %968 = vmatpush2.msra.mxu0 0.0
    %969 = vmatprep.subr.mxu0 0.0
    %970 = vmatpush2.msra.mxu0 0.0
    %971 = vmatprep.subr.mxu0 0.0
    %972 = vmatpush2.msra.mxu0 0.0
    %973 = vmatprep.subr.mxu0 0.0
    %974 = vmatpush2.msra.mxu0 0.0
    %975 = vmatprep.subr.mxu0 0.0
    %976 = vmatpush2.msra.mxu0 0.0
    %977 = vmatprep.subr.mxu0 0.0
    %978 = vmatpush2.msra.mxu0 0.0
    %979 = vmatprep.subr.mxu0 0.0
    %980 = vmatpush2.msra.mxu0 0.0
    %981 = vmatprep.subr.mxu0 0.0
    %982 = vmatpush2.msra.mxu0 0.0
    %983 = vmatprep.subr.mxu0 0.0
    %984 = vmatpush2.msra.mxu0 0.0
    %985 = vmatprep.mubr.f32.mxu0 0.0
    %v986 = vand.u32 %v526, 4294901760
    %987 = vmatmul.mubr.f32.gmra.mxu0 %v986
    %v988 = vpop.f32.mrf.mxu0
    %v989 = vadd.f32 %v915, %v988
    %v990 = vpop.f32.mrf.mxu0
    %v991 = vadd.f32 %v917, %v990
    %992 = vdwg.mxu0
    %993 = vmatprep.subr.mxu0 0.0
    %994 = vmatpush1.msra.mxu0 0.0
    %995 = vmatprep.subr.mxu0 0.0
    %996 = vmatpush1.msra.mxu0 0.0
    %997 = vmatprep.subr.mxu0 0.0
    %998 = vmatpush1.msra.mxu0 0.0
    %999 = vmatprep.subr.mxu0 0.0
    %1000 = vmatpush1.msra.mxu0 0.0
    %1001 = vmatprep.subr.mxu0 0.0
    %1002 = vmatpush1.msra.mxu0 0.0
    %1003 = vmatprep.subr.mxu0 0.0
    %1004 = vmatpush1.msra.mxu0 0.0
    %1005 = vmatprep.subr.mxu0 0.0
    %1006 = vmatpush1.msra.mxu0 0.0
    %1007 = vmatprep.subr.mxu0 0.0
    %1008 = vmatpush1.msra.mxu0 0.0
    %1009 = vmatprep.subr.mxu0 0.0
    %1010 = vmatpush1.msra.mxu0 0.0
    %1011 = vmatprep.subr.mxu0 0.0
    %1012 = vmatpush1.msra.mxu0 0.0
    %1013 = vmatprep.subr.mxu0 0.0
    %1014 = vmatpush1.msra.mxu0 0.0
    %1015 = vmatprep.subr.mxu0 0.0
    %1016 = vmatpush1.msra.mxu0 0.0
    %1017 = vmatprep.subr.mxu0 0.0
    %1018 = vmatpush1.msra.mxu0 0.0
    %1019 = vmatprep.subr.mxu0 0.0
    %1020 = vmatpush1.msra.mxu0 0.0
    %1021 = vmatprep.subr.mxu0 0.0
    %1022 = vmatpush1.msra.mxu0 0.0
    %v1023 = vand.u32 %v524, 4294901760
    %1024 = vmatprep.subr.mxu0 %v1023
    %v1025 = vand.u32 %v523, 4294901760
    %1026 = vmatpush1.msra.mxu0 %v1025
    %1027 = vmatprep.subr.mxu0 0.0
    %1028 = vmatpush2.msra.mxu0 0.0
    %1029 = vmatprep.subr.mxu0 0.0
    %1030 = vmatpush2.msra.mxu0 0.0
    %1031 = vmatprep.subr.mxu0 0.0
    %1032 = vmatpush2.msra.mxu0 0.0
    %1033 = vmatprep.subr.mxu0 0.0
    %1034 = vmatpush2.msra.mxu0 0.0
    %1035 = vmatprep.subr.mxu0 0.0
    %1036 = vmatpush2.msra.mxu0 0.0
    %1037 = vmatprep.subr.mxu0 0.0
    %1038 = vmatpush2.msra.mxu0 0.0
    %1039 = vmatprep.subr.mxu0 0.0
    %1040 = vmatpush2.msra.mxu0 0.0
    %1041 = vmatprep.subr.mxu0 0.0
    %1042 = vmatpush2.msra.mxu0 0.0
    %1043 = vmatprep.subr.mxu0 0.0
    %1044 = vmatpush2.msra.mxu0 0.0
    %1045 = vmatprep.subr.mxu0 0.0
    %1046 = vmatpush2.msra.mxu0 0.0
    %1047 = vmatprep.subr.mxu0 0.0
    %1048 = vmatpush2.msra.mxu0 0.0
    %1049 = vmatprep.subr.mxu0 0.0
    %1050 = vmatpush2.msra.mxu0 0.0
    %1051 = vmatprep.subr.mxu0 0.0
    %1052 = vmatpush2.msra.mxu0 0.0
    %1053 = vmatprep.subr.mxu0 0.0
    %1054 = vmatpush2.msra.mxu0 0.0
    %1055 = vmatprep.subr.mxu0 0.0
    %1056 = vmatpush2.msra.mxu0 0.0
    %1057 = vmatprep.subr.mxu0 0.0
    %1058 = vmatpush2.msra.mxu0 0.0
    %1059 = vmatprep.mubr.f32.mxu0 0.0
    %v1060 = vand.u32 %v526, 4294901760
    %v1061 = vsub.f32 %v526, %v1060
    %v1062 = vand.u32 %v1061, 4294901760
    %v1063 = vsub.f32 %v1061, %v1062
    %v1064 = vand.u32 %v1063, 4294901760
    %1065 = vmatmul.mubr.f32.gmra.mxu0 %v1064
    %v1066 = vpop.f32.mrf.mxu0
    %v1067 = vadd.f32 0.0, %v1066
    %v1068 = vpop.f32.mrf.mxu0
    %v1069 = vadd.f32 0.0, %v1068
    %1070 = vdwg.mxu0
    %1071 = vmatprep.subr.mxu0 0.0
    %1072 = vmatpush1.msra.mxu0 0.0
    %1073 = vmatprep.subr.mxu0 0.0
    %1074 = vmatpush1.msra.mxu0 0.0
    %1075 = vmatprep.subr.mxu0 0.0
    %1076 = vmatpush1.msra.mxu0 0.0
    %1077 = vmatprep.subr.mxu0 0.0
    %1078 = vmatpush1.msra.mxu0 0.0
    %1079 = vmatprep.subr.mxu0 0.0
    %1080 = vmatpush1.msra.mxu0 0.0
    %1081 = vmatprep.subr.mxu0 0.0
    %1082 = vmatpush1.msra.mxu0 0.0
    %1083 = vmatprep.subr.mxu0 0.0
    %1084 = vmatpush1.msra.mxu0 0.0
    %1085 = vmatprep.subr.mxu0 0.0
    %1086 = vmatpush1.msra.mxu0 0.0
    %1087 = vmatprep.subr.mxu0 0.0
    %1088 = vmatpush1.msra.mxu0 0.0
    %1089 = vmatprep.subr.mxu0 0.0
    %1090 = vmatpush1.msra.mxu0 0.0
    %1091 = vmatprep.subr.mxu0 0.0
    %1092 = vmatpush1.msra.mxu0 0.0
    %1093 = vmatprep.subr.mxu0 0.0
    %1094 = vmatpush1.msra.mxu0 0.0
    %1095 = vmatprep.subr.mxu0 0.0
    %1096 = vmatpush1.msra.mxu0 0.0
    %1097 = vmatprep.subr.mxu0 0.0
    %1098 = vmatpush1.msra.mxu0 0.0
    %1099 = vmatprep.subr.mxu0 0.0
    %1100 = vmatpush1.msra.mxu0 0.0
    %v1101 = vand.u32 %v524, 4294901760
    %v1102 = vsub.f32 %v524, %v1101
    %v1103 = vand.u32 %v1102, 4294901760
    %v1104 = vsub.f32 %v1102, %v1103
    %v1105 = vand.u32 %v1104, 4294901760
    %1106 = vmatprep.subr.mxu0 %v1105
    %v1107 = vand.u32 %v523, 4294901760
    %v1108 = vsub.f32 %v523, %v1107
    %v1109 = vand.u32 %v1108, 4294901760
    %v1110 = vsub.f32 %v1108, %v1109
    %v1111 = vand.u32 %v1110, 4294901760
    %1112 = vmatpush1.msra.mxu0 %v1111
    %1113 = vmatprep.subr.mxu0 0.0
    %1114 = vmatpush2.msra.mxu0 0.0
    %1115 = vmatprep.subr.mxu0 0.0
    %1116 = vmatpush2.msra.mxu0 0.0
    %1117 = vmatprep.subr.mxu0 0.0
    %1118 = vmatpush2.msra.mxu0 0.0
    %1119 = vmatprep.subr.mxu0 0.0
    %1120 = vmatpush2.msra.mxu0 0.0
    %1121 = vmatprep.subr.mxu0 0.0
    %1122 = vmatpush2.msra.mxu0 0.0
    %1123 = vmatprep.subr.mxu0 0.0
    %1124 = vmatpush2.msra.mxu0 0.0
    %1125 = vmatprep.subr.mxu0 0.0
    %1126 = vmatpush2.msra.mxu0 0.0
    %1127 = vmatprep.subr.mxu0 0.0
    %1128 = vmatpush2.msra.mxu0 0.0
    %1129 = vmatprep.subr.mxu0 0.0
    %1130 = vmatpush2.msra.mxu0 0.0
    %1131 = vmatprep.subr.mxu0 0.0
    %1132 = vmatpush2.msra.mxu0 0.0
    %1133 = vmatprep.subr.mxu0 0.0
    %1134 = vmatpush2.msra.mxu0 0.0
    %1135 = vmatprep.subr.mxu0 0.0
    %1136 = vmatpush2.msra.mxu0 0.0
    %1137 = vmatprep.subr.mxu0 0.0
    %1138 = vmatpush2.msra.mxu0 0.0
    %1139 = vmatprep.subr.mxu0 0.0
    %1140 = vmatpush2.msra.mxu0 0.0
    %1141 = vmatprep.subr.mxu0 0.0
    %1142 = vmatpush2.msra.mxu0 0.0
    %1143 = vmatprep.subr.mxu0 0.0
    %1144 = vmatpush2.msra.mxu0 0.0
    %1145 = vmatprep.mubr.f32.mxu0 0.0
    %v1146 = vand.u32 %v526, 4294901760
    %1147 = vmatmul.mubr.f32.gmra.mxu0 %v1146
    %v1148 = vpop.f32.mrf.mxu0
    %v1149 = vadd.f32 %v1067, %v1148
    %v1150 = vpop.f32.mrf.mxu0
    %v1151 = vadd.f32 %v1069, %v1150
    %1152 = vdwg.mxu0
    %1153 = vmatprep.subr.mxu0 0.0
    %1154 = vmatpush1.msra.mxu0 0.0
    %1155 = vmatprep.subr.mxu0 0.0
    %1156 = vmatpush1.msra.mxu0 0.0
    %1157 = vmatprep.subr.mxu0 0.0
    %1158 = vmatpush1.msra.mxu0 0.0
    %1159 = vmatprep.subr.mxu0 0.0
    %1160 = vmatpush1.msra.mxu0 0.0
    %1161 = vmatprep.subr.mxu0 0.0
    %1162 = vmatpush1.msra.mxu0 0.0
    %1163 = vmatprep.subr.mxu0 0.0
    %1164 = vmatpush1.msra.mxu0 0.0
    %1165 = vmatprep.subr.mxu0 0.0
    %1166 = vmatpush1.msra.mxu0 0.0
    %1167 = vmatprep.subr.mxu0 0.0
    %1168 = vmatpush1.msra.mxu0 0.0
    %1169 = vmatprep.subr.mxu0 0.0
    %1170 = vmatpush1.msra.mxu0 0.0
    %1171 = vmatprep.subr.mxu0 0.0
    %1172 = vmatpush1.msra.mxu0 0.0
    %1173 = vmatprep.subr.mxu0 0.0
    %1174 = vmatpush1.msra.mxu0 0.0
    %1175 = vmatprep.subr.mxu0 0.0
    %1176 = vmatpush1.msra.mxu0 0.0
    %1177 = vmatprep.subr.mxu0 0.0
    %1178 = vmatpush1.msra.mxu0 0.0
    %1179 = vmatprep.subr.mxu0 0.0
    %1180 = vmatpush1.msra.mxu0 0.0
    %1181 = vmatprep.subr.mxu0 0.0
    %1182 = vmatpush1.msra.mxu0 0.0
    %v1183 = vand.u32 %v524, 4294901760
    %v1184 = vsub.f32 %v524, %v1183
    %1185 = vmatprep.subr.mxu0 %v1184
    %v1186 = vand.u32 %v523, 4294901760
    %v1187 = vsub.f32 %v523, %v1186
    %1188 = vmatpush1.msra.mxu0 %v1187
    %1189 = vmatprep.subr.mxu0 0.0
    %1190 = vmatpush2.msra.mxu0 0.0
    %1191 = vmatprep.subr.mxu0 0.0
    %1192 = vmatpush2.msra.mxu0 0.0
    %1193 = vmatprep.subr.mxu0 0.0
    %1194 = vmatpush2.msra.mxu0 0.0
    %1195 = vmatprep.subr.mxu0 0.0
    %1196 = vmatpush2.msra.mxu0 0.0
    %1197 = vmatprep.subr.mxu0 0.0
    %1198 = vmatpush2.msra.mxu0 0.0
    %1199 = vmatprep.subr.mxu0 0.0
    %1200 = vmatpush2.msra.mxu0 0.0
    %1201 = vmatprep.subr.mxu0 0.0
    %1202 = vmatpush2.msra.mxu0 0.0
    %1203 = vmatprep.subr.mxu0 0.0
    %1204 = vmatpush2.msra.mxu0 0.0
    %1205 = vmatprep.subr.mxu0 0.0
    %1206 = vmatpush2.msra.mxu0 0.0
    %1207 = vmatprep.subr.mxu0 0.0
    %1208 = vmatpush2.msra.mxu0 0.0
    %1209 = vmatprep.subr.mxu0 0.0
    %1210 = vmatpush2.msra.mxu0 0.0
    %1211 = vmatprep.subr.mxu0 0.0
    %1212 = vmatpush2.msra.mxu0 0.0
    %1213 = vmatprep.subr.mxu0 0.0
    %1214 = vmatpush2.msra.mxu0 0.0
    %1215 = vmatprep.subr.mxu0 0.0
    %1216 = vmatpush2.msra.mxu0 0.0
    %1217 = vmatprep.subr.mxu0 0.0
    %1218 = vmatpush2.msra.mxu0 0.0
    %1219 = vmatprep.subr.mxu0 0.0
    %1220 = vmatpush2.msra.mxu0 0.0
    %1221 = vmatprep.mubr.f32.mxu0 0.0
    %v1222 = vand.u32 %v526, 4294901760
    %v1223 = vsub.f32 %v526, %v1222
    %1224 = vmatmul.mubr.f32.gmra.mxu0 %v1223
    %v1225 = vpop.f32.mrf.mxu0
    %v1226 = vadd.f32 %v1149, %v1225
    %v1227 = vpop.f32.mrf.mxu0
    %v1228 = vadd.f32 %v1151, %v1227
    %1229 = vdwg.mxu0
    %1230 = vmatprep.subr.mxu0 0.0
    %1231 = vmatpush1.msra.mxu0 0.0
    %1232 = vmatprep.subr.mxu0 0.0
    %1233 = vmatpush1.msra.mxu0 0.0
    %1234 = vmatprep.subr.mxu0 0.0
    %1235 = vmatpush1.msra.mxu0 0.0
    %1236 = vmatprep.subr.mxu0 0.0
    %1237 = vmatpush1.msra.mxu0 0.0
    %1238 = vmatprep.subr.mxu0 0.0
    %1239 = vmatpush1.msra.mxu0 0.0
    %1240 = vmatprep.subr.mxu0 0.0
    %1241 = vmatpush1.msra.mxu0 0.0
    %1242 = vmatprep.subr.mxu0 0.0
    %1243 = vmatpush1.msra.mxu0 0.0
    %1244 = vmatprep.subr.mxu0 0.0
    %1245 = vmatpush1.msra.mxu0 0.0
    %1246 = vmatprep.subr.mxu0 0.0
    %1247 = vmatpush1.msra.mxu0 0.0
    %1248 = vmatprep.subr.mxu0 0.0
    %1249 = vmatpush1.msra.mxu0 0.0
    %1250 = vmatprep.subr.mxu0 0.0
    %1251 = vmatpush1.msra.mxu0 0.0
    %1252 = vmatprep.subr.mxu0 0.0
    %1253 = vmatpush1.msra.mxu0 0.0
    %1254 = vmatprep.subr.mxu0 0.0
    %1255 = vmatpush1.msra.mxu0 0.0
    %1256 = vmatprep.subr.mxu0 0.0
    %1257 = vmatpush1.msra.mxu0 0.0
    %1258 = vmatprep.subr.mxu0 0.0
    %1259 = vmatpush1.msra.mxu0 0.0
    %v1260 = vand.u32 %v524, 4294901760
    %1261 = vmatprep.subr.mxu0 %v1260
    %v1262 = vand.u32 %v523, 4294901760
    %1263 = vmatpush1.msra.mxu0 %v1262
    %1264 = vmatprep.subr.mxu0 0.0
    %1265 = vmatpush2.msra.mxu0 0.0
    %1266 = vmatprep.subr.mxu0 0.0
    %1267 = vmatpush2.msra.mxu0 0.0
    %1268 = vmatprep.subr.mxu0 0.0
    %1269 = vmatpush2.msra.mxu0 0.0
    %1270 = vmatprep.subr.mxu0 0.0
    %1271 = vmatpush2.msra.mxu0 0.0
    %1272 = vmatprep.subr.mxu0 0.0
    %1273 = vmatpush2.msra.mxu0 0.0
    %1274 = vmatprep.subr.mxu0 0.0
    %1275 = vmatpush2.msra.mxu0 0.0
    %1276 = vmatprep.subr.mxu0 0.0
    %1277 = vmatpush2.msra.mxu0 0.0
    %1278 = vmatprep.subr.mxu0 0.0
    %1279 = vmatpush2.msra.mxu0 0.0
    %1280 = vmatprep.subr.mxu0 0.0
    %1281 = vmatpush2.msra.mxu0 0.0
    %1282 = vmatprep.subr.mxu0 0.0
    %1283 = vmatpush2.msra.mxu0 0.0
    %1284 = vmatprep.subr.mxu0 0.0
    %1285 = vmatpush2.msra.mxu0 0.0
    %1286 = vmatprep.subr.mxu0 0.0
    %1287 = vmatpush2.msra.mxu0 0.0
    %1288 = vmatprep.subr.mxu0 0.0
    %1289 = vmatpush2.msra.mxu0 0.0
    %1290 = vmatprep.subr.mxu0 0.0
    %1291 = vmatpush2.msra.mxu0 0.0
    %1292 = vmatprep.subr.mxu0 0.0
    %1293 = vmatpush2.msra.mxu0 0.0
    %1294 = vmatprep.subr.mxu0 0.0
    %1295 = vmatpush2.msra.mxu0 0.0
    %1296 = vmatprep.mubr.f32.mxu0 0.0
    %v1297 = vand.u32 %v526, 4294901760
    %v1298 = vsub.f32 %v526, %v1297
    %v1299 = vand.u32 %v1298, 4294901760
    %1300 = vmatmul.mubr.f32.gmra.mxu0 %v1299
    %v1301 = vpop.f32.mrf.mxu0
    %v1302 = vadd.f32 %v1226, %v1301
    %v1303 = vpop.f32.mrf.mxu0
    %v1304 = vadd.f32 %v1228, %v1303
    %1305 = vdwg.mxu0
    %1306 = vmatprep.subr.mxu0 0.0
    %1307 = vmatpush1.msra.mxu0 0.0
    %1308 = vmatprep.subr.mxu0 0.0
    %1309 = vmatpush1.msra.mxu0 0.0
    %1310 = vmatprep.subr.mxu0 0.0
    %1311 = vmatpush1.msra.mxu0 0.0
    %1312 = vmatprep.subr.mxu0 0.0
    %1313 = vmatpush1.msra.mxu0 0.0
    %1314 = vmatprep.subr.mxu0 0.0
    %1315 = vmatpush1.msra.mxu0 0.0
    %1316 = vmatprep.subr.mxu0 0.0
    %1317 = vmatpush1.msra.mxu0 0.0
    %1318 = vmatprep.subr.mxu0 0.0
    %1319 = vmatpush1.msra.mxu0 0.0
    %1320 = vmatprep.subr.mxu0 0.0
    %1321 = vmatpush1.msra.mxu0 0.0
    %1322 = vmatprep.subr.mxu0 0.0
    %1323 = vmatpush1.msra.mxu0 0.0
    %1324 = vmatprep.subr.mxu0 0.0
    %1325 = vmatpush1.msra.mxu0 0.0
    %1326 = vmatprep.subr.mxu0 0.0
    %1327 = vmatpush1.msra.mxu0 0.0
    %1328 = vmatprep.subr.mxu0 0.0
    %1329 = vmatpush1.msra.mxu0 0.0
    %1330 = vmatprep.subr.mxu0 0.0
    %1331 = vmatpush1.msra.mxu0 0.0
    %1332 = vmatprep.subr.mxu0 0.0
    %1333 = vmatpush1.msra.mxu0 0.0
    %1334 = vmatprep.subr.mxu0 0.0
    %1335 = vmatpush1.msra.mxu0 0.0
    %v1336 = vand.u32 %v524, 4294901760
    %v1337 = vsub.f32 %v524, %v1336
    %v1338 = vand.u32 %v1337, 4294901760
    %1339 = vmatprep.subr.mxu0 %v1338
    %v1340 = vand.u32 %v523, 4294901760
    %v1341 = vsub.f32 %v523, %v1340
    %v1342 = vand.u32 %v1341, 4294901760
    %1343 = vmatpush1.msra.mxu0 %v1342
    %1344 = vmatprep.subr.mxu0 0.0
    %1345 = vmatpush2.msra.mxu0 0.0
    %1346 = vmatprep.subr.mxu0 0.0
    %1347 = vmatpush2.msra.mxu0 0.0
    %1348 = vmatprep.subr.mxu0 0.0
    %1349 = vmatpush2.msra.mxu0 0.0
    %1350 = vmatprep.subr.mxu0 0.0
    %1351 = vmatpush2.msra.mxu0 0.0
    %1352 = vmatprep.subr.mxu0 0.0
    %1353 = vmatpush2.msra.mxu0 0.0
    %1354 = vmatprep.subr.mxu0 0.0
    %1355 = vmatpush2.msra.mxu0 0.0
    %1356 = vmatprep.subr.mxu0 0.0
    %1357 = vmatpush2.msra.mxu0 0.0
    %1358 = vmatprep.subr.mxu0 0.0
    %1359 = vmatpush2.msra.mxu0 0.0
    %1360 = vmatprep.subr.mxu0 0.0
    %1361 = vmatpush2.msra.mxu0 0.0
    %1362 = vmatprep.subr.mxu0 0.0
    %1363 = vmatpush2.msra.mxu0 0.0
    %1364 = vmatprep.subr.mxu0 0.0
    %1365 = vmatpush2.msra.mxu0 0.0
    %1366 = vmatprep.subr.mxu0 0.0
    %1367 = vmatpush2.msra.mxu0 0.0
    %1368 = vmatprep.subr.mxu0 0.0
    %1369 = vmatpush2.msra.mxu0 0.0
    %1370 = vmatprep.subr.mxu0 0.0
    %1371 = vmatpush2.msra.mxu0 0.0
    %1372 = vmatprep.subr.mxu0 0.0
    %1373 = vmatpush2.msra.mxu0 0.0
    %1374 = vmatprep.subr.mxu0 0.0
    %1375 = vmatpush2.msra.mxu0 0.0
    %1376 = vmatprep.mubr.f32.mxu0 0.0
    %v1377 = vand.u32 %v526, 4294901760
    %1378 = vmatmul.mubr.f32.gmra.mxu0 %v1377
    %v1379 = vpop.f32.mrf.mxu0
    %v1380 = vadd.f32 %v1302, %v1379
    %v1381 = vpop.f32.mrf.mxu0
    %v1382 = vadd.f32 %v1304, %v1381
    %1383 = vdwg.mxu0
    %1384 = vmatprep.subr.mxu0 0.0
    %1385 = vmatpush1.msra.mxu0 0.0
    %1386 = vmatprep.subr.mxu0 0.0
    %1387 = vmatpush1.msra.mxu0 0.0
    %1388 = vmatprep.subr.mxu0 0.0
    %1389 = vmatpush1.msra.mxu0 0.0
    %1390 = vmatprep.subr.mxu0 0.0
    %1391 = vmatpush1.msra.mxu0 0.0
    %1392 = vmatprep.subr.mxu0 0.0
    %1393 = vmatpush1.msra.mxu0 0.0
    %1394 = vmatprep.subr.mxu0 0.0
    %1395 = vmatpush1.msra.mxu0 0.0
    %1396 = vmatprep.subr.mxu0 0.0
    %1397 = vmatpush1.msra.mxu0 0.0
    %1398 = vmatprep.subr.mxu0 0.0
    %1399 = vmatpush1.msra.mxu0 0.0
    %1400 = vmatprep.subr.mxu0 0.0
    %1401 = vmatpush1.msra.mxu0 0.0
    %1402 = vmatprep.subr.mxu0 0.0
    %1403 = vmatpush1.msra.mxu0 0.0
    %1404 = vmatprep.subr.mxu0 0.0
    %1405 = vmatpush1.msra.mxu0 0.0
    %1406 = vmatprep.subr.mxu0 0.0
    %1407 = vmatpush1.msra.mxu0 0.0
    %1408 = vmatprep.subr.mxu0 0.0
    %1409 = vmatpush1.msra.mxu0 0.0
    %1410 = vmatprep.subr.mxu0 0.0
    %1411 = vmatpush1.msra.mxu0 0.0
    %1412 = vmatprep.subr.mxu0 0.0
    %1413 = vmatpush1.msra.mxu0 0.0
    %v1414 = vand.u32 %v524, 4294901760
    %1415 = vmatprep.subr.mxu0 %v1414
    %v1416 = vand.u32 %v523, 4294901760
    %1417 = vmatpush1.msra.mxu0 %v1416
    %1418 = vmatprep.subr.mxu0 0.0
    %1419 = vmatpush2.msra.mxu0 0.0
    %1420 = vmatprep.subr.mxu0 0.0
    %1421 = vmatpush2.msra.mxu0 0.0
    %1422 = vmatprep.subr.mxu0 0.0
    %1423 = vmatpush2.msra.mxu0 0.0
    %1424 = vmatprep.subr.mxu0 0.0
    %1425 = vmatpush2.msra.mxu0 0.0
    %1426 = vmatprep.subr.mxu0 0.0
    %1427 = vmatpush2.msra.mxu0 0.0
    %1428 = vmatprep.subr.mxu0 0.0
    %1429 = vmatpush2.msra.mxu0 0.0
    %1430 = vmatprep.subr.mxu0 0.0
    %1431 = vmatpush2.msra.mxu0 0.0
    %1432 = vmatprep.subr.mxu0 0.0
    %1433 = vmatpush2.msra.mxu0 0.0
    %1434 = vmatprep.subr.mxu0 0.0
    %1435 = vmatpush2.msra.mxu0 0.0
    %1436 = vmatprep.subr.mxu0 0.0
    %1437 = vmatpush2.msra.mxu0 0.0
    %1438 = vmatprep.subr.mxu0 0.0
    %1439 = vmatpush2.msra.mxu0 0.0
    %1440 = vmatprep.subr.mxu0 0.0
    %1441 = vmatpush2.msra.mxu0 0.0
    %1442 = vmatprep.subr.mxu0 0.0
    %1443 = vmatpush2.msra.mxu0 0.0
    %1444 = vmatprep.subr.mxu0 0.0
    %1445 = vmatpush2.msra.mxu0 0.0
    %1446 = vmatprep.subr.mxu0 0.0
    %1447 = vmatpush2.msra.mxu0 0.0
    %1448 = vmatprep.subr.mxu0 0.0
    %1449 = vmatpush2.msra.mxu0 0.0
    %1450 = vmatprep.mubr.f32.mxu0 0.0
    %v1451 = vand.u32 %v526, 4294901760
    %1452 = vmatmul.mubr.f32.gmra.mxu0 %v1451
    %v1453 = vpop.f32.mrf.mxu0
    %v1454 = vadd.f32 %v1380, %v1453
    %v1455 = vpop.f32.mrf.mxu0
    %v1456 = vadd.f32 %v1382, %v1455
    %1457 = vdwg.mxu0
    %v1458 = vadd.f32 %v66, %v989
    %v1459 = vadd.f32 %v67, %v991
    %v1460 = vadd.f32 %v68, %v1454
    %v1461 = vadd.f32 %v69, %v1456
    %1462 = vmatprep.subr.mxu0 0.0
    %1463 = vmatpush1.msra.mxu0 0.0
    %1464 = vmatprep.subr.mxu0 0.0
    %1465 = vmatpush1.msra.mxu0 0.0
    %1466 = vmatprep.subr.mxu0 0.0
    %1467 = vmatpush1.msra.mxu0 0.0
    %1468 = vmatprep.subr.mxu0 0.0
    %1469 = vmatpush1.msra.mxu0 0.0
    %1470 = vmatprep.subr.mxu0 0.0
    %1471 = vmatpush1.msra.mxu0 0.0
    %1472 = vmatprep.subr.mxu0 0.0
    %1473 = vmatpush1.msra.mxu0 0.0
    %1474 = vmatprep.subr.mxu0 0.0
    %1475 = vmatpush1.msra.mxu0 0.0
    %1476 = vmatprep.subr.mxu0 0.0
    %1477 = vmatpush1.msra.mxu0 0.0
    %1478 = vmatprep.subr.mxu0 0.0
    %1479 = vmatpush1.msra.mxu0 0.0
    %1480 = vmatprep.subr.mxu0 0.0
    %1481 = vmatpush1.msra.mxu0 0.0
    %1482 = vmatprep.subr.mxu0 0.0
    %1483 = vmatpush1.msra.mxu0 0.0
    %1484 = vmatprep.subr.mxu0 0.0
    %1485 = vmatpush1.msra.mxu0 0.0
    %1486 = vmatprep.subr.mxu0 0.0
    %1487 = vmatpush1.msra.mxu0 0.0
    %1488 = vmatprep.subr.mxu0 0.0
    %1489 = vmatpush1.msra.mxu0 0.0
    %1490 = vmatprep.subr.mxu0 0.0
    %1491 = vmatpush1.msra.mxu0 0.0
    %v1492 = vand.u32 %v67, 4294901760
    %1493 = vmatprep.subr.mxu0 %v1492
    %v1494 = vand.u32 %v66, 4294901760
    %1495 = vmatpush1.msra.mxu0 %v1494
    %1496 = vmatprep.subr.mxu0 0.0
    %1497 = vmatpush2.msra.mxu0 0.0
    %1498 = vmatprep.subr.mxu0 0.0
    %1499 = vmatpush2.msra.mxu0 0.0
    %1500 = vmatprep.subr.mxu0 0.0
    %1501 = vmatpush2.msra.mxu0 0.0
    %1502 = vmatprep.subr.mxu0 0.0
    %1503 = vmatpush2.msra.mxu0 0.0
    %1504 = vmatprep.subr.mxu0 0.0
    %1505 = vmatpush2.msra.mxu0 0.0
    %1506 = vmatprep.subr.mxu0 0.0
    %1507 = vmatpush2.msra.mxu0 0.0
    %1508 = vmatprep.subr.mxu0 0.0
    %1509 = vmatpush2.msra.mxu0 0.0
    %1510 = vmatprep.subr.mxu0 0.0
    %1511 = vmatpush2.msra.mxu0 0.0
    %1512 = vmatprep.subr.mxu0 0.0
    %1513 = vmatpush2.msra.mxu0 0.0
    %1514 = vmatprep.subr.mxu0 0.0
    %1515 = vmatpush2.msra.mxu0 0.0
    %1516 = vmatprep.subr.mxu0 0.0
    %1517 = vmatpush2.msra.mxu0 0.0
    %1518 = vmatprep.subr.mxu0 0.0
    %1519 = vmatpush2.msra.mxu0 0.0
    %1520 = vmatprep.subr.mxu0 0.0
    %1521 = vmatpush2.msra.mxu0 0.0
    %1522 = vmatprep.subr.mxu0 0.0
    %1523 = vmatpush2.msra.mxu0 0.0
    %1524 = vmatprep.subr.mxu0 0.0
    %1525 = vmatpush2.msra.mxu0 0.0
    %1526 = vmatprep.subr.mxu0 0.0
    %1527 = vmatpush2.msra.mxu0 0.0
    %1528 = vmatprep.mubr.f32.mxu0 0.0
    %v1529 = vand.u32 %v73, 4294901760
    %v1530 = vsub.f32 %v73, %v1529
    %v1531 = vand.u32 %v1530, 4294901760
    %v1532 = vsub.f32 %v1530, %v1531
    %v1533 = vand.u32 %v1532, 4294901760
    %1534 = vmatmul.mubr.f32.gmra.mxu0 %v1533
    %v1535 = vpop.f32.mrf.mxu0
    %v1536 = vadd.f32 0.0, %v1535
    %v1537 = vpop.f32.mrf.mxu0
    %v1538 = vadd.f32 0.0, %v1537
    %1539 = vdwg.mxu0
    %1540 = vmatprep.subr.mxu0 0.0
    %1541 = vmatpush1.msra.mxu0 0.0
    %1542 = vmatprep.subr.mxu0 0.0
    %1543 = vmatpush1.msra.mxu0 0.0
    %1544 = vmatprep.subr.mxu0 0.0
    %1545 = vmatpush1.msra.mxu0 0.0
    %1546 = vmatprep.subr.mxu0 0.0
    %1547 = vmatpush1.msra.mxu0 0.0
    %1548 = vmatprep.subr.mxu0 0.0
    %1549 = vmatpush1.msra.mxu0 0.0
    %1550 = vmatprep.subr.mxu0 0.0
    %1551 = vmatpush1.msra.mxu0 0.0
    %1552 = vmatprep.subr.mxu0 0.0
    %1553 = vmatpush1.msra.mxu0 0.0
    %1554 = vmatprep.subr.mxu0 0.0
    %1555 = vmatpush1.msra.mxu0 0.0
    %1556 = vmatprep.subr.mxu0 0.0
    %1557 = vmatpush1.msra.mxu0 0.0
    %1558 = vmatprep.subr.mxu0 0.0
    %1559 = vmatpush1.msra.mxu0 0.0
    %1560 = vmatprep.subr.mxu0 0.0
    %1561 = vmatpush1.msra.mxu0 0.0
    %1562 = vmatprep.subr.mxu0 0.0
    %1563 = vmatpush1.msra.mxu0 0.0
    %1564 = vmatprep.subr.mxu0 0.0
    %1565 = vmatpush1.msra.mxu0 0.0
    %1566 = vmatprep.subr.mxu0 0.0
    %1567 = vmatpush1.msra.mxu0 0.0
    %1568 = vmatprep.subr.mxu0 0.0
    %1569 = vmatpush1.msra.mxu0 0.0
    %v1570 = vand.u32 %v67, 4294901760
    %v1571 = vsub.f32 %v67, %v1570
    %v1572 = vand.u32 %v1571, 4294901760
    %v1573 = vsub.f32 %v1571, %v1572
    %v1574 = vand.u32 %v1573, 4294901760
    %1575 = vmatprep.subr.mxu0 %v1574
    %v1576 = vand.u32 %v66, 4294901760
    %v1577 = vsub.f32 %v66, %v1576
    %v1578 = vand.u32 %v1577, 4294901760
    %v1579 = vsub.f32 %v1577, %v1578
    %v1580 = vand.u32 %v1579, 4294901760
    %1581 = vmatpush1.msra.mxu0 %v1580
    %1582 = vmatprep.subr.mxu0 0.0
    %1583 = vmatpush2.msra.mxu0 0.0
    %1584 = vmatprep.subr.mxu0 0.0
    %1585 = vmatpush2.msra.mxu0 0.0
    %1586 = vmatprep.subr.mxu0 0.0
    %1587 = vmatpush2.msra.mxu0 0.0
    %1588 = vmatprep.subr.mxu0 0.0
    %1589 = vmatpush2.msra.mxu0 0.0
    %1590 = vmatprep.subr.mxu0 0.0
    %1591 = vmatpush2.msra.mxu0 0.0
    %1592 = vmatprep.subr.mxu0 0.0
    %1593 = vmatpush2.msra.mxu0 0.0
    %1594 = vmatprep.subr.mxu0 0.0
    %1595 = vmatpush2.msra.mxu0 0.0
    %1596 = vmatprep.subr.mxu0 0.0
    %1597 = vmatpush2.msra.mxu0 0.0
    %1598 = vmatprep.subr.mxu0 0.0
    %1599 = vmatpush2.msra.mxu0 0.0
    %1600 = vmatprep.subr.mxu0 0.0
    %1601 = vmatpush2.msra.mxu0 0.0
    %1602 = vmatprep.subr.mxu0 0.0
    %1603 = vmatpush2.msra.mxu0 0.0
    %1604 = vmatprep.subr.mxu0 0.0
    %1605 = vmatpush2.msra.mxu0 0.0
    %1606 = vmatprep.subr.mxu0 0.0
    %1607 = vmatpush2.msra.mxu0 0.0
    %1608 = vmatprep.subr.mxu0 0.0
    %1609 = vmatpush2.msra.mxu0 0.0
    %1610 = vmatprep.subr.mxu0 0.0
    %1611 = vmatpush2.msra.mxu0 0.0
    %1612 = vmatprep.subr.mxu0 0.0
    %1613 = vmatpush2.msra.mxu0 0.0
    %1614 = vmatprep.mubr.f32.mxu0 0.0
    %v1615 = vand.u32 %v73, 4294901760
    %1616 = vmatmul.mubr.f32.gmra.mxu0 %v1615
    %v1617 = vpop.f32.mrf.mxu0
    %v1618 = vadd.f32 %v1536, %v1617
    %v1619 = vpop.f32.mrf.mxu0
    %v1620 = vadd.f32 %v1538, %v1619
    %1621 = vdwg.mxu0
    %1622 = vmatprep.subr.mxu0 0.0
    %1623 = vmatpush1.msra.mxu0 0.0
    %1624 = vmatprep.subr.mxu0 0.0
    %1625 = vmatpush1.msra.mxu0 0.0
    %1626 = vmatprep.subr.mxu0 0.0
    %1627 = vmatpush1.msra.mxu0 0.0
    %1628 = vmatprep.subr.mxu0 0.0
    %1629 = vmatpush1.msra.mxu0 0.0
    %1630 = vmatprep.subr.mxu0 0.0
    %1631 = vmatpush1.msra.mxu0 0.0
    %1632 = vmatprep.subr.mxu0 0.0
    %1633 = vmatpush1.msra.mxu0 0.0
    %1634 = vmatprep.subr.mxu0 0.0
    %1635 = vmatpush1.msra.mxu0 0.0
    %1636 = vmatprep.subr.mxu0 0.0
    %1637 = vmatpush1.msra.mxu0 0.0
    %1638 = vmatprep.subr.mxu0 0.0
    %1639 = vmatpush1.msra.mxu0 0.0
    %1640 = vmatprep.subr.mxu0 0.0
    %1641 = vmatpush1.msra.mxu0 0.0
    %1642 = vmatprep.subr.mxu0 0.0
    %1643 = vmatpush1.msra.mxu0 0.0
    %1644 = vmatprep.subr.mxu0 0.0
    %1645 = vmatpush1.msra.mxu0 0.0
    %1646 = vmatprep.subr.mxu0 0.0
    %1647 = vmatpush1.msra.mxu0 0.0
    %1648 = vmatprep.subr.mxu0 0.0
    %1649 = vmatpush1.msra.mxu0 0.0
    %1650 = vmatprep.subr.mxu0 0.0
    %1651 = vmatpush1.msra.mxu0 0.0
    %v1652 = vand.u32 %v67, 4294901760
    %v1653 = vsub.f32 %v67, %v1652
    %1654 = vmatprep.subr.mxu0 %v1653
    %v1655 = vand.u32 %v66, 4294901760
    %v1656 = vsub.f32 %v66, %v1655
    %1657 = vmatpush1.msra.mxu0 %v1656
    %1658 = vmatprep.subr.mxu0 0.0
    %1659 = vmatpush2.msra.mxu0 0.0
    %1660 = vmatprep.subr.mxu0 0.0
    %1661 = vmatpush2.msra.mxu0 0.0
    %1662 = vmatprep.subr.mxu0 0.0
    %1663 = vmatpush2.msra.mxu0 0.0
    %1664 = vmatprep.subr.mxu0 0.0
    %1665 = vmatpush2.msra.mxu0 0.0
    %1666 = vmatprep.subr.mxu0 0.0
    %1667 = vmatpush2.msra.mxu0 0.0
    %1668 = vmatprep.subr.mxu0 0.0
    %1669 = vmatpush2.msra.mxu0 0.0
    %1670 = vmatprep.subr.mxu0 0.0
    %1671 = vmatpush2.msra.mxu0 0.0
    %1672 = vmatprep.subr.mxu0 0.0
    %1673 = vmatpush2.msra.mxu0 0.0
    %1674 = vmatprep.subr.mxu0 0.0
    %1675 = vmatpush2.msra.mxu0 0.0
    %1676 = vmatprep.subr.mxu0 0.0
    %1677 = vmatpush2.msra.mxu0 0.0
    %1678 = vmatprep.subr.mxu0 0.0
    %1679 = vmatpush2.msra.mxu0 0.0
    %1680 = vmatprep.subr.mxu0 0.0
    %1681 = vmatpush2.msra.mxu0 0.0
    %1682 = vmatprep.subr.mxu0 0.0
    %1683 = vmatpush2.msra.mxu0 0.0
    %1684 = vmatprep.subr.mxu0 0.0
    %1685 = vmatpush2.msra.mxu0 0.0
    %1686 = vmatprep.subr.mxu0 0.0
    %1687 = vmatpush2.msra.mxu0 0.0
    %1688 = vmatprep.subr.mxu0 0.0
    %1689 = vmatpush2.msra.mxu0 0.0
    %1690 = vmatprep.mubr.f32.mxu0 0.0
    %v1691 = vand.u32 %v73, 4294901760
    %v1692 = vsub.f32 %v73, %v1691
    %1693 = vmatmul.mubr.f32.gmra.mxu0 %v1692
    %v1694 = vpop.f32.mrf.mxu0
    %v1695 = vadd.f32 %v1618, %v1694
    %v1696 = vpop.f32.mrf.mxu0
    %v1697 = vadd.f32 %v1620, %v1696
    %1698 = vdwg.mxu0
    %1699 = vmatprep.subr.mxu0 0.0
    %1700 = vmatpush1.msra.mxu0 0.0
    %1701 = vmatprep.subr.mxu0 0.0
    %1702 = vmatpush1.msra.mxu0 0.0
    %1703 = vmatprep.subr.mxu0 0.0
    %1704 = vmatpush1.msra.mxu0 0.0
    %1705 = vmatprep.subr.mxu0 0.0
    %1706 = vmatpush1.msra.mxu0 0.0
    %1707 = vmatprep.subr.mxu0 0.0
    %1708 = vmatpush1.msra.mxu0 0.0
    %1709 = vmatprep.subr.mxu0 0.0
    %1710 = vmatpush1.msra.mxu0 0.0
    %1711 = vmatprep.subr.mxu0 0.0
    %1712 = vmatpush1.msra.mxu0 0.0
    %1713 = vmatprep.subr.mxu0 0.0
    %1714 = vmatpush1.msra.mxu0 0.0
    %1715 = vmatprep.subr.mxu0 0.0
    %1716 = vmatpush1.msra.mxu0 0.0
    %1717 = vmatprep.subr.mxu0 0.0
    %1718 = vmatpush1.msra.mxu0 0.0
    %1719 = vmatprep.subr.mxu0 0.0
    %1720 = vmatpush1.msra.mxu0 0.0
    %1721 = vmatprep.subr.mxu0 0.0
    %1722 = vmatpush1.msra.mxu0 0.0
    %1723 = vmatprep.subr.mxu0 0.0
    %1724 = vmatpush1.msra.mxu0 0.0
    %1725 = vmatprep.subr.mxu0 0.0
    %1726 = vmatpush1.msra.mxu0 0.0
    %1727 = vmatprep.subr.mxu0 0.0
    %1728 = vmatpush1.msra.mxu0 0.0
    %v1729 = vand.u32 %v67, 4294901760
    %1730 = vmatprep.subr.mxu0 %v1729
    %v1731 = vand.u32 %v66, 4294901760
    %1732 = vmatpush1.msra.mxu0 %v1731
    %1733 = vmatprep.subr.mxu0 0.0
    %1734 = vmatpush2.msra.mxu0 0.0
    %1735 = vmatprep.subr.mxu0 0.0
    %1736 = vmatpush2.msra.mxu0 0.0
    %1737 = vmatprep.subr.mxu0 0.0
    %1738 = vmatpush2.msra.mxu0 0.0
    %1739 = vmatprep.subr.mxu0 0.0
    %1740 = vmatpush2.msra.mxu0 0.0
    %1741 = vmatprep.subr.mxu0 0.0
    %1742 = vmatpush2.msra.mxu0 0.0
    %1743 = vmatprep.subr.mxu0 0.0
    %1744 = vmatpush2.msra.mxu0 0.0
    %1745 = vmatprep.subr.mxu0 0.0
    %1746 = vmatpush2.msra.mxu0 0.0
    %1747 = vmatprep.subr.mxu0 0.0
    %1748 = vmatpush2.msra.mxu0 0.0
    %1749 = vmatprep.subr.mxu0 0.0
    %1750 = vmatpush2.msra.mxu0 0.0
    %1751 = vmatprep.subr.mxu0 0.0
    %1752 = vmatpush2.msra.mxu0 0.0
    %1753 = vmatprep.subr.mxu0 0.0
    %1754 = vmatpush2.msra.mxu0 0.0
    %1755 = vmatprep.subr.mxu0 0.0
    %1756 = vmatpush2.msra.mxu0 0.0
    %1757 = vmatprep.subr.mxu0 0.0
    %1758 = vmatpush2.msra.mxu0 0.0
    %1759 = vmatprep.subr.mxu0 0.0
    %1760 = vmatpush2.msra.mxu0 0.0
    %1761 = vmatprep.subr.mxu0 0.0
    %1762 = vmatpush2.msra.mxu0 0.0
    %1763 = vmatprep.subr.mxu0 0.0
    %1764 = vmatpush2.msra.mxu0 0.0
    %1765 = vmatprep.mubr.f32.mxu0 0.0
    %v1766 = vand.u32 %v73, 4294901760
    %v1767 = vsub.f32 %v73, %v1766
    %v1768 = vand.u32 %v1767, 4294901760
    %1769 = vmatmul.mubr.f32.gmra.mxu0 %v1768
    %v1770 = vpop.f32.mrf.mxu0
    %v1771 = vadd.f32 %v1695, %v1770
    %v1772 = vpop.f32.mrf.mxu0
    %v1773 = vadd.f32 %v1697, %v1772
    %1774 = vdwg.mxu0
    %1775 = vmatprep.subr.mxu0 0.0
    %1776 = vmatpush1.msra.mxu0 0.0
    %1777 = vmatprep.subr.mxu0 0.0
    %1778 = vmatpush1.msra.mxu0 0.0
    %1779 = vmatprep.subr.mxu0 0.0
    %1780 = vmatpush1.msra.mxu0 0.0
    %1781 = vmatprep.subr.mxu0 0.0
    %1782 = vmatpush1.msra.mxu0 0.0
    %1783 = vmatprep.subr.mxu0 0.0
    %1784 = vmatpush1.msra.mxu0 0.0
    %1785 = vmatprep.subr.mxu0 0.0
    %1786 = vmatpush1.msra.mxu0 0.0
    %1787 = vmatprep.subr.mxu0 0.0
    %1788 = vmatpush1.msra.mxu0 0.0
    %1789 = vmatprep.subr.mxu0 0.0
    %1790 = vmatpush1.msra.mxu0 0.0
    %1791 = vmatprep.subr.mxu0 0.0
    %1792 = vmatpush1.msra.mxu0 0.0
    %1793 = vmatprep.subr.mxu0 0.0
    %1794 = vmatpush1.msra.mxu0 0.0
    %1795 = vmatprep.subr.mxu0 0.0
    %1796 = vmatpush1.msra.mxu0 0.0
    %1797 = vmatprep.subr.mxu0 0.0
    %1798 = vmatpush1.msra.mxu0 0.0
    %1799 = vmatprep.subr.mxu0 0.0
    %1800 = vmatpush1.msra.mxu0 0.0
    %1801 = vmatprep.subr.mxu0 0.0
    %1802 = vmatpush1.msra.mxu0 0.0
    %1803 = vmatprep.subr.mxu0 0.0
    %1804 = vmatpush1.msra.mxu0 0.0
    %v1805 = vand.u32 %v67, 4294901760
    %v1806 = vsub.f32 %v67, %v1805
    %v1807 = vand.u32 %v1806, 4294901760
    %1808 = vmatprep.subr.mxu0 %v1807
    %v1809 = vand.u32 %v66, 4294901760
    %v1810 = vsub.f32 %v66, %v1809
    %v1811 = vand.u32 %v1810, 4294901760
    %1812 = vmatpush1.msra.mxu0 %v1811
    %1813 = vmatprep.subr.mxu0 0.0
    %1814 = vmatpush2.msra.mxu0 0.0
    %1815 = vmatprep.subr.mxu0 0.0
    %1816 = vmatpush2.msra.mxu0 0.0
    %1817 = vmatprep.subr.mxu0 0.0
    %1818 = vmatpush2.msra.mxu0 0.0
    %1819 = vmatprep.subr.mxu0 0.0
    %1820 = vmatpush2.msra.mxu0 0.0
    %1821 = vmatprep.subr.mxu0 0.0
    %1822 = vmatpush2.msra.mxu0 0.0
    %1823 = vmatprep.subr.mxu0 0.0
    %1824 = vmatpush2.msra.mxu0 0.0
    %1825 = vmatprep.subr.mxu0 0.0
    %1826 = vmatpush2.msra.mxu0 0.0
    %1827 = vmatprep.subr.mxu0 0.0
    %1828 = vmatpush2.msra.mxu0 0.0
    %1829 = vmatprep.subr.mxu0 0.0
    %1830 = vmatpush2.msra.mxu0 0.0
    %1831 = vmatprep.subr.mxu0 0.0
    %1832 = vmatpush2.msra.mxu0 0.0
    %1833 = vmatprep.subr.mxu0 0.0
    %1834 = vmatpush2.msra.mxu0 0.0
    %1835 = vmatprep.subr.mxu0 0.0
    %1836 = vmatpush2.msra.mxu0 0.0
    %1837 = vmatprep.subr.mxu0 0.0
    %1838 = vmatpush2.msra.mxu0 0.0
    %1839 = vmatprep.subr.mxu0 0.0
    %1840 = vmatpush2.msra.mxu0 0.0
    %1841 = vmatprep.subr.mxu0 0.0
    %1842 = vmatpush2.msra.mxu0 0.0
    %1843 = vmatprep.subr.mxu0 0.0
    %1844 = vmatpush2.msra.mxu0 0.0
    %1845 = vmatprep.mubr.f32.mxu0 0.0
    %v1846 = vand.u32 %v73, 4294901760
    %1847 = vmatmul.mubr.f32.gmra.mxu0 %v1846
    %v1848 = vpop.f32.mrf.mxu0
    %v1849 = vadd.f32 %v1771, %v1848
    %v1850 = vpop.f32.mrf.mxu0
    %v1851 = vadd.f32 %v1773, %v1850
    %1852 = vdwg.mxu0
    %1853 = vmatprep.subr.mxu0 0.0
    %1854 = vmatpush1.msra.mxu0 0.0
    %1855 = vmatprep.subr.mxu0 0.0
    %1856 = vmatpush1.msra.mxu0 0.0
    %1857 = vmatprep.subr.mxu0 0.0
    %1858 = vmatpush1.msra.mxu0 0.0
    %1859 = vmatprep.subr.mxu0 0.0
    %1860 = vmatpush1.msra.mxu0 0.0
    %1861 = vmatprep.subr.mxu0 0.0
    %1862 = vmatpush1.msra.mxu0 0.0
    %1863 = vmatprep.subr.mxu0 0.0
    %1864 = vmatpush1.msra.mxu0 0.0
    %1865 = vmatprep.subr.mxu0 0.0
    %1866 = vmatpush1.msra.mxu0 0.0
    %1867 = vmatprep.subr.mxu0 0.0
    %1868 = vmatpush1.msra.mxu0 0.0
    %1869 = vmatprep.subr.mxu0 0.0
    %1870 = vmatpush1.msra.mxu0 0.0
    %1871 = vmatprep.subr.mxu0 0.0
    %1872 = vmatpush1.msra.mxu0 0.0
    %1873 = vmatprep.subr.mxu0 0.0
    %1874 = vmatpush1.msra.mxu0 0.0
    %1875 = vmatprep.subr.mxu0 0.0
    %1876 = vmatpush1.msra.mxu0 0.0
    %1877 = vmatprep.subr.mxu0 0.0
    %1878 = vmatpush1.msra.mxu0 0.0
    %1879 = vmatprep.subr.mxu0 0.0
    %1880 = vmatpush1.msra.mxu0 0.0
    %1881 = vmatprep.subr.mxu0 0.0
    %1882 = vmatpush1.msra.mxu0 0.0
    %v1883 = vand.u32 %v67, 4294901760
    %1884 = vmatprep.subr.mxu0 %v1883
    %v1885 = vand.u32 %v66, 4294901760
    %1886 = vmatpush1.msra.mxu0 %v1885
    %1887 = vmatprep.subr.mxu0 0.0
    %1888 = vmatpush2.msra.mxu0 0.0
    %1889 = vmatprep.subr.mxu0 0.0
    %1890 = vmatpush2.msra.mxu0 0.0
    %1891 = vmatprep.subr.mxu0 0.0
    %1892 = vmatpush2.msra.mxu0 0.0
    %1893 = vmatprep.subr.mxu0 0.0
    %1894 = vmatpush2.msra.mxu0 0.0
    %1895 = vmatprep.subr.mxu0 0.0
    %1896 = vmatpush2.msra.mxu0 0.0
    %1897 = vmatprep.subr.mxu0 0.0
    %1898 = vmatpush2.msra.mxu0 0.0
    %1899 = vmatprep.subr.mxu0 0.0
    %1900 = vmatpush2.msra.mxu0 0.0
    %1901 = vmatprep.subr.mxu0 0.0
    %1902 = vmatpush2.msra.mxu0 0.0
    %1903 = vmatprep.subr.mxu0 0.0
    %1904 = vmatpush2.msra.mxu0 0.0
    %1905 = vmatprep.subr.mxu0 0.0
    %1906 = vmatpush2.msra.mxu0 0.0
    %1907 = vmatprep.subr.mxu0 0.0
    %1908 = vmatpush2.msra.mxu0 0.0
    %1909 = vmatprep.subr.mxu0 0.0
    %1910 = vmatpush2.msra.mxu0 0.0
    %1911 = vmatprep.subr.mxu0 0.0
    %1912 = vmatpush2.msra.mxu0 0.0
    %1913 = vmatprep.subr.mxu0 0.0
    %1914 = vmatpush2.msra.mxu0 0.0
    %1915 = vmatprep.subr.mxu0 0.0
    %1916 = vmatpush2.msra.mxu0 0.0
    %1917 = vmatprep.subr.mxu0 0.0
    %1918 = vmatpush2.msra.mxu0 0.0
    %1919 = vmatprep.mubr.f32.mxu0 0.0
    %v1920 = vand.u32 %v73, 4294901760
    %1921 = vmatmul.mubr.f32.gmra.mxu0 %v1920
    %v1922 = vpop.f32.mrf.mxu0
    %v1923 = vadd.f32 %v1849, %v1922
    %v1924 = vpop.f32.mrf.mxu0
    %v1925 = vadd.f32 %v1851, %v1924
    %1926 = vdwg.mxu0
    %1927 = vmatprep.subr.mxu0 0.0
    %1928 = vmatpush1.msra.mxu0 0.0
    %1929 = vmatprep.subr.mxu0 0.0
    %1930 = vmatpush1.msra.mxu0 0.0
    %1931 = vmatprep.subr.mxu0 0.0
    %1932 = vmatpush1.msra.mxu0 0.0
    %1933 = vmatprep.subr.mxu0 0.0
    %1934 = vmatpush1.msra.mxu0 0.0
    %1935 = vmatprep.subr.mxu0 0.0
    %1936 = vmatpush1.msra.mxu0 0.0
    %1937 = vmatprep.subr.mxu0 0.0
    %1938 = vmatpush1.msra.mxu0 0.0
    %1939 = vmatprep.subr.mxu0 0.0
    %1940 = vmatpush1.msra.mxu0 0.0
    %1941 = vmatprep.subr.mxu0 0.0
    %1942 = vmatpush1.msra.mxu0 0.0
    %1943 = vmatprep.subr.mxu0 0.0
    %1944 = vmatpush1.msra.mxu0 0.0
    %1945 = vmatprep.subr.mxu0 0.0
    %1946 = vmatpush1.msra.mxu0 0.0
    %1947 = vmatprep.subr.mxu0 0.0
    %1948 = vmatpush1.msra.mxu0 0.0
    %1949 = vmatprep.subr.mxu0 0.0
    %1950 = vmatpush1.msra.mxu0 0.0
    %1951 = vmatprep.subr.mxu0 0.0
    %1952 = vmatpush1.msra.mxu0 0.0
    %1953 = vmatprep.subr.mxu0 0.0
    %1954 = vmatpush1.msra.mxu0 0.0
    %1955 = vmatprep.subr.mxu0 0.0
    %1956 = vmatpush1.msra.mxu0 0.0
    %v1957 = vand.u32 %v69, 4294901760
    %1958 = vmatprep.subr.mxu0 %v1957
    %v1959 = vand.u32 %v68, 4294901760
    %1960 = vmatpush1.msra.mxu0 %v1959
    %1961 = vmatprep.subr.mxu0 0.0
    %1962 = vmatpush2.msra.mxu0 0.0
    %1963 = vmatprep.subr.mxu0 0.0
    %1964 = vmatpush2.msra.mxu0 0.0
    %1965 = vmatprep.subr.mxu0 0.0
    %1966 = vmatpush2.msra.mxu0 0.0
    %1967 = vmatprep.subr.mxu0 0.0
    %1968 = vmatpush2.msra.mxu0 0.0
    %1969 = vmatprep.subr.mxu0 0.0
    %1970 = vmatpush2.msra.mxu0 0.0
    %1971 = vmatprep.subr.mxu0 0.0
    %1972 = vmatpush2.msra.mxu0 0.0
    %1973 = vmatprep.subr.mxu0 0.0
    %1974 = vmatpush2.msra.mxu0 0.0
    %1975 = vmatprep.subr.mxu0 0.0
    %1976 = vmatpush2.msra.mxu0 0.0
    %1977 = vmatprep.subr.mxu0 0.0
    %1978 = vmatpush2.msra.mxu0 0.0
    %1979 = vmatprep.subr.mxu0 0.0
    %1980 = vmatpush2.msra.mxu0 0.0
    %1981 = vmatprep.subr.mxu0 0.0
    %1982 = vmatpush2.msra.mxu0 0.0
    %1983 = vmatprep.subr.mxu0 0.0
    %1984 = vmatpush2.msra.mxu0 0.0
    %1985 = vmatprep.subr.mxu0 0.0
    %1986 = vmatpush2.msra.mxu0 0.0
    %1987 = vmatprep.subr.mxu0 0.0
    %1988 = vmatpush2.msra.mxu0 0.0
    %1989 = vmatprep.subr.mxu0 0.0
    %1990 = vmatpush2.msra.mxu0 0.0
    %1991 = vmatprep.subr.mxu0 0.0
    %1992 = vmatpush2.msra.mxu0 0.0
    %1993 = vmatprep.mubr.f32.mxu0 0.0
    %v1994 = vand.u32 %v73, 4294901760
    %v1995 = vsub.f32 %v73, %v1994
    %v1996 = vand.u32 %v1995, 4294901760
    %v1997 = vsub.f32 %v1995, %v1996
    %v1998 = vand.u32 %v1997, 4294901760
    %1999 = vmatmul.mubr.f32.gmra.mxu0 %v1998
    %v2000 = vpop.f32.mrf.mxu0
    %v2001 = vadd.f32 0.0, %v2000
    %v2002 = vpop.f32.mrf.mxu0
    %v2003 = vadd.f32 0.0, %v2002
    %2004 = vdwg.mxu0
    %2005 = vmatprep.subr.mxu0 0.0
    %2006 = vmatpush1.msra.mxu0 0.0
    %2007 = vmatprep.subr.mxu0 0.0
    %2008 = vmatpush1.msra.mxu0 0.0
    %2009 = vmatprep.subr.mxu0 0.0
    %2010 = vmatpush1.msra.mxu0 0.0
    %2011 = vmatprep.subr.mxu0 0.0
    %2012 = vmatpush1.msra.mxu0 0.0
    %2013 = vmatprep.subr.mxu0 0.0
    %2014 = vmatpush1.msra.mxu0 0.0
    %2015 = vmatprep.subr.mxu0 0.0
    %2016 = vmatpush1.msra.mxu0 0.0
    %2017 = vmatprep.subr.mxu0 0.0
    %2018 = vmatpush1.msra.mxu0 0.0
    %2019 = vmatprep.subr.mxu0 0.0
    %2020 = vmatpush1.msra.mxu0 0.0
    %2021 = vmatprep.subr.mxu0 0.0
    %2022 = vmatpush1.msra.mxu0 0.0
    %2023 = vmatprep.subr.mxu0 0.0
    %2024 = vmatpush1.msra.mxu0 0.0
    %2025 = vmatprep.subr.mxu0 0.0
    %2026 = vmatpush1.msra.mxu0 0.0
    %2027 = vmatprep.subr.mxu0 0.0
    %2028 = vmatpush1.msra.mxu0 0.0
    %2029 = vmatprep.subr.mxu0 0.0
    %2030 = vmatpush1.msra.mxu0 0.0
    %2031 = vmatprep.subr.mxu0 0.0
    %2032 = vmatpush1.msra.mxu0 0.0
    %2033 = vmatprep.subr.mxu0 0.0
    %2034 = vmatpush1.msra.mxu0 0.0
    %v2035 = vand.u32 %v69, 4294901760
    %v2036 = vsub.f32 %v69, %v2035
    %v2037 = vand.u32 %v2036, 4294901760
    %v2038 = vsub.f32 %v2036, %v2037
    %v2039 = vand.u32 %v2038, 4294901760
    %2040 = vmatprep.subr.mxu0 %v2039
    %v2041 = vand.u32 %v68, 4294901760
    %v2042 = vsub.f32 %v68, %v2041
    %v2043 = vand.u32 %v2042, 4294901760
    %v2044 = vsub.f32 %v2042, %v2043
    %v2045 = vand.u32 %v2044, 4294901760
    %2046 = vmatpush1.msra.mxu0 %v2045
    %2047 = vmatprep.subr.mxu0 0.0
    %2048 = vmatpush2.msra.mxu0 0.0
    %2049 = vmatprep.subr.mxu0 0.0
    %2050 = vmatpush2.msra.mxu0 0.0
    %2051 = vmatprep.subr.mxu0 0.0
    %2052 = vmatpush2.msra.mxu0 0.0
    %2053 = vmatprep.subr.mxu0 0.0
    %2054 = vmatpush2.msra.mxu0 0.0
    %2055 = vmatprep.subr.mxu0 0.0
    %2056 = vmatpush2.msra.mxu0 0.0
    %2057 = vmatprep.subr.mxu0 0.0
    %2058 = vmatpush2.msra.mxu0 0.0
    %2059 = vmatprep.subr.mxu0 0.0
    %2060 = vmatpush2.msra.mxu0 0.0
    %2061 = vmatprep.subr.mxu0 0.0
    %2062 = vmatpush2.msra.mxu0 0.0
    %2063 = vmatprep.subr.mxu0 0.0
    %2064 = vmatpush2.msra.mxu0 0.0
    %2065 = vmatprep.subr.mxu0 0.0
    %2066 = vmatpush2.msra.mxu0 0.0
    %2067 = vmatprep.subr.mxu0 0.0
    %2068 = vmatpush2.msra.mxu0 0.0
    %2069 = vmatprep.subr.mxu0 0.0
    %2070 = vmatpush2.msra.mxu0 0.0
    %2071 = vmatprep.subr.mxu0 0.0
    %2072 = vmatpush2.msra.mxu0 0.0
    %2073 = vmatprep.subr.mxu0 0.0
    %2074 = vmatpush2.msra.mxu0 0.0
    %2075 = vmatprep.subr.mxu0 0.0
    %2076 = vmatpush2.msra.mxu0 0.0
    %2077 = vmatprep.subr.mxu0 0.0
    %2078 = vmatpush2.msra.mxu0 0.0
    %2079 = vmatprep.mubr.f32.mxu0 0.0
    %v2080 = vand.u32 %v73, 4294901760
    %2081 = vmatmul.mubr.f32.gmra.mxu0 %v2080
    %v2082 = vpop.f32.mrf.mxu0
    %v2083 = vadd.f32 %v2001, %v2082
    %v2084 = vpop.f32.mrf.mxu0
    %v2085 = vadd.f32 %v2003, %v2084
    %2086 = vdwg.mxu0
    %2087 = vmatprep.subr.mxu0 0.0
    %2088 = vmatpush1.msra.mxu0 0.0
    %2089 = vmatprep.subr.mxu0 0.0
    %2090 = vmatpush1.msra.mxu0 0.0
    %2091 = vmatprep.subr.mxu0 0.0
    %2092 = vmatpush1.msra.mxu0 0.0
    %2093 = vmatprep.subr.mxu0 0.0
    %2094 = vmatpush1.msra.mxu0 0.0
    %2095 = vmatprep.subr.mxu0 0.0
    %2096 = vmatpush1.msra.mxu0 0.0
    %2097 = vmatprep.subr.mxu0 0.0
    %2098 = vmatpush1.msra.mxu0 0.0
    %2099 = vmatprep.subr.mxu0 0.0
    %2100 = vmatpush1.msra.mxu0 0.0
    %2101 = vmatprep.subr.mxu0 0.0
    %2102 = vmatpush1.msra.mxu0 0.0
    %2103 = vmatprep.subr.mxu0 0.0
    %2104 = vmatpush1.msra.mxu0 0.0
    %2105 = vmatprep.subr.mxu0 0.0
    %2106 = vmatpush1.msra.mxu0 0.0
    %2107 = vmatprep.subr.mxu0 0.0
    %2108 = vmatpush1.msra.mxu0 0.0
    %2109 = vmatprep.subr.mxu0 0.0
    %2110 = vmatpush1.msra.mxu0 0.0
    %2111 = vmatprep.subr.mxu0 0.0
    %2112 = vmatpush1.msra.mxu0 0.0
    %2113 = vmatprep.subr.mxu0 0.0
    %2114 = vmatpush1.msra.mxu0 0.0
    %2115 = vmatprep.subr.mxu0 0.0
    %2116 = vmatpush1.msra.mxu0 0.0
    %v2117 = vand.u32 %v69, 4294901760
    %v2118 = vsub.f32 %v69, %v2117
    %2119 = vmatprep.subr.mxu0 %v2118
    %v2120 = vand.u32 %v68, 4294901760
    %v2121 = vsub.f32 %v68, %v2120
    %2122 = vmatpush1.msra.mxu0 %v2121
    %2123 = vmatprep.subr.mxu0 0.0
    %2124 = vmatpush2.msra.mxu0 0.0
    %2125 = vmatprep.subr.mxu0 0.0
    %2126 = vmatpush2.msra.mxu0 0.0
    %2127 = vmatprep.subr.mxu0 0.0
    %2128 = vmatpush2.msra.mxu0 0.0
    %2129 = vmatprep.subr.mxu0 0.0
    %2130 = vmatpush2.msra.mxu0 0.0
    %2131 = vmatprep.subr.mxu0 0.0
    %2132 = vmatpush2.msra.mxu0 0.0
    %2133 = vmatprep.subr.mxu0 0.0
    %2134 = vmatpush2.msra.mxu0 0.0
    %2135 = vmatprep.subr.mxu0 0.0
    %2136 = vmatpush2.msra.mxu0 0.0
    %2137 = vmatprep.subr.mxu0 0.0
    %2138 = vmatpush2.msra.mxu0 0.0
    %2139 = vmatprep.subr.mxu0 0.0
    %2140 = vmatpush2.msra.mxu0 0.0
    %2141 = vmatprep.subr.mxu0 0.0
    %2142 = vmatpush2.msra.mxu0 0.0
    %2143 = vmatprep.subr.mxu0 0.0
    %2144 = vmatpush2.msra.mxu0 0.0
    %2145 = vmatprep.subr.mxu0 0.0
    %2146 = vmatpush2.msra.mxu0 0.0
    %2147 = vmatprep.subr.mxu0 0.0
    %2148 = vmatpush2.msra.mxu0 0.0
    %2149 = vmatprep.subr.mxu0 0.0
    %2150 = vmatpush2.msra.mxu0 0.0
    %2151 = vmatprep.subr.mxu0 0.0
    %2152 = vmatpush2.msra.mxu0 0.0
    %2153 = vmatprep.subr.mxu0 0.0
    %2154 = vmatpush2.msra.mxu0 0.0
    %2155 = vmatprep.mubr.f32.mxu0 0.0
    %v2156 = vand.u32 %v73, 4294901760
    %v2157 = vsub.f32 %v73, %v2156
    %2158 = vmatmul.mubr.f32.gmra.mxu0 %v2157
    %v2159 = vpop.f32.mrf.mxu0
    %v2160 = vadd.f32 %v2083, %v2159
    %v2161 = vpop.f32.mrf.mxu0
    %v2162 = vadd.f32 %v2085, %v2161
    %2163 = vdwg.mxu0
    %2164 = vmatprep.subr.mxu0 0.0
    %2165 = vmatpush1.msra.mxu0 0.0
    %2166 = vmatprep.subr.mxu0 0.0
    %2167 = vmatpush1.msra.mxu0 0.0
    %2168 = vmatprep.subr.mxu0 0.0
    %2169 = vmatpush1.msra.mxu0 0.0
    %2170 = vmatprep.subr.mxu0 0.0
    %2171 = vmatpush1.msra.mxu0 0.0
    %2172 = vmatprep.subr.mxu0 0.0
    %2173 = vmatpush1.msra.mxu0 0.0
    %2174 = vmatprep.subr.mxu0 0.0
    %2175 = vmatpush1.msra.mxu0 0.0
    %2176 = vmatprep.subr.mxu0 0.0
    %2177 = vmatpush1.msra.mxu0 0.0
    %2178 = vmatprep.subr.mxu0 0.0
    %2179 = vmatpush1.msra.mxu0 0.0
    %2180 = vmatprep.subr.mxu0 0.0
    %2181 = vmatpush1.msra.mxu0 0.0
    %2182 = vmatprep.subr.mxu0 0.0
    %2183 = vmatpush1.msra.mxu0 0.0
    %2184 = vmatprep.subr.mxu0 0.0
    %2185 = vmatpush1.msra.mxu0 0.0
    %2186 = vmatprep.subr.mxu0 0.0
    %2187 = vmatpush1.msra.mxu0 0.0
    %2188 = vmatprep.subr.mxu0 0.0
    %2189 = vmatpush1.msra.mxu0 0.0
    %2190 = vmatprep.subr.mxu0 0.0
    %2191 = vmatpush1.msra.mxu0 0.0
    %2192 = vmatprep.subr.mxu0 0.0
    %2193 = vmatpush1.msra.mxu0 0.0
    %v2194 = vand.u32 %v69, 4294901760
    %2195 = vmatprep.subr.mxu0 %v2194
    %v2196 = vand.u32 %v68, 4294901760
    %2197 = vmatpush1.msra.mxu0 %v2196
    %2198 = vmatprep.subr.mxu0 0.0
    %2199 = vmatpush2.msra.mxu0 0.0
    %2200 = vmatprep.subr.mxu0 0.0
    %2201 = vmatpush2.msra.mxu0 0.0
    %2202 = vmatprep.subr.mxu0 0.0
    %2203 = vmatpush2.msra.mxu0 0.0
    %2204 = vmatprep.subr.mxu0 0.0
    %2205 = vmatpush2.msra.mxu0 0.0
    %2206 = vmatprep.subr.mxu0 0.0
    %2207 = vmatpush2.msra.mxu0 0.0
    %2208 = vmatprep.subr.mxu0 0.0
    %2209 = vmatpush2.msra.mxu0 0.0
    %2210 = vmatprep.subr.mxu0 0.0
    %2211 = vmatpush2.msra.mxu0 0.0
    %2212 = vmatprep.subr.mxu0 0.0
    %2213 = vmatpush2.msra.mxu0 0.0
    %2214 = vmatprep.subr.mxu0 0.0
    %2215 = vmatpush2.msra.mxu0 0.0
    %2216 = vmatprep.subr.mxu0 0.0
    %2217 = vmatpush2.msra.mxu0 0.0
    %2218 = vmatprep.subr.mxu0 0.0
    %2219 = vmatpush2.msra.mxu0 0.0
    %2220 = vmatprep.subr.mxu0 0.0
    %2221 = vmatpush2.msra.mxu0 0.0
    %2222 = vmatprep.subr.mxu0 0.0
    %2223 = vmatpush2.msra.mxu0 0.0
    %2224 = vmatprep.subr.mxu0 0.0
    %2225 = vmatpush2.msra.mxu0 0.0
    %2226 = vmatprep.subr.mxu0 0.0
    %2227 = vmatpush2.msra.mxu0 0.0
    %2228 = vmatprep.subr.mxu0 0.0
    %2229 = vmatpush2.msra.mxu0 0.0
    %2230 = vmatprep.mubr.f32.mxu0 0.0
    %v2231 = vand.u32 %v73, 4294901760
    %v2232 = vsub.f32 %v73, %v2231
    %v2233 = vand.u32 %v2232, 4294901760
    %2234 = vmatmul.mubr.f32.gmra.mxu0 %v2233
    %v2235 = vpop.f32.mrf.mxu0
    %v2236 = vadd.f32 %v2160, %v2235
    %v2237 = vpop.f32.mrf.mxu0
    %v2238 = vadd.f32 %v2162, %v2237
    %2239 = vdwg.mxu0
    %2240 = vmatprep.subr.mxu0 0.0
    %2241 = vmatpush1.msra.mxu0 0.0
    %2242 = vmatprep.subr.mxu0 0.0
    %2243 = vmatpush1.msra.mxu0 0.0
    %2244 = vmatprep.subr.mxu0 0.0
    %2245 = vmatpush1.msra.mxu0 0.0
    %2246 = vmatprep.subr.mxu0 0.0
    %2247 = vmatpush1.msra.mxu0 0.0
    %2248 = vmatprep.subr.mxu0 0.0
    %2249 = vmatpush1.msra.mxu0 0.0
    %2250 = vmatprep.subr.mxu0 0.0
    %2251 = vmatpush1.msra.mxu0 0.0
    %2252 = vmatprep.subr.mxu0 0.0
    %2253 = vmatpush1.msra.mxu0 0.0
    %2254 = vmatprep.subr.mxu0 0.0
    %2255 = vmatpush1.msra.mxu0 0.0
    %2256 = vmatprep.subr.mxu0 0.0
    %2257 = vmatpush1.msra.mxu0 0.0
    %2258 = vmatprep.subr.mxu0 0.0
    %2259 = vmatpush1.msra.mxu0 0.0
    %2260 = vmatprep.subr.mxu0 0.0
    %2261 = vmatpush1.msra.mxu0 0.0
    %2262 = vmatprep.subr.mxu0 0.0
    %2263 = vmatpush1.msra.mxu0 0.0
    %2264 = vmatprep.subr.mxu0 0.0
    %2265 = vmatpush1.msra.mxu0 0.0
    %2266 = vmatprep.subr.mxu0 0.0
    %2267 = vmatpush1.msra.mxu0 0.0
    %2268 = vmatprep.subr.mxu0 0.0
    %2269 = vmatpush1.msra.mxu0 0.0
    %v2270 = vand.u32 %v69, 4294901760
    %v2271 = vsub.f32 %v69, %v2270
    %v2272 = vand.u32 %v2271, 4294901760
    %2273 = vmatprep.subr.mxu0 %v2272
    %v2274 = vand.u32 %v68, 4294901760
    %v2275 = vsub.f32 %v68, %v2274
    %v2276 = vand.u32 %v2275, 4294901760
    %2277 = vmatpush1.msra.mxu0 %v2276
    %2278 = vmatprep.subr.mxu0 0.0
    %2279 = vmatpush2.msra.mxu0 0.0
    %2280 = vmatprep.subr.mxu0 0.0
    %2281 = vmatpush2.msra.mxu0 0.0
    %2282 = vmatprep.subr.mxu0 0.0
    %2283 = vmatpush2.msra.mxu0 0.0
    %2284 = vmatprep.subr.mxu0 0.0
    %2285 = vmatpush2.msra.mxu0 0.0
    %2286 = vmatprep.subr.mxu0 0.0
    %2287 = vmatpush2.msra.mxu0 0.0
    %2288 = vmatprep.subr.mxu0 0.0
    %2289 = vmatpush2.msra.mxu0 0.0
    %2290 = vmatprep.subr.mxu0 0.0
    %2291 = vmatpush2.msra.mxu0 0.0
    %2292 = vmatprep.subr.mxu0 0.0
    %2293 = vmatpush2.msra.mxu0 0.0
    %2294 = vmatprep.subr.mxu0 0.0
    %2295 = vmatpush2.msra.mxu0 0.0
    %2296 = vmatprep.subr.mxu0 0.0
    %2297 = vmatpush2.msra.mxu0 0.0
    %2298 = vmatprep.subr.mxu0 0.0
    %2299 = vmatpush2.msra.mxu0 0.0
    %2300 = vmatprep.subr.mxu0 0.0
    %2301 = vmatpush2.msra.mxu0 0.0
    %2302 = vmatprep.subr.mxu0 0.0
    %2303 = vmatpush2.msra.mxu0 0.0
    %2304 = vmatprep.subr.mxu0 0.0
    %2305 = vmatpush2.msra.mxu0 0.0
    %2306 = vmatprep.subr.mxu0 0.0
    %2307 = vmatpush2.msra.mxu0 0.0
    %2308 = vmatprep.subr.mxu0 0.0
    %2309 = vmatpush2.msra.mxu0 0.0
    %2310 = vmatprep.mubr.f32.mxu0 0.0
    %v2311 = vand.u32 %v73, 4294901760
    %2312 = vmatmul.mubr.f32.gmra.mxu0 %v2311
    %v2313 = vpop.f32.mrf.mxu0
    %v2314 = vadd.f32 %v2236, %v2313
    %v2315 = vpop.f32.mrf.mxu0
    %v2316 = vadd.f32 %v2238, %v2315
    %2317 = vdwg.mxu0
    %2318 = vmatprep.subr.mxu0 0.0
    %2319 = vmatpush1.msra.mxu0 0.0
    %2320 = vmatprep.subr.mxu0 0.0
    %2321 = vmatpush1.msra.mxu0 0.0
    %2322 = vmatprep.subr.mxu0 0.0
    %2323 = vmatpush1.msra.mxu0 0.0
    %2324 = vmatprep.subr.mxu0 0.0
    %2325 = vmatpush1.msra.mxu0 0.0
    %2326 = vmatprep.subr.mxu0 0.0
    %2327 = vmatpush1.msra.mxu0 0.0
    %2328 = vmatprep.subr.mxu0 0.0
    %2329 = vmatpush1.msra.mxu0 0.0
    %2330 = vmatprep.subr.mxu0 0.0
    %2331 = vmatpush1.msra.mxu0 0.0
    %2332 = vmatprep.subr.mxu0 0.0
    %2333 = vmatpush1.msra.mxu0 0.0
    %2334 = vmatprep.subr.mxu0 0.0
    %2335 = vmatpush1.msra.mxu0 0.0
    %2336 = vmatprep.subr.mxu0 0.0
    %2337 = vmatpush1.msra.mxu0 0.0
    %2338 = vmatprep.subr.mxu0 0.0
    %2339 = vmatpush1.msra.mxu0 0.0
    %2340 = vmatprep.subr.mxu0 0.0
    %2341 = vmatpush1.msra.mxu0 0.0
    %2342 = vmatprep.subr.mxu0 0.0
    %2343 = vmatpush1.msra.mxu0 0.0
    %2344 = vmatprep.subr.mxu0 0.0
    %2345 = vmatpush1.msra.mxu0 0.0
    %2346 = vmatprep.subr.mxu0 0.0
    %2347 = vmatpush1.msra.mxu0 0.0
    %v2348 = vand.u32 %v69, 4294901760
    %2349 = vmatprep.subr.mxu0 %v2348
    %v2350 = vand.u32 %v68, 4294901760
    %2351 = vmatpush1.msra.mxu0 %v2350
    %2352 = vmatprep.subr.mxu0 0.0
    %2353 = vmatpush2.msra.mxu0 0.0
    %2354 = vmatprep.subr.mxu0 0.0
    %2355 = vmatpush2.msra.mxu0 0.0
    %2356 = vmatprep.subr.mxu0 0.0
    %2357 = vmatpush2.msra.mxu0 0.0
    %2358 = vmatprep.subr.mxu0 0.0
    %2359 = vmatpush2.msra.mxu0 0.0
    %2360 = vmatprep.subr.mxu0 0.0
    %2361 = vmatpush2.msra.mxu0 0.0
    %2362 = vmatprep.subr.mxu0 0.0
    %2363 = vmatpush2.msra.mxu0 0.0
    %2364 = vmatprep.subr.mxu0 0.0
    %2365 = vmatpush2.msra.mxu0 0.0
    %2366 = vmatprep.subr.mxu0 0.0
    %2367 = vmatpush2.msra.mxu0 0.0
    %2368 = vmatprep.subr.mxu0 0.0
    %2369 = vmatpush2.msra.mxu0 0.0
    %2370 = vmatprep.subr.mxu0 0.0
    %2371 = vmatpush2.msra.mxu0 0.0
    %2372 = vmatprep.subr.mxu0 0.0
    %2373 = vmatpush2.msra.mxu0 0.0
    %2374 = vmatprep.subr.mxu0 0.0
    %2375 = vmatpush2.msra.mxu0 0.0
    %2376 = vmatprep.subr.mxu0 0.0
    %2377 = vmatpush2.msra.mxu0 0.0
    %2378 = vmatprep.subr.mxu0 0.0
    %2379 = vmatpush2.msra.mxu0 0.0
    %2380 = vmatprep.subr.mxu0 0.0
    %2381 = vmatpush2.msra.mxu0 0.0
    %2382 = vmatprep.subr.mxu0 0.0
    %2383 = vmatpush2.msra.mxu0 0.0
    %2384 = vmatprep.mubr.f32.mxu0 0.0
    %v2385 = vand.u32 %v73, 4294901760
    %2386 = vmatmul.mubr.f32.gmra.mxu0 %v2385
    %v2387 = vpop.f32.mrf.mxu0
    %v2388 = vadd.f32 %v2314, %v2387
    %v2389 = vpop.f32.mrf.mxu0
    %v2390 = vadd.f32 %v2316, %v2389
    %2391 = vdwg.mxu0
    %2392 = vmatprep.subr.mxu0 0.0
    %2393 = vmatpush1.msra.mxu0 0.0
    %2394 = vmatprep.subr.mxu0 0.0
    %2395 = vmatpush1.msra.mxu0 0.0
    %2396 = vmatprep.subr.mxu0 0.0
    %2397 = vmatpush1.msra.mxu0 0.0
    %2398 = vmatprep.subr.mxu0 0.0
    %2399 = vmatpush1.msra.mxu0 0.0
    %2400 = vmatprep.subr.mxu0 0.0
    %2401 = vmatpush1.msra.mxu0 0.0
    %2402 = vmatprep.subr.mxu0 0.0
    %2403 = vmatpush1.msra.mxu0 0.0
    %2404 = vmatprep.subr.mxu0 0.0
    %2405 = vmatpush1.msra.mxu0 0.0
    %2406 = vmatprep.subr.mxu0 0.0
    %2407 = vmatpush1.msra.mxu0 0.0
    %2408 = vmatprep.subr.mxu0 0.0
    %2409 = vmatpush1.msra.mxu0 0.0
    %2410 = vmatprep.subr.mxu0 0.0
    %2411 = vmatpush1.msra.mxu0 0.0
    %2412 = vmatprep.subr.mxu0 0.0
    %2413 = vmatpush1.msra.mxu0 0.0
    %2414 = vmatprep.subr.mxu0 0.0
    %2415 = vmatpush1.msra.mxu0 0.0
    %2416 = vmatprep.subr.mxu0 0.0
    %2417 = vmatpush1.msra.mxu0 0.0
    %2418 = vmatprep.subr.mxu0 0.0
    %2419 = vmatpush1.msra.mxu0 0.0
    %2420 = vmatprep.subr.mxu0 0.0
    %2421 = vmatpush1.msra.mxu0 0.0
    %v2422 = vand.u32 %v1459, 4294901760
    %2423 = vmatprep.subr.mxu0 %v2422
    %v2424 = vand.u32 %v1458, 4294901760
    %2425 = vmatpush1.msra.mxu0 %v2424
    %2426 = vmatprep.subr.mxu0 0.0
    %2427 = vmatpush2.msra.mxu0 0.0
    %2428 = vmatprep.subr.mxu0 0.0
    %2429 = vmatpush2.msra.mxu0 0.0
    %2430 = vmatprep.subr.mxu0 0.0
    %2431 = vmatpush2.msra.mxu0 0.0
    %2432 = vmatprep.subr.mxu0 0.0
    %2433 = vmatpush2.msra.mxu0 0.0
    %2434 = vmatprep.subr.mxu0 0.0
    %2435 = vmatpush2.msra.mxu0 0.0
    %2436 = vmatprep.subr.mxu0 0.0
    %2437 = vmatpush2.msra.mxu0 0.0
    %2438 = vmatprep.subr.mxu0 0.0
    %2439 = vmatpush2.msra.mxu0 0.0
    %2440 = vmatprep.subr.mxu0 0.0
    %2441 = vmatpush2.msra.mxu0 0.0
    %2442 = vmatprep.subr.mxu0 0.0
    %2443 = vmatpush2.msra.mxu0 0.0
    %2444 = vmatprep.subr.mxu0 0.0
    %2445 = vmatpush2.msra.mxu0 0.0
    %2446 = vmatprep.subr.mxu0 0.0
    %2447 = vmatpush2.msra.mxu0 0.0
    %2448 = vmatprep.subr.mxu0 0.0
    %2449 = vmatpush2.msra.mxu0 0.0
    %2450 = vmatprep.subr.mxu0 0.0
    %2451 = vmatpush2.msra.mxu0 0.0
    %2452 = vmatprep.subr.mxu0 0.0
    %2453 = vmatpush2.msra.mxu0 0.0
    %2454 = vmatprep.subr.mxu0 0.0
    %2455 = vmatpush2.msra.mxu0 0.0
    %2456 = vmatprep.subr.mxu0 0.0
    %2457 = vmatpush2.msra.mxu0 0.0
    %2458 = vmatprep.mubr.f32.mxu0 0.0
    %v2459 = vand.u32 %v526, 4294901760
    %v2460 = vsub.f32 %v526, %v2459
    %v2461 = vand.u32 %v2460, 4294901760
    %v2462 = vsub.f32 %v2460, %v2461
    %v2463 = vand.u32 %v2462, 4294901760
    %2464 = vmatmul.mubr.f32.gmra.mxu0 %v2463
    %v2465 = vpop.f32.mrf.mxu0
    %v2466 = vadd.f32 %v1923, %v2465
    %v2467 = vpop.f32.mrf.mxu0
    %v2468 = vadd.f32 %v1925, %v2467
    %2469 = vdwg.mxu0
    %2470 = vmatprep.subr.mxu0 0.0
    %2471 = vmatpush1.msra.mxu0 0.0
    %2472 = vmatprep.subr.mxu0 0.0
    %2473 = vmatpush1.msra.mxu0 0.0
    %2474 = vmatprep.subr.mxu0 0.0
    %2475 = vmatpush1.msra.mxu0 0.0
    %2476 = vmatprep.subr.mxu0 0.0
    %2477 = vmatpush1.msra.mxu0 0.0
    %2478 = vmatprep.subr.mxu0 0.0
    %2479 = vmatpush1.msra.mxu0 0.0
    %2480 = vmatprep.subr.mxu0 0.0
    %2481 = vmatpush1.msra.mxu0 0.0
    %2482 = vmatprep.subr.mxu0 0.0
    %2483 = vmatpush1.msra.mxu0 0.0
    %2484 = vmatprep.subr.mxu0 0.0
    %2485 = vmatpush1.msra.mxu0 0.0
    %2486 = vmatprep.subr.mxu0 0.0
    %2487 = vmatpush1.msra.mxu0 0.0
    %2488 = vmatprep.subr.mxu0 0.0
    %2489 = vmatpush1.msra.mxu0 0.0
    %2490 = vmatprep.subr.mxu0 0.0
    %2491 = vmatpush1.msra.mxu0 0.0
    %2492 = vmatprep.subr.mxu0 0.0
    %2493 = vmatpush1.msra.mxu0 0.0
    %2494 = vmatprep.subr.mxu0 0.0
    %2495 = vmatpush1.msra.mxu0 0.0
    %2496 = vmatprep.subr.mxu0 0.0
    %2497 = vmatpush1.msra.mxu0 0.0
    %2498 = vmatprep.subr.mxu0 0.0
    %2499 = vmatpush1.msra.mxu0 0.0
    %v2500 = vand.u32 %v1459, 4294901760
    %v2501 = vsub.f32 %v1459, %v2500
    %v2502 = vand.u32 %v2501, 4294901760
    %v2503 = vsub.f32 %v2501, %v2502
    %v2504 = vand.u32 %v2503, 4294901760
    %2505 = vmatprep.subr.mxu0 %v2504
    %v2506 = vand.u32 %v1458, 4294901760
    %v2507 = vsub.f32 %v1458, %v2506
    %v2508 = vand.u32 %v2507, 4294901760
    %v2509 = vsub.f32 %v2507, %v2508
    %v2510 = vand.u32 %v2509, 4294901760
    %2511 = vmatpush1.msra.mxu0 %v2510
    %2512 = vmatprep.subr.mxu0 0.0
    %2513 = vmatpush2.msra.mxu0 0.0
    %2514 = vmatprep.subr.mxu0 0.0
    %2515 = vmatpush2.msra.mxu0 0.0
    %2516 = vmatprep.subr.mxu0 0.0
    %2517 = vmatpush2.msra.mxu0 0.0
    %2518 = vmatprep.subr.mxu0 0.0
    %2519 = vmatpush2.msra.mxu0 0.0
    %2520 = vmatprep.subr.mxu0 0.0
    %2521 = vmatpush2.msra.mxu0 0.0
    %2522 = vmatprep.subr.mxu0 0.0
    %2523 = vmatpush2.msra.mxu0 0.0
    %2524 = vmatprep.subr.mxu0 0.0
    %2525 = vmatpush2.msra.mxu0 0.0
    %2526 = vmatprep.subr.mxu0 0.0
    %2527 = vmatpush2.msra.mxu0 0.0
    %2528 = vmatprep.subr.mxu0 0.0
    %2529 = vmatpush2.msra.mxu0 0.0
    %2530 = vmatprep.subr.mxu0 0.0
    %2531 = vmatpush2.msra.mxu0 0.0
    %2532 = vmatprep.subr.mxu0 0.0
    %2533 = vmatpush2.msra.mxu0 0.0
    %2534 = vmatprep.subr.mxu0 0.0
    %2535 = vmatpush2.msra.mxu0 0.0
    %2536 = vmatprep.subr.mxu0 0.0
    %2537 = vmatpush2.msra.mxu0 0.0
    %2538 = vmatprep.subr.mxu0 0.0
    %2539 = vmatpush2.msra.mxu0 0.0
    %2540 = vmatprep.subr.mxu0 0.0
    %2541 = vmatpush2.msra.mxu0 0.0
    %2542 = vmatprep.subr.mxu0 0.0
    %2543 = vmatpush2.msra.mxu0 0.0
    %2544 = vmatprep.mubr.f32.mxu0 0.0
    %v2545 = vand.u32 %v526, 4294901760
    %2546 = vmatmul.mubr.f32.gmra.mxu0 %v2545
    %v2547 = vpop.f32.mrf.mxu0
    %v2548 = vadd.f32 %v2466, %v2547
    %v2549 = vpop.f32.mrf.mxu0
    %v2550 = vadd.f32 %v2468, %v2549
    %2551 = vdwg.mxu0
    %2552 = vmatprep.subr.mxu0 0.0
    %2553 = vmatpush1.msra.mxu0 0.0
    %2554 = vmatprep.subr.mxu0 0.0
    %2555 = vmatpush1.msra.mxu0 0.0
    %2556 = vmatprep.subr.mxu0 0.0
    %2557 = vmatpush1.msra.mxu0 0.0
    %2558 = vmatprep.subr.mxu0 0.0
    %2559 = vmatpush1.msra.mxu0 0.0
    %2560 = vmatprep.subr.mxu0 0.0
    %2561 = vmatpush1.msra.mxu0 0.0
    %2562 = vmatprep.subr.mxu0 0.0
    %2563 = vmatpush1.msra.mxu0 0.0
    %2564 = vmatprep.subr.mxu0 0.0
    %2565 = vmatpush1.msra.mxu0 0.0
    %2566 = vmatprep.subr.mxu0 0.0
    %2567 = vmatpush1.msra.mxu0 0.0
    %2568 = vmatprep.subr.mxu0 0.0
    %2569 = vmatpush1.msra.mxu0 0.0
    %2570 = vmatprep.subr.mxu0 0.0
    %2571 = vmatpush1.msra.mxu0 0.0
    %2572 = vmatprep.subr.mxu0 0.0
    %2573 = vmatpush1.msra.mxu0 0.0
    %2574 = vmatprep.subr.mxu0 0.0
    %2575 = vmatpush1.msra.mxu0 0.0
    %2576 = vmatprep.subr.mxu0 0.0
    %2577 = vmatpush1.msra.mxu0 0.0
    %2578 = vmatprep.subr.mxu0 0.0
    %2579 = vmatpush1.msra.mxu0 0.0
    %2580 = vmatprep.subr.mxu0 0.0
    %2581 = vmatpush1.msra.mxu0 0.0
    %v2582 = vand.u32 %v1459, 4294901760
    %v2583 = vsub.f32 %v1459, %v2582
    %2584 = vmatprep.subr.mxu0 %v2583
    %v2585 = vand.u32 %v1458, 4294901760
    %v2586 = vsub.f32 %v1458, %v2585
    %2587 = vmatpush1.msra.mxu0 %v2586
    %2588 = vmatprep.subr.mxu0 0.0
    %2589 = vmatpush2.msra.mxu0 0.0
    %2590 = vmatprep.subr.mxu0 0.0
    %2591 = vmatpush2.msra.mxu0 0.0
    %2592 = vmatprep.subr.mxu0 0.0
    %2593 = vmatpush2.msra.mxu0 0.0
    %2594 = vmatprep.subr.mxu0 0.0
    %2595 = vmatpush2.msra.mxu0 0.0
    %2596 = vmatprep.subr.mxu0 0.0
    %2597 = vmatpush2.msra.mxu0 0.0
    %2598 = vmatprep.subr.mxu0 0.0
    %2599 = vmatpush2.msra.mxu0 0.0
    %2600 = vmatprep.subr.mxu0 0.0
    %2601 = vmatpush2.msra.mxu0 0.0
    %2602 = vmatprep.subr.mxu0 0.0
    %2603 = vmatpush2.msra.mxu0 0.0
    %2604 = vmatprep.subr.mxu0 0.0
    %2605 = vmatpush2.msra.mxu0 0.0
    %2606 = vmatprep.subr.mxu0 0.0
    %2607 = vmatpush2.msra.mxu0 0.0
    %2608 = vmatprep.subr.mxu0 0.0
    %2609 = vmatpush2.msra.mxu0 0.0
    %2610 = vmatprep.subr.mxu0 0.0
    %2611 = vmatpush2.msra.mxu0 0.0
    %2612 = vmatprep.subr.mxu0 0.0
    %2613 = vmatpush2.msra.mxu0 0.0
    %2614 = vmatprep.subr.mxu0 0.0
    %2615 = vmatpush2.msra.mxu0 0.0
    %2616 = vmatprep.subr.mxu0 0.0
    %2617 = vmatpush2.msra.mxu0 0.0
    %2618 = vmatprep.subr.mxu0 0.0
    %2619 = vmatpush2.msra.mxu0 0.0
    %2620 = vmatprep.mubr.f32.mxu0 0.0
    %v2621 = vand.u32 %v526, 4294901760
    %v2622 = vsub.f32 %v526, %v2621
    %2623 = vmatmul.mubr.f32.gmra.mxu0 %v2622
    %v2624 = vpop.f32.mrf.mxu0
    %v2625 = vadd.f32 %v2548, %v2624
    %v2626 = vpop.f32.mrf.mxu0
    %v2627 = vadd.f32 %v2550, %v2626
    %2628 = vdwg.mxu0
    %2629 = vmatprep.subr.mxu0 0.0
    %2630 = vmatpush1.msra.mxu0 0.0
    %2631 = vmatprep.subr.mxu0 0.0
    %2632 = vmatpush1.msra.mxu0 0.0
    %2633 = vmatprep.subr.mxu0 0.0
    %2634 = vmatpush1.msra.mxu0 0.0
    %2635 = vmatprep.subr.mxu0 0.0
    %2636 = vmatpush1.msra.mxu0 0.0
    %2637 = vmatprep.subr.mxu0 0.0
    %2638 = vmatpush1.msra.mxu0 0.0
    %2639 = vmatprep.subr.mxu0 0.0
    %2640 = vmatpush1.msra.mxu0 0.0
    %2641 = vmatprep.subr.mxu0 0.0
    %2642 = vmatpush1.msra.mxu0 0.0
    %2643 = vmatprep.subr.mxu0 0.0
    %2644 = vmatpush1.msra.mxu0 0.0
    %2645 = vmatprep.subr.mxu0 0.0
    %2646 = vmatpush1.msra.mxu0 0.0
    %2647 = vmatprep.subr.mxu0 0.0
    %2648 = vmatpush1.msra.mxu0 0.0
    %2649 = vmatprep.subr.mxu0 0.0
    %2650 = vmatpush1.msra.mxu0 0.0
    %2651 = vmatprep.subr.mxu0 0.0
    %2652 = vmatpush1.msra.mxu0 0.0
    %2653 = vmatprep.subr.mxu0 0.0
    %2654 = vmatpush1.msra.mxu0 0.0
    %2655 = vmatprep.subr.mxu0 0.0
    %2656 = vmatpush1.msra.mxu0 0.0
    %2657 = vmatprep.subr.mxu0 0.0
    %2658 = vmatpush1.msra.mxu0 0.0
    %v2659 = vand.u32 %v1459, 4294901760
    %2660 = vmatprep.subr.mxu0 %v2659
    %v2661 = vand.u32 %v1458, 4294901760
    %2662 = vmatpush1.msra.mxu0 %v2661
    %2663 = vmatprep.subr.mxu0 0.0
    %2664 = vmatpush2.msra.mxu0 0.0
    %2665 = vmatprep.subr.mxu0 0.0
    %2666 = vmatpush2.msra.mxu0 0.0
    %2667 = vmatprep.subr.mxu0 0.0
    %2668 = vmatpush2.msra.mxu0 0.0
    %2669 = vmatprep.subr.mxu0 0.0
    %2670 = vmatpush2.msra.mxu0 0.0
    %2671 = vmatprep.subr.mxu0 0.0
    %2672 = vmatpush2.msra.mxu0 0.0
    %2673 = vmatprep.subr.mxu0 0.0
    %2674 = vmatpush2.msra.mxu0 0.0
    %2675 = vmatprep.subr.mxu0 0.0
    %2676 = vmatpush2.msra.mxu0 0.0
    %2677 = vmatprep.subr.mxu0 0.0
    %2678 = vmatpush2.msra.mxu0 0.0
    %2679 = vmatprep.subr.mxu0 0.0
    %2680 = vmatpush2.msra.mxu0 0.0
    %2681 = vmatprep.subr.mxu0 0.0
    %2682 = vmatpush2.msra.mxu0 0.0
    %2683 = vmatprep.subr.mxu0 0.0
    %2684 = vmatpush2.msra.mxu0 0.0
    %2685 = vmatprep.subr.mxu0 0.0
    %2686 = vmatpush2.msra.mxu0 0.0
    %2687 = vmatprep.subr.mxu0 0.0
    %2688 = vmatpush2.msra.mxu0 0.0
    %2689 = vmatprep.subr.mxu0 0.0
    %2690 = vmatpush2.msra.mxu0 0.0
    %2691 = vmatprep.subr.mxu0 0.0
    %2692 = vmatpush2.msra.mxu0 0.0
    %2693 = vmatprep.subr.mxu0 0.0
    %2694 = vmatpush2.msra.mxu0 0.0
    %2695 = vmatprep.mubr.f32.mxu0 0.0
    %v2696 = vand.u32 %v526, 4294901760
    %v2697 = vsub.f32 %v526, %v2696
    %v2698 = vand.u32 %v2697, 4294901760
    %2699 = vmatmul.mubr.f32.gmra.mxu0 %v2698
    %v2700 = vpop.f32.mrf.mxu0
    %v2701 = vadd.f32 %v2625, %v2700
    %v2702 = vpop.f32.mrf.mxu0
    %v2703 = vadd.f32 %v2627, %v2702
    %2704 = vdwg.mxu0
    %2705 = vmatprep.subr.mxu0 0.0
    %2706 = vmatpush1.msra.mxu0 0.0
    %2707 = vmatprep.subr.mxu0 0.0
    %2708 = vmatpush1.msra.mxu0 0.0
    %2709 = vmatprep.subr.mxu0 0.0
    %2710 = vmatpush1.msra.mxu0 0.0
    %2711 = vmatprep.subr.mxu0 0.0
    %2712 = vmatpush1.msra.mxu0 0.0
    %2713 = vmatprep.subr.mxu0 0.0
    %2714 = vmatpush1.msra.mxu0 0.0
    %2715 = vmatprep.subr.mxu0 0.0
    %2716 = vmatpush1.msra.mxu0 0.0
    %2717 = vmatprep.subr.mxu0 0.0
    %2718 = vmatpush1.msra.mxu0 0.0
    %2719 = vmatprep.subr.mxu0 0.0
    %2720 = vmatpush1.msra.mxu0 0.0
    %2721 = vmatprep.subr.mxu0 0.0
    %2722 = vmatpush1.msra.mxu0 0.0
    %2723 = vmatprep.subr.mxu0 0.0
    %2724 = vmatpush1.msra.mxu0 0.0
    %2725 = vmatprep.subr.mxu0 0.0
    %2726 = vmatpush1.msra.mxu0 0.0
    %2727 = vmatprep.subr.mxu0 0.0
    %2728 = vmatpush1.msra.mxu0 0.0
    %2729 = vmatprep.subr.mxu0 0.0
    %2730 = vmatpush1.msra.mxu0 0.0
    %2731 = vmatprep.subr.mxu0 0.0
    %2732 = vmatpush1.msra.mxu0 0.0
    %2733 = vmatprep.subr.mxu0 0.0
    %2734 = vmatpush1.msra.mxu0 0.0
    %v2735 = vand.u32 %v1459, 4294901760
    %v2736 = vsub.f32 %v1459, %v2735
    %v2737 = vand.u32 %v2736, 4294901760
    %2738 = vmatprep.subr.mxu0 %v2737
    %v2739 = vand.u32 %v1458, 4294901760
    %v2740 = vsub.f32 %v1458, %v2739
    %v2741 = vand.u32 %v2740, 4294901760
    %2742 = vmatpush1.msra.mxu0 %v2741
    %2743 = vmatprep.subr.mxu0 0.0
    %2744 = vmatpush2.msra.mxu0 0.0
    %2745 = vmatprep.subr.mxu0 0.0
    %2746 = vmatpush2.msra.mxu0 0.0
    %2747 = vmatprep.subr.mxu0 0.0
    %2748 = vmatpush2.msra.mxu0 0.0
    %2749 = vmatprep.subr.mxu0 0.0
    %2750 = vmatpush2.msra.mxu0 0.0
    %2751 = vmatprep.subr.mxu0 0.0
    %2752 = vmatpush2.msra.mxu0 0.0
    %2753 = vmatprep.subr.mxu0 0.0
    %2754 = vmatpush2.msra.mxu0 0.0
    %2755 = vmatprep.subr.mxu0 0.0
    %2756 = vmatpush2.msra.mxu0 0.0
    %2757 = vmatprep.subr.mxu0 0.0
    %2758 = vmatpush2.msra.mxu0 0.0
    %2759 = vmatprep.subr.mxu0 0.0
    %2760 = vmatpush2.msra.mxu0 0.0
    %2761 = vmatprep.subr.mxu0 0.0
    %2762 = vmatpush2.msra.mxu0 0.0
    %2763 = vmatprep.subr.mxu0 0.0
    %2764 = vmatpush2.msra.mxu0 0.0
    %2765 = vmatprep.subr.mxu0 0.0
    %2766 = vmatpush2.msra.mxu0 0.0
    %2767 = vmatprep.subr.mxu0 0.0
    %2768 = vmatpush2.msra.mxu0 0.0
    %2769 = vmatprep.subr.mxu0 0.0
    %2770 = vmatpush2.msra.mxu0 0.0
    %2771 = vmatprep.subr.mxu0 0.0
    %2772 = vmatpush2.msra.mxu0 0.0
    %2773 = vmatprep.subr.mxu0 0.0
    %2774 = vmatpush2.msra.mxu0 0.0
    %2775 = vmatprep.mubr.f32.mxu0 0.0
    %v2776 = vand.u32 %v526, 4294901760
    %2777 = vmatmul.mubr.f32.gmra.mxu0 %v2776
    %v2778 = vpop.f32.mrf.mxu0
    %v2779 = vadd.f32 %v2701, %v2778
    %v2780 = vpop.f32.mrf.mxu0
    %v2781 = vadd.f32 %v2703, %v2780
    %2782 = vdwg.mxu0
    %2783 = vmatprep.subr.mxu0 0.0
    %2784 = vmatpush1.msra.mxu0 0.0
    %2785 = vmatprep.subr.mxu0 0.0
    %2786 = vmatpush1.msra.mxu0 0.0
    %2787 = vmatprep.subr.mxu0 0.0
    %2788 = vmatpush1.msra.mxu0 0.0
    %2789 = vmatprep.subr.mxu0 0.0
    %2790 = vmatpush1.msra.mxu0 0.0
    %2791 = vmatprep.subr.mxu0 0.0
    %2792 = vmatpush1.msra.mxu0 0.0
    %2793 = vmatprep.subr.mxu0 0.0
    %2794 = vmatpush1.msra.mxu0 0.0
    %2795 = vmatprep.subr.mxu0 0.0
    %2796 = vmatpush1.msra.mxu0 0.0
    %2797 = vmatprep.subr.mxu0 0.0
    %2798 = vmatpush1.msra.mxu0 0.0
    %2799 = vmatprep.subr.mxu0 0.0
    %2800 = vmatpush1.msra.mxu0 0.0
    %2801 = vmatprep.subr.mxu0 0.0
    %2802 = vmatpush1.msra.mxu0 0.0
    %2803 = vmatprep.subr.mxu0 0.0
    %2804 = vmatpush1.msra.mxu0 0.0
    %2805 = vmatprep.subr.mxu0 0.0
    %2806 = vmatpush1.msra.mxu0 0.0
    %2807 = vmatprep.subr.mxu0 0.0
    %2808 = vmatpush1.msra.mxu0 0.0
    %2809 = vmatprep.subr.mxu0 0.0
    %2810 = vmatpush1.msra.mxu0 0.0
    %2811 = vmatprep.subr.mxu0 0.0
    %2812 = vmatpush1.msra.mxu0 0.0
    %v2813 = vand.u32 %v1459, 4294901760
    %2814 = vmatprep.subr.mxu0 %v2813
    %v2815 = vand.u32 %v1458, 4294901760
    %2816 = vmatpush1.msra.mxu0 %v2815
    %2817 = vmatprep.subr.mxu0 0.0
    %2818 = vmatpush2.msra.mxu0 0.0
    %2819 = vmatprep.subr.mxu0 0.0
    %2820 = vmatpush2.msra.mxu0 0.0
    %2821 = vmatprep.subr.mxu0 0.0
    %2822 = vmatpush2.msra.mxu0 0.0
    %2823 = vmatprep.subr.mxu0 0.0
    %2824 = vmatpush2.msra.mxu0 0.0
    %2825 = vmatprep.subr.mxu0 0.0
    %2826 = vmatpush2.msra.mxu0 0.0
    %2827 = vmatprep.subr.mxu0 0.0
    %2828 = vmatpush2.msra.mxu0 0.0
    %2829 = vmatprep.subr.mxu0 0.0
    %2830 = vmatpush2.msra.mxu0 0.0
    %2831 = vmatprep.subr.mxu0 0.0
    %2832 = vmatpush2.msra.mxu0 0.0
    %2833 = vmatprep.subr.mxu0 0.0
    %2834 = vmatpush2.msra.mxu0 0.0
    %2835 = vmatprep.subr.mxu0 0.0
    %2836 = vmatpush2.msra.mxu0 0.0
    %2837 = vmatprep.subr.mxu0 0.0
    %2838 = vmatpush2.msra.mxu0 0.0
    %2839 = vmatprep.subr.mxu0 0.0
    %2840 = vmatpush2.msra.mxu0 0.0
    %2841 = vmatprep.subr.mxu0 0.0
    %2842 = vmatpush2.msra.mxu0 0.0
    %2843 = vmatprep.subr.mxu0 0.0
    %2844 = vmatpush2.msra.mxu0 0.0
    %2845 = vmatprep.subr.mxu0 0.0
    %2846 = vmatpush2.msra.mxu0 0.0
    %2847 = vmatprep.subr.mxu0 0.0
    %2848 = vmatpush2.msra.mxu0 0.0
    %2849 = vmatprep.mubr.f32.mxu0 0.0
    %v2850 = vand.u32 %v526, 4294901760
    %2851 = vmatmul.mubr.f32.gmra.mxu0 %v2850
    %v2852 = vpop.f32.mrf.mxu0
    %v2853 = vadd.f32 %v2779, %v2852
    %v2854 = vpop.f32.mrf.mxu0
    %v2855 = vadd.f32 %v2781, %v2854
    %2856 = vdwg.mxu0
    %2857 = vmatprep.subr.mxu0 0.0
    %2858 = vmatpush1.msra.mxu0 0.0
    %2859 = vmatprep.subr.mxu0 0.0
    %2860 = vmatpush1.msra.mxu0 0.0
    %2861 = vmatprep.subr.mxu0 0.0
    %2862 = vmatpush1.msra.mxu0 0.0
    %2863 = vmatprep.subr.mxu0 0.0
    %2864 = vmatpush1.msra.mxu0 0.0
    %2865 = vmatprep.subr.mxu0 0.0
    %2866 = vmatpush1.msra.mxu0 0.0
    %2867 = vmatprep.subr.mxu0 0.0
    %2868 = vmatpush1.msra.mxu0 0.0
    %2869 = vmatprep.subr.mxu0 0.0
    %2870 = vmatpush1.msra.mxu0 0.0
    %2871 = vmatprep.subr.mxu0 0.0
    %2872 = vmatpush1.msra.mxu0 0.0
    %2873 = vmatprep.subr.mxu0 0.0
    %2874 = vmatpush1.msra.mxu0 0.0
    %2875 = vmatprep.subr.mxu0 0.0
    %2876 = vmatpush1.msra.mxu0 0.0
    %2877 = vmatprep.subr.mxu0 0.0
    %2878 = vmatpush1.msra.mxu0 0.0
    %2879 = vmatprep.subr.mxu0 0.0
    %2880 = vmatpush1.msra.mxu0 0.0
    %2881 = vmatprep.subr.mxu0 0.0
    %2882 = vmatpush1.msra.mxu0 0.0
    %2883 = vmatprep.subr.mxu0 0.0
    %2884 = vmatpush1.msra.mxu0 0.0
    %2885 = vmatprep.subr.mxu0 0.0
    %2886 = vmatpush1.msra.mxu0 0.0
    %v2887 = vand.u32 %v1461, 4294901760
    %2888 = vmatprep.subr.mxu0 %v2887
    %v2889 = vand.u32 %v1460, 4294901760
    %2890 = vmatpush1.msra.mxu0 %v2889
    %2891 = vmatprep.subr.mxu0 0.0
    %2892 = vmatpush2.msra.mxu0 0.0
    %2893 = vmatprep.subr.mxu0 0.0
    %2894 = vmatpush2.msra.mxu0 0.0
    %2895 = vmatprep.subr.mxu0 0.0
    %2896 = vmatpush2.msra.mxu0 0.0
    %2897 = vmatprep.subr.mxu0 0.0
    %2898 = vmatpush2.msra.mxu0 0.0
    %2899 = vmatprep.subr.mxu0 0.0
    %2900 = vmatpush2.msra.mxu0 0.0
    %2901 = vmatprep.subr.mxu0 0.0
    %2902 = vmatpush2.msra.mxu0 0.0
    %2903 = vmatprep.subr.mxu0 0.0
    %2904 = vmatpush2.msra.mxu0 0.0
    %2905 = vmatprep.subr.mxu0 0.0
    %2906 = vmatpush2.msra.mxu0 0.0
    %2907 = vmatprep.subr.mxu0 0.0
    %2908 = vmatpush2.msra.mxu0 0.0
    %2909 = vmatprep.subr.mxu0 0.0
    %2910 = vmatpush2.msra.mxu0 0.0
    %2911 = vmatprep.subr.mxu0 0.0
    %2912 = vmatpush2.msra.mxu0 0.0
    %2913 = vmatprep.subr.mxu0 0.0
    %2914 = vmatpush2.msra.mxu0 0.0
    %2915 = vmatprep.subr.mxu0 0.0
    %2916 = vmatpush2.msra.mxu0 0.0
    %2917 = vmatprep.subr.mxu0 0.0
    %2918 = vmatpush2.msra.mxu0 0.0
    %2919 = vmatprep.subr.mxu0 0.0
    %2920 = vmatpush2.msra.mxu0 0.0
    %2921 = vmatprep.subr.mxu0 0.0
    %2922 = vmatpush2.msra.mxu0 0.0
    %2923 = vmatprep.mubr.f32.mxu0 0.0
    %v2924 = vand.u32 %v526, 4294901760
    %v2925 = vsub.f32 %v526, %v2924
    %v2926 = vand.u32 %v2925, 4294901760
    %v2927 = vsub.f32 %v2925, %v2926
    %v2928 = vand.u32 %v2927, 4294901760
    %2929 = vmatmul.mubr.f32.gmra.mxu0 %v2928
    %v2930 = vpop.f32.mrf.mxu0
    %v2931 = vadd.f32 %v2388, %v2930
    %v2932 = vpop.f32.mrf.mxu0
    %v2933 = vadd.f32 %v2390, %v2932
    %2934 = vdwg.mxu0
    %2935 = vmatprep.subr.mxu0 0.0
    %2936 = vmatpush1.msra.mxu0 0.0
    %2937 = vmatprep.subr.mxu0 0.0
    %2938 = vmatpush1.msra.mxu0 0.0
    %2939 = vmatprep.subr.mxu0 0.0
    %2940 = vmatpush1.msra.mxu0 0.0
    %2941 = vmatprep.subr.mxu0 0.0
    %2942 = vmatpush1.msra.mxu0 0.0
    %2943 = vmatprep.subr.mxu0 0.0
    %2944 = vmatpush1.msra.mxu0 0.0
    %2945 = vmatprep.subr.mxu0 0.0
    %2946 = vmatpush1.msra.mxu0 0.0
    %2947 = vmatprep.subr.mxu0 0.0
    %2948 = vmatpush1.msra.mxu0 0.0
    %2949 = vmatprep.subr.mxu0 0.0
    %2950 = vmatpush1.msra.mxu0 0.0
    %2951 = vmatprep.subr.mxu0 0.0
    %2952 = vmatpush1.msra.mxu0 0.0
    %2953 = vmatprep.subr.mxu0 0.0
    %2954 = vmatpush1.msra.mxu0 0.0
    %2955 = vmatprep.subr.mxu0 0.0
    %2956 = vmatpush1.msra.mxu0 0.0
    %2957 = vmatprep.subr.mxu0 0.0
    %2958 = vmatpush1.msra.mxu0 0.0
    %2959 = vmatprep.subr.mxu0 0.0
    %2960 = vmatpush1.msra.mxu0 0.0
    %2961 = vmatprep.subr.mxu0 0.0
    %2962 = vmatpush1.msra.mxu0 0.0
    %2963 = vmatprep.subr.mxu0 0.0
    %2964 = vmatpush1.msra.mxu0 0.0
    %v2965 = vand.u32 %v1461, 4294901760
    %v2966 = vsub.f32 %v1461, %v2965
    %v2967 = vand.u32 %v2966, 4294901760
    %v2968 = vsub.f32 %v2966, %v2967
    %v2969 = vand.u32 %v2968, 4294901760
    %2970 = vmatprep.subr.mxu0 %v2969
    %v2971 = vand.u32 %v1460, 4294901760
    %v2972 = vsub.f32 %v1460, %v2971
    %v2973 = vand.u32 %v2972, 4294901760
    %v2974 = vsub.f32 %v2972, %v2973
    %v2975 = vand.u32 %v2974, 4294901760
    %2976 = vmatpush1.msra.mxu0 %v2975
    %2977 = vmatprep.subr.mxu0 0.0
    %2978 = vmatpush2.msra.mxu0 0.0
    %2979 = vmatprep.subr.mxu0 0.0
    %2980 = vmatpush2.msra.mxu0 0.0
    %2981 = vmatprep.subr.mxu0 0.0
    %2982 = vmatpush2.msra.mxu0 0.0
    %2983 = vmatprep.subr.mxu0 0.0
    %2984 = vmatpush2.msra.mxu0 0.0
    %2985 = vmatprep.subr.mxu0 0.0
    %2986 = vmatpush2.msra.mxu0 0.0
    %2987 = vmatprep.subr.mxu0 0.0
    %2988 = vmatpush2.msra.mxu0 0.0
    %2989 = vmatprep.subr.mxu0 0.0
    %2990 = vmatpush2.msra.mxu0 0.0
    %2991 = vmatprep.subr.mxu0 0.0
    %2992 = vmatpush2.msra.mxu0 0.0
    %2993 = vmatprep.subr.mxu0 0.0
    %2994 = vmatpush2.msra.mxu0 0.0
    %2995 = vmatprep.subr.mxu0 0.0
    %2996 = vmatpush2.msra.mxu0 0.0
    %2997 = vmatprep.subr.mxu0 0.0
    %2998 = vmatpush2.msra.mxu0 0.0
    %2999 = vmatprep.subr.mxu0 0.0
    %3000 = vmatpush2.msra.mxu0 0.0
    %3001 = vmatprep.subr.mxu0 0.0
    %3002 = vmatpush2.msra.mxu0 0.0
    %3003 = vmatprep.subr.mxu0 0.0
    %3004 = vmatpush2.msra.mxu0 0.0
    %3005 = vmatprep.subr.mxu0 0.0
    %3006 = vmatpush2.msra.mxu0 0.0
    %3007 = vmatprep.subr.mxu0 0.0
    %3008 = vmatpush2.msra.mxu0 0.0
    %3009 = vmatprep.mubr.f32.mxu0 0.0
    %v3010 = vand.u32 %v526, 4294901760
    %3011 = vmatmul.mubr.f32.gmra.mxu0 %v3010
    %v3012 = vpop.f32.mrf.mxu0
    %v3013 = vadd.f32 %v2931, %v3012
    %v3014 = vpop.f32.mrf.mxu0
    %v3015 = vadd.f32 %v2933, %v3014
    %3016 = vdwg.mxu0
    %3017 = vmatprep.subr.mxu0 0.0
    %3018 = vmatpush1.msra.mxu0 0.0
    %3019 = vmatprep.subr.mxu0 0.0
    %3020 = vmatpush1.msra.mxu0 0.0
    %3021 = vmatprep.subr.mxu0 0.0
    %3022 = vmatpush1.msra.mxu0 0.0
    %3023 = vmatprep.subr.mxu0 0.0
    %3024 = vmatpush1.msra.mxu0 0.0
    %3025 = vmatprep.subr.mxu0 0.0
    %3026 = vmatpush1.msra.mxu0 0.0
    %3027 = vmatprep.subr.mxu0 0.0
    %3028 = vmatpush1.msra.mxu0 0.0
    %3029 = vmatprep.subr.mxu0 0.0
    %3030 = vmatpush1.msra.mxu0 0.0
    %3031 = vmatprep.subr.mxu0 0.0
    %3032 = vmatpush1.msra.mxu0 0.0
    %3033 = vmatprep.subr.mxu0 0.0
    %3034 = vmatpush1.msra.mxu0 0.0
    %3035 = vmatprep.subr.mxu0 0.0
    %3036 = vmatpush1.msra.mxu0 0.0
    %3037 = vmatprep.subr.mxu0 0.0
    %3038 = vmatpush1.msra.mxu0 0.0
    %3039 = vmatprep.subr.mxu0 0.0
    %3040 = vmatpush1.msra.mxu0 0.0
    %3041 = vmatprep.subr.mxu0 0.0
    %3042 = vmatpush1.msra.mxu0 0.0
    %3043 = vmatprep.subr.mxu0 0.0
    %3044 = vmatpush1.msra.mxu0 0.0
    %3045 = vmatprep.subr.mxu0 0.0
    %3046 = vmatpush1.msra.mxu0 0.0
    %v3047 = vand.u32 %v1461, 4294901760
    %v3048 = vsub.f32 %v1461, %v3047
    %3049 = vmatprep.subr.mxu0 %v3048
    %v3050 = vand.u32 %v1460, 4294901760
    %v3051 = vsub.f32 %v1460, %v3050
    %3052 = vmatpush1.msra.mxu0 %v3051
    %3053 = vmatprep.subr.mxu0 0.0
    %3054 = vmatpush2.msra.mxu0 0.0
    %3055 = vmatprep.subr.mxu0 0.0
    %3056 = vmatpush2.msra.mxu0 0.0
    %3057 = vmatprep.subr.mxu0 0.0
    %3058 = vmatpush2.msra.mxu0 0.0
    %3059 = vmatprep.subr.mxu0 0.0
    %3060 = vmatpush2.msra.mxu0 0.0
    %3061 = vmatprep.subr.mxu0 0.0
    %3062 = vmatpush2.msra.mxu0 0.0
    %3063 = vmatprep.subr.mxu0 0.0
    %3064 = vmatpush2.msra.mxu0 0.0
    %3065 = vmatprep.subr.mxu0 0.0
    %3066 = vmatpush2.msra.mxu0 0.0
    %3067 = vmatprep.subr.mxu0 0.0
    %3068 = vmatpush2.msra.mxu0 0.0
    %3069 = vmatprep.subr.mxu0 0.0
    %3070 = vmatpush2.msra.mxu0 0.0
    %3071 = vmatprep.subr.mxu0 0.0
    %3072 = vmatpush2.msra.mxu0 0.0
    %3073 = vmatprep.subr.mxu0 0.0
    %3074 = vmatpush2.msra.mxu0 0.0
    %3075 = vmatprep.subr.mxu0 0.0
    %3076 = vmatpush2.msra.mxu0 0.0
    %3077 = vmatprep.subr.mxu0 0.0
    %3078 = vmatpush2.msra.mxu0 0.0
    %3079 = vmatprep.subr.mxu0 0.0
    %3080 = vmatpush2.msra.mxu0 0.0
    %3081 = vmatprep.subr.mxu0 0.0
    %3082 = vmatpush2.msra.mxu0 0.0
    %3083 = vmatprep.subr.mxu0 0.0
    %3084 = vmatpush2.msra.mxu0 0.0
    %3085 = vmatprep.mubr.f32.mxu0 0.0
    %v3086 = vand.u32 %v526, 4294901760
    %v3087 = vsub.f32 %v526, %v3086
    %3088 = vmatmul.mubr.f32.gmra.mxu0 %v3087
    %v3089 = vpop.f32.mrf.mxu0
    %v3090 = vadd.f32 %v3013, %v3089
    %v3091 = vpop.f32.mrf.mxu0
    %v3092 = vadd.f32 %v3015, %v3091
    %3093 = vdwg.mxu0
    %3094 = vmatprep.subr.mxu0 0.0
    %3095 = vmatpush1.msra.mxu0 0.0
    %3096 = vmatprep.subr.mxu0 0.0
    %3097 = vmatpush1.msra.mxu0 0.0
    %3098 = vmatprep.subr.mxu0 0.0
    %3099 = vmatpush1.msra.mxu0 0.0
    %3100 = vmatprep.subr.mxu0 0.0
    %3101 = vmatpush1.msra.mxu0 0.0
    %3102 = vmatprep.subr.mxu0 0.0
    %3103 = vmatpush1.msra.mxu0 0.0
    %3104 = vmatprep.subr.mxu0 0.0
    %3105 = vmatpush1.msra.mxu0 0.0
    %3106 = vmatprep.subr.mxu0 0.0
    %3107 = vmatpush1.msra.mxu0 0.0
    %3108 = vmatprep.subr.mxu0 0.0
    %3109 = vmatpush1.msra.mxu0 0.0
    %3110 = vmatprep.subr.mxu0 0.0
    %3111 = vmatpush1.msra.mxu0 0.0
    %3112 = vmatprep.subr.mxu0 0.0
    %3113 = vmatpush1.msra.mxu0 0.0
    %3114 = vmatprep.subr.mxu0 0.0
    %3115 = vmatpush1.msra.mxu0 0.0
    %3116 = vmatprep.subr.mxu0 0.0
    %3117 = vmatpush1.msra.mxu0 0.0
    %3118 = vmatprep.subr.mxu0 0.0
    %3119 = vmatpush1.msra.mxu0 0.0
    %3120 = vmatprep.subr.mxu0 0.0
    %3121 = vmatpush1.msra.mxu0 0.0
    %3122 = vmatprep.subr.mxu0 0.0
    %3123 = vmatpush1.msra.mxu0 0.0
    %v3124 = vand.u32 %v1461, 4294901760
    %3125 = vmatprep.subr.mxu0 %v3124
    %v3126 = vand.u32 %v1460, 4294901760
    %3127 = vmatpush1.msra.mxu0 %v3126
    %3128 = vmatprep.subr.mxu0 0.0
    %3129 = vmatpush2.msra.mxu0 0.0
    %3130 = vmatprep.subr.mxu0 0.0
    %3131 = vmatpush2.msra.mxu0 0.0
    %3132 = vmatprep.subr.mxu0 0.0
    %3133 = vmatpush2.msra.mxu0 0.0
    %3134 = vmatprep.subr.mxu0 0.0
    %3135 = vmatpush2.msra.mxu0 0.0
    %3136 = vmatprep.subr.mxu0 0.0
    %3137 = vmatpush2.msra.mxu0 0.0
    %3138 = vmatprep.subr.mxu0 0.0
    %3139 = vmatpush2.msra.mxu0 0.0
    %3140 = vmatprep.subr.mxu0 0.0
    %3141 = vmatpush2.msra.mxu0 0.0
    %3142 = vmatprep.subr.mxu0 0.0
    %3143 = vmatpush2.msra.mxu0 0.0
    %3144 = vmatprep.subr.mxu0 0.0
    %3145 = vmatpush2.msra.mxu0 0.0
    %3146 = vmatprep.subr.mxu0 0.0
    %3147 = vmatpush2.msra.mxu0 0.0
    %3148 = vmatprep.subr.mxu0 0.0
    %3149 = vmatpush2.msra.mxu0 0.0
    %3150 = vmatprep.subr.mxu0 0.0
    %3151 = vmatpush2.msra.mxu0 0.0
    %3152 = vmatprep.subr.mxu0 0.0
    %3153 = vmatpush2.msra.mxu0 0.0
    %3154 = vmatprep.subr.mxu0 0.0
    %3155 = vmatpush2.msra.mxu0 0.0
    %3156 = vmatprep.subr.mxu0 0.0
    %3157 = vmatpush2.msra.mxu0 0.0
    %3158 = vmatprep.subr.mxu0 0.0
    %3159 = vmatpush2.msra.mxu0 0.0
    %3160 = vmatprep.mubr.f32.mxu0 0.0
    %v3161 = vand.u32 %v526, 4294901760
    %v3162 = vsub.f32 %v526, %v3161
    %v3163 = vand.u32 %v3162, 4294901760
    %3164 = vmatmul.mubr.f32.gmra.mxu0 %v3163
    %v3165 = vpop.f32.mrf.mxu0
    %v3166 = vadd.f32 %v3090, %v3165
    %v3167 = vpop.f32.mrf.mxu0
    %v3168 = vadd.f32 %v3092, %v3167
    %3169 = vdwg.mxu0
    %3170 = vmatprep.subr.mxu0 0.0
    %3171 = vmatpush1.msra.mxu0 0.0
    %3172 = vmatprep.subr.mxu0 0.0
    %3173 = vmatpush1.msra.mxu0 0.0
    %3174 = vmatprep.subr.mxu0 0.0
    %3175 = vmatpush1.msra.mxu0 0.0
    %3176 = vmatprep.subr.mxu0 0.0
    %3177 = vmatpush1.msra.mxu0 0.0
    %3178 = vmatprep.subr.mxu0 0.0
    %3179 = vmatpush1.msra.mxu0 0.0
    %3180 = vmatprep.subr.mxu0 0.0
    %3181 = vmatpush1.msra.mxu0 0.0
    %3182 = vmatprep.subr.mxu0 0.0
    %3183 = vmatpush1.msra.mxu0 0.0
    %3184 = vmatprep.subr.mxu0 0.0
    %3185 = vmatpush1.msra.mxu0 0.0
    %3186 = vmatprep.subr.mxu0 0.0
    %3187 = vmatpush1.msra.mxu0 0.0
    %3188 = vmatprep.subr.mxu0 0.0
    %3189 = vmatpush1.msra.mxu0 0.0
    %3190 = vmatprep.subr.mxu0 0.0
    %3191 = vmatpush1.msra.mxu0 0.0
    %3192 = vmatprep.subr.mxu0 0.0
    %3193 = vmatpush1.msra.mxu0 0.0
    %3194 = vmatprep.subr.mxu0 0.0
    %3195 = vmatpush1.msra.mxu0 0.0
    %3196 = vmatprep.subr.mxu0 0.0
    %3197 = vmatpush1.msra.mxu0 0.0
    %3198 = vmatprep.subr.mxu0 0.0
    %3199 = vmatpush1.msra.mxu0 0.0
    %v3200 = vand.u32 %v1461, 4294901760
    %v3201 = vsub.f32 %v1461, %v3200
    %v3202 = vand.u32 %v3201, 4294901760
    %3203 = vmatprep.subr.mxu0 %v3202
    %v3204 = vand.u32 %v1460, 4294901760
    %v3205 = vsub.f32 %v1460, %v3204
    %v3206 = vand.u32 %v3205, 4294901760
    %3207 = vmatpush1.msra.mxu0 %v3206
    %3208 = vmatprep.subr.mxu0 0.0
    %3209 = vmatpush2.msra.mxu0 0.0
    %3210 = vmatprep.subr.mxu0 0.0
    %3211 = vmatpush2.msra.mxu0 0.0
    %3212 = vmatprep.subr.mxu0 0.0
    %3213 = vmatpush2.msra.mxu0 0.0
    %3214 = vmatprep.subr.mxu0 0.0
    %3215 = vmatpush2.msra.mxu0 0.0
    %3216 = vmatprep.subr.mxu0 0.0
    %3217 = vmatpush2.msra.mxu0 0.0
    %3218 = vmatprep.subr.mxu0 0.0
    %3219 = vmatpush2.msra.mxu0 0.0
    %3220 = vmatprep.subr.mxu0 0.0
    %3221 = vmatpush2.msra.mxu0 0.0
    %3222 = vmatprep.subr.mxu0 0.0
    %3223 = vmatpush2.msra.mxu0 0.0
    %3224 = vmatprep.subr.mxu0 0.0
    %3225 = vmatpush2.msra.mxu0 0.0
    %3226 = vmatprep.subr.mxu0 0.0
    %3227 = vmatpush2.msra.mxu0 0.0
    %3228 = vmatprep.subr.mxu0 0.0
    %3229 = vmatpush2.msra.mxu0 0.0
    %3230 = vmatprep.subr.mxu0 0.0
    %3231 = vmatpush2.msra.mxu0 0.0
    %3232 = vmatprep.subr.mxu0 0.0
    %3233 = vmatpush2.msra.mxu0 0.0
    %3234 = vmatprep.subr.mxu0 0.0
    %3235 = vmatpush2.msra.mxu0 0.0
    %3236 = vmatprep.subr.mxu0 0.0
    %3237 = vmatpush2.msra.mxu0 0.0
    %3238 = vmatprep.subr.mxu0 0.0
    %3239 = vmatpush2.msra.mxu0 0.0
    %3240 = vmatprep.mubr.f32.mxu0 0.0
    %v3241 = vand.u32 %v526, 4294901760
    %3242 = vmatmul.mubr.f32.gmra.mxu0 %v3241
    %v3243 = vpop.f32.mrf.mxu0
    %v3244 = vadd.f32 %v3166, %v3243
    %v3245 = vpop.f32.mrf.mxu0
    %v3246 = vadd.f32 %v3168, %v3245
    %3247 = vdwg.mxu0
    %3248 = vmatprep.subr.mxu0 0.0
    %3249 = vmatpush1.msra.mxu0 0.0
    %3250 = vmatprep.subr.mxu0 0.0
    %3251 = vmatpush1.msra.mxu0 0.0
    %3252 = vmatprep.subr.mxu0 0.0
    %3253 = vmatpush1.msra.mxu0 0.0
    %3254 = vmatprep.subr.mxu0 0.0
    %3255 = vmatpush1.msra.mxu0 0.0
    %3256 = vmatprep.subr.mxu0 0.0
    %3257 = vmatpush1.msra.mxu0 0.0
    %3258 = vmatprep.subr.mxu0 0.0
    %3259 = vmatpush1.msra.mxu0 0.0
    %3260 = vmatprep.subr.mxu0 0.0
    %3261 = vmatpush1.msra.mxu0 0.0
    %3262 = vmatprep.subr.mxu0 0.0
    %3263 = vmatpush1.msra.mxu0 0.0
    %3264 = vmatprep.subr.mxu0 0.0
    %3265 = vmatpush1.msra.mxu0 0.0
    %3266 = vmatprep.subr.mxu0 0.0
    %3267 = vmatpush1.msra.mxu0 0.0
    %3268 = vmatprep.subr.mxu0 0.0
    %3269 = vmatpush1.msra.mxu0 0.0
    %3270 = vmatprep.subr.mxu0 0.0
    %3271 = vmatpush1.msra.mxu0 0.0
    %3272 = vmatprep.subr.mxu0 0.0
    %3273 = vmatpush1.msra.mxu0 0.0
    %3274 = vmatprep.subr.mxu0 0.0
    %3275 = vmatpush1.msra.mxu0 0.0
    %3276 = vmatprep.subr.mxu0 0.0
    %3277 = vmatpush1.msra.mxu0 0.0
    %v3278 = vand.u32 %v1461, 4294901760
    %3279 = vmatprep.subr.mxu0 %v3278
    %v3280 = vand.u32 %v1460, 4294901760
    %3281 = vmatpush1.msra.mxu0 %v3280
    %3282 = vmatprep.subr.mxu0 0.0
    %3283 = vmatpush2.msra.mxu0 0.0
    %3284 = vmatprep.subr.mxu0 0.0
    %3285 = vmatpush2.msra.mxu0 0.0
    %3286 = vmatprep.subr.mxu0 0.0
    %3287 = vmatpush2.msra.mxu0 0.0
    %3288 = vmatprep.subr.mxu0 0.0
    %3289 = vmatpush2.msra.mxu0 0.0
    %3290 = vmatprep.subr.mxu0 0.0
    %3291 = vmatpush2.msra.mxu0 0.0
    %3292 = vmatprep.subr.mxu0 0.0
    %3293 = vmatpush2.msra.mxu0 0.0
    %3294 = vmatprep.subr.mxu0 0.0
    %3295 = vmatpush2.msra.mxu0 0.0
    %3296 = vmatprep.subr.mxu0 0.0
    %3297 = vmatpush2.msra.mxu0 0.0
    %3298 = vmatprep.subr.mxu0 0.0
    %3299 = vmatpush2.msra.mxu0 0.0
    %3300 = vmatprep.subr.mxu0 0.0
    %3301 = vmatpush2.msra.mxu0 0.0
    %3302 = vmatprep.subr.mxu0 0.0
    %3303 = vmatpush2.msra.mxu0 0.0
    %3304 = vmatprep.subr.mxu0 0.0
    %3305 = vmatpush2.msra.mxu0 0.0
    %3306 = vmatprep.subr.mxu0 0.0
    %3307 = vmatpush2.msra.mxu0 0.0
    %3308 = vmatprep.subr.mxu0 0.0
    %3309 = vmatpush2.msra.mxu0 0.0
    %3310 = vmatprep.subr.mxu0 0.0
    %3311 = vmatpush2.msra.mxu0 0.0
    %3312 = vmatprep.subr.mxu0 0.0
    %3313 = vmatpush2.msra.mxu0 0.0
    %3314 = vmatprep.mubr.f32.mxu0 0.0
    %v3315 = vand.u32 %v526, 4294901760
    %3316 = vmatmul.mubr.f32.gmra.mxu0 %v3315
    %v3317 = vpop.f32.mrf.mxu0
    %v3318 = vadd.f32 %v3244, %v3317
    %v3319 = vpop.f32.mrf.mxu0
    %v3320 = vadd.f32 %v3246, %v3319
    %3321 = vdwg.mxu0
    %3322 = vst [vmem:[#allocation10] sm:$0xff] %v2853
    %3323 = vst [vmem:[#allocation10 + $0x8] sm:$0xff] %v2855
    %3324 = vst [vmem:[#allocation10 + $0x10] sm:$0xff] %v3318
    %3325 = vst [vmem:[#allocation10 + $0x18] sm:$0xff] %v3320
    // Predicated region
    $region34: #{tpu_custom_call.1} parent=1 // pred_check
      _
    $region35: #{tpu_custom_call.1} parent=1 // pred_check_branch
      %3327 = sbr.rel (0) target = $region37
    $region36: #{tpu_custom_call.1} parent=1 // pred_region
      %s3329 = ssub.s32 512, 512
      %3330 = vsyncadd [#allocation4], %s3329
      %s3332 = sshll.u32 [#allocation10], 4
      %s3333 = int_to_ptr.vmem [resolvable:$true] %s3332
      %3335 = dma.vmem_to_hbm [thread:$0]  %s3333, 512, %s4, [#allocation4]
    $region37: #{tpu_custom_call.1} parent=1 // pred_fallthru
      _
    // Predicated region
    $region38: #{tpu_custom_call.1} parent=1 // pred_check
      _
    $region39: #{tpu_custom_call.1} parent=1 // pred_check_branch
      %3337 = sbr.rel (0) target = $region41
    $region40: #{tpu_custom_call.1} parent=1 // pred_region
      %3338 = dma.done [#allocation4], 512
    $region41: #{tpu_custom_call.1} parent=1 // pred_fallthru
      _
    %3339 = vsyncpa [#allocation3], 1
    %3340 = vsyncpa [#allocation6], 1
    %3341 = vsyncpa [#allocation9], 1
    %3342 = vsyncpa [#allocation4], 1

</llo_original>
